<compile_context>
chip_gen: v7x
topology: tpu7x:2x2x1
jax: 0.10.0
libtpu: 0.0.40
codegen_flags: <defaults>
</compile_context>

<pallas_src>
import functools

import jax
import jax.numpy as jnp
from jax import lax
from jax.experimental import pallas as pl
from jax.experimental.pallas import tpu as pltpu

EPS = 1e-5
LANE = 128
VMEM_LIMIT = 48 * 1024 * 1024


def _round_up(x, m):
    return (x + m - 1) // m * m


# ---------------------------------------------------------------------------
# Phase 1 (1x1x1 convs): tiled matmul + per-channel sum / sum-of-squares.
# Stats outputs are resident accumulators (block index constant across grid).
# ---------------------------------------------------------------------------
def _matmul_stats_kernel(x_ref, w_ref, y_ref, sum_ref, ssq_ref, *, chunk):
    @pl.when(pl.program_id(0) == 0)
    def _():
        sum_ref[...] = jnp.zeros_like(sum_ref)
        ssq_ref[...] = jnp.zeros_like(ssq_ref)

    w = w_ref[...]
    tm = x_ref.shape[0]
    s = jnp.zeros_like(sum_ref)
    q = jnp.zeros_like(ssq_ref)
    ones = jnp.ones((1, chunk), jnp.float32)
    # Process the M-tile in row chunks to bound vreg live ranges.
    for r in range(0, tm, chunk):
        y = jnp.dot(x_ref[r:r + chunk, :], w,
                    preferred_element_type=jnp.float32)
        y_ref[r:r + chunk, :] = y
        # Per-channel reductions on the MXU (ones-matmul) instead of the XLU.
        s = s + jnp.dot(ones, y, preferred_element_type=jnp.float32)
        q = q + jnp.dot(ones, y * y, preferred_element_type=jnp.float32)
    sum_ref[...] += s
    ssq_ref[...] += q


def matmul_stats(x_bf16, w_bf16, tm):
    mp, k = x_bf16.shape
    c = w_bf16.shape[1]
    nt = mp // tm
    chunk = min(128, tm)
    cost = pl.CostEstimate(
        flops=int(2 * mp * k * c + 4 * mp * c),
        transcendentals=0,
        bytes_accessed=int(mp * k * 2 + k * c * 2 + mp * c * 4 + 2 * c * 4))
    return pl.pallas_call(
        functools.partial(_matmul_stats_kernel, chunk=chunk),
        out_shape=(jax.ShapeDtypeStruct((mp, c), jnp.float32),
                   jax.ShapeDtypeStruct((1, c), jnp.float32),
                   jax.ShapeDtypeStruct((1, c), jnp.float32)),
        grid=(nt,),
        in_specs=[pl.BlockSpec((tm, k), lambda i: (i, 0)),
                  pl.BlockSpec((k, c), lambda i: (0, 0))],
        out_specs=(pl.BlockSpec((tm, c), lambda i: (i, 0)),
                   pl.BlockSpec((1, c), lambda i: (0, 0)),
                   pl.BlockSpec((1, c), lambda i: (0, 0))),
        compiler_params=pltpu.CompilerParams(
            dimension_semantics=("arbitrary",),  # stats accumulate across M tiles
            vmem_limit_bytes=VMEM_LIMIT),
        cost_estimate=cost,
    )(x_bf16, w_bf16)


# ---------------------------------------------------------------------------
# Phase 1 (3x3x3 conv, pad=1, stride=1): tap-accumulation conv + BN stats.
# Grid = (N, Do, kd); the (kh, kw) taps are statically unrolled; the padded
# (H+2, W+2) plane for depth do+kd is selected purely by the BlockSpec, so no
# 27x im2col ever hits HBM. Per-plane accumulation lives in a VMEM scratch.
# ---------------------------------------------------------------------------
def _conv3x3x3_stats_kernel(xp_ref, w_ref, y_ref, sum_ref, ssq_ref, acc_ref,
                            *, ho, wo):
    n = pl.program_id(0)
    d = pl.program_id(1)
    kd = pl.program_id(2)

    @pl.when((n == 0) & (d == 0) & (kd == 0))
    def _():
        sum_ref[...] = jnp.zeros_like(sum_ref)
        ssq_ref[...] = jnp.zeros_like(ssq_ref)

    @pl.when(kd == 0)
    def _():
        acc_ref[...] = jnp.zeros_like(acc_ref)

    # Full padded (Hp, Wp, Cp) plane; slice the 9 shifted windows statically.
    plane = xp_ref[0, 0].astype(jnp.float32)
    cp = plane.shape[-1]
    for kh in range(3):
        for kw in range(3):
            win = plane[kh:kh + ho, kw:kw + wo, :].reshape(ho * wo, cp)
            acc_ref[...] += jnp.dot(win.astype(jnp.bfloat16),
                                    w_ref[kd, kh * 3 + kw],
                                    preferred_element_type=jnp.float32)

    @pl.when(kd == 2)
    def _():
        y = acc_ref[...]
        y_ref[0, 0] = y
        ones = jnp.ones((1, ho * wo), jnp.float32)
        sum_ref[...] += jnp.dot(ones, y, preferred_element_type=jnp.float32)
        ssq_ref[...] += jnp.dot(ones, y * y, preferred_element_type=jnp.float32)


def conv3x3x3_stats(xp_bf16, w_bf16):
    n, dp, hp, wp, cp = xp_bf16.shape
    do, ho, wo = dp - 2, hp - 2, wp - 2
    w_flat = w_bf16.reshape(3, 9, cp, cp)
    cost = pl.CostEstimate(
        flops=int(2 * n * do * 27 * ho * wo * cp * cp),
        transcendentals=0,
        bytes_accessed=int(3 * n * dp * hp * wp * cp * 2 + 27 * cp * cp * 2
                           + n * do * ho * wo * cp * 4))
    return pl.pallas_call(
        functools.partial(_conv3x3x3_stats_kernel, ho=ho, wo=wo),
        out_shape=(jax.ShapeDtypeStruct((n, do, ho * wo, cp), jnp.float32),
                   jax.ShapeDtypeStruct((1, cp), jnp.float32),
                   jax.ShapeDtypeStruct((1, cp), jnp.float32)),
        grid=(n, do, 3),
        in_specs=[pl.BlockSpec((1, 1, hp, wp, cp),
                               lambda i, j, k: (i, j + k, 0, 0, 0)),
                  pl.BlockSpec((3, 9, cp, cp),
                               lambda i, j, k: (0, 0, 0, 0))],   # weights resident
        out_specs=(pl.BlockSpec((1, 1, ho * wo, cp),
                                lambda i, j, k: (i, j, 0, 0)),
                   pl.BlockSpec((1, cp), lambda i, j, k: (0, 0)),
                   pl.BlockSpec((1, cp), lambda i, j, k: (0, 0))),
        scratch_shapes=[pltpu.VMEM((ho * wo, cp), jnp.float32)],
        compiler_params=pltpu.CompilerParams(
            dimension_semantics=("arbitrary", "arbitrary", "arbitrary"),
            vmem_limit_bytes=VMEM_LIMIT),
        cost_estimate=cost,
    )(xp_bf16, w_flat)


# ---------------------------------------------------------------------------
# Phase 2: apply folded BN scale/shift (+ residual) + ReLU, tiled over rows.
# ---------------------------------------------------------------------------
def _bn_act_kernel(y_ref, scale_ref, shift_ref, o_ref, *, chunk):
    scale = scale_ref[...]
    shift = shift_ref[...]
    for r in range(0, y_ref.shape[0], chunk):
        o_ref[r:r + chunk, :] = jnp.maximum(
            y_ref[r:r + chunk, :] * scale + shift, 0.0).astype(o_ref.dtype)


def _bn_add_act_kernel(y_ref, scale_ref, shift_ref, res_ref, o_ref, *, chunk):
    scale = scale_ref[...]
    shift = shift_ref[...]
    for r in range(0, y_ref.shape[0], chunk):
        o_ref[r:r + chunk, :] = jnp.maximum(
            y_ref[r:r + chunk, :] * scale + shift + res_ref[r:r + chunk, :],
            0.0).astype(o_ref.dtype)


def bn_act(y, scale, shift, tm, out_dtype, residual=None):
    mp, c = y.shape
    nt = mp // tm
    chunk = min(128, tm)
    args = [y, scale, shift]
    in_specs = [pl.BlockSpec((tm, c), lambda i: (i, 0)),
                pl.BlockSpec((1, c), lambda i: (0, 0)),
                pl.BlockSpec((1, c), lambda i: (0, 0))]
    nbytes = mp * c * 4 + 2 * c * 4 + mp * c * jnp.dtype(out_dtype).itemsize
    if residual is None:
        kern = functools.partial(_bn_act_kernel, chunk=chunk)
    else:
        args.append(residual)
        # residual streamed with the same M tiling as the output (not untiled)
        in_specs.append(pl.BlockSpec((tm, c), lambda i: (i, 0)))
        nbytes += mp * c * 4
        kern = functools.partial(_bn_add_act_kernel, chunk=chunk)
    cost = pl.CostEstimate(flops=int(4 * mp * c), transcendentals=0,
                           bytes_accessed=int(nbytes))
    return pl.pallas_call(
        kern,
        out_shape=jax.ShapeDtypeStruct((mp, c), out_dtype),
        grid=(nt,),
        in_specs=in_specs,
        out_specs=pl.BlockSpec((tm, c), lambda i: (i, 0)),
        compiler_params=pltpu.CompilerParams(
            dimension_semantics=("parallel",),   # megacore-splittable on v7x
            vmem_limit_bytes=VMEM_LIMIT),
        cost_estimate=cost,
    )(*args)


def _bn_scale_shift(s, ss, count, gamma, beta):
    """Fold batch statistics into per-channel scale/shift (tiny XLA op)."""
    mean = s[0] / count
    var = jnp.maximum(ss[0] / count - mean * mean, 0.0)  # clamp fp noise
    scale = gamma * lax.rsqrt(var + EPS)
    shift = beta - mean * scale
    return scale.reshape(1, -1), shift.reshape(1, -1)


def _pad_rows(a, mp):
    m = a.shape[0]
    if m == mp:
        return a
    return jnp.zeros((mp,) + a.shape[1:], a.dtype).at[:m].set(a)


# ---------------------------------------------------------------------------
# Bottleneck forward (downsample=None configuration => identity residual).
# ---------------------------------------------------------------------------
def bottleneck_forward(x, params, stride=1):
    # TODO(synk): downsample submodule (strided 1x1 conv + BN) not translated;
    # with downsample=None the identity residual requires stride == 1.
    assert stride == 1, "stride != 1 requires the downsample branch"
    n, d, h, w, cin = x.shape
    p = params["w1"].shape[1]
    cout = 4 * p
    assert cin == cout, "identity residual requires inplanes == 4 * planes"

    f32, bf16 = jnp.float32, jnp.bfloat16
    cin_p = _round_up(cin, LANE)
    p_p = _round_up(p, LANE)
    cout_p = _round_up(cout, LANE)

    m = n * d * h * w
    tm = min(512, _round_up(m, 128))     # large M tile, multiple of 128 rows
    mp = _round_up(m, tm)

    # --- lane-dense channel padding; weights cast to bf16 for the MXU -------
    w1 = jnp.zeros((cin_p, p_p), bf16).at[:cin, :p].set(params["w1"].astype(bf16))
    w2 = jnp.zeros((3, 3, 3, p_p, p_p), bf16).at[..., :p, :p].set(
        params["w2"].astype(bf16))
    w3 = jnp.zeros((p_p, cout_p), bf16).at[:p, :cout].set(params["w3"].astype(bf16))

    def pad_vec(v, c, fill):
        return jnp.full((c,), fill, f32).at[:v.shape[0]].set(v.astype(f32))

    g1, b1 = pad_vec(params["g1"], p_p, 1.0), pad_vec(params["b1"], p_p, 0.0)
    g2, b2 = pad_vec(params["g2"], p_p, 1.0), pad_vec(params["b2"], p_p, 0.0)
    g3, b3 = pad_vec(params["g3"], cout_p, 1.0), pad_vec(params["b3"], cout_p, 0.0)

    x_pad = jnp.zeros((mp, cin_p), f32).at[:m, :cin].set(x.reshape(m, cin))

    # --- conv1 (1x1x1) + bn1 + relu -----------------------------------------
    y1, s1, q1 = matmul_stats(x_pad.astype(bf16), w1, tm)
    sc1, sh1 = _bn_scale_shift(s1, q1, m, g1, b1)
    a1 = bn_act(y1, sc1, sh1, tm, bf16)                        # (mp, p_p) bf16
    a1 = a1[:m].reshape(n, d, h, w, p_p)
    a1p = jnp.pad(a1, ((0, 0), (1, 1), (1, 1), (1, 1), (0, 0)))

    # --- conv2 (3x3x3, pad=1) + bn2 + relu ----------------------------------
    y2, s2, q2 = conv3x3x3_stats(a1p, w2)
    do, ho, wo = d, h, w
    m2 = n * do * ho * wo
    mp2 = _round_up(m2, tm)
    sc2, sh2 = _bn_scale_shift(s2, q2, m2, g2, b2)
    a2 = bn_act(_pad_rows(y2.reshape(m2, p_p), mp2), sc2, sh2, tm, bf16)
    if mp2 != m2:
        a2 = a2.at[m2:].set(0)           # keep padded rows out of conv3 stats

    # --- conv3 (1x1x1) + bn3 + residual + relu ------------------------------
    y3, s3, q3 = matmul_stats(a2, w3, tm)
    sc3, sh3 = _bn_scale_shift(s3, q3, m2, g3, b3)
    out = bn_act(y3, sc3, sh3, tm, f32, residual=x_pad)        # identity residual
    return out[:m2, :cout].reshape(n, do, ho, wo, cout)


# ---------------------------------------------------------------------------
# Pure-JAX references for validation.
# ---------------------------------------------------------------------------
def bottleneck_ref(x, params, stride=1, matmul_dtype=jnp.bfloat16):
    def bn(y, g, b):
        mean = y.mean(axis=(0, 1, 2, 3), keepdims=True)
        var = ((y - mean) ** 2).mean(axis=(0, 1, 2, 3), keepdims=True)
        return (y - mean) * lax.rsqrt(var + EPS) * g + b

    def conv1x1(y, wm):
        sh = y.shape
        out = jnp.dot(y.reshape(-1, sh[-1]).astype(matmul_dtype),
                      wm.astype(matmul_dtype),
                      preferred_element_type=jnp.float32)
        return out.reshape(sh[:-1] + (wm.shape[-1],))

    def conv3x3x3(y, wk):
        n_, d_, h_, w_, c_ = y.shape
        yp = jnp.pad(y, ((0, 0), (1, 1), (1, 1), (1, 1), (0, 0)))
        taps = []
        for kd in range(3):
            for kh in range(3):
                for kw in range(3):
                    taps.append(yp[:, kd:kd + d_, kh:kh + h_, kw:kw + w_, :])
        cols = jnp.concatenate(taps, axis=-1).astype(matmul_dtype)
        wm = wk.reshape(27 * c_, -1).astype(matmul_dtype)
        out = jnp.dot(cols.reshape(-1, 27 * c_), wm,
                      preferred_element_type=jnp.float32)
        return out.reshape(n_, d_, h_, w_, -1)

    y = conv1x1(x, params["w1"])
    y = jax.nn.relu(bn(y, params["g1"], params["b1"]))
    y = conv3x3x3(y, params["w2"])
    y = jax.nn.relu(bn(y, params["g2"], params["b2"]))
    y = conv1x1(y, params["w3"])
    y = bn(y, params["g3"], params["b3"]) + x
    return jax.nn.relu(y)


if __name__ == "__main__":
    key = jax.random.PRNGKey(0)
    N, D, H, W = 2, 8, 8, 8
    planes = 4
    inplanes = planes * 4          # downsample is None => identity residual
    stride = 1

    k = jax.random.split(key, 4)
    params = {
        "w1": 0.1 * jax.random.normal(k[0], (inplanes, planes), jnp.float32),
        "g1": jnp.ones((planes,), jnp.float32),
        "b1": jnp.zeros((planes,), jnp.float32),
        "w2": 0.1 * jax.random.normal(k[1], (3, 3, 3, planes, planes), jnp.float32),
        "g2": jnp.ones((planes,), jnp.float32),
        "b2": jnp.zeros((planes,), jnp.float32),
        "w3": 0.1 * jax.random.normal(k[2], (planes, planes * 4), jnp.float32),
        "g3": jnp.ones((planes * 4,), jnp.float32),
        "b3": jnp.zeros((planes * 4,), jnp.float32),
    }
    x = jax.random.normal(k[3], (N, D, H, W, inplanes), jnp.float32)

    fwd = jax.jit(bottleneck_forward, static_argnums=2)
    out = jax.block_until_ready(fwd(x, params, stride))

    ref_bf = bottleneck_ref(x, params, stride, matmul_dtype=jnp.bfloat16)
    ref_f32 = bottleneck_ref(x, params, stride, matmul_dtype=jnp.float32)

    assert out.shape == (N, D, H, W, planes * 4), out.shape
    err_bf = float(jnp.max(jnp.abs(out - ref_bf)))
    err_f32 = float(jnp.max(jnp.abs(out - ref_f32)))
    assert err_bf < 5e-3, f"mismatch vs matched-precision reference: {err_bf}"
    assert err_f32 < 5e-2, f"mismatch vs f32 reference: {err_f32}"
    print("KERNEL_OK")
</pallas_src>

<mosaic_0001>
module attributes {stable_mosaic.version = 11 : i64} {
  func.func @_matmul_stats_kernel(%arg0: i32, %arg1: memref<512x128xbf16, #tpu.memory_space<vmem>>, %arg2: memref<128x128xbf16, #tpu.memory_space<vmem>>, %arg3: memref<512x128xf32, #tpu.memory_space<vmem>>, %arg4: memref<1x128xf32, #tpu.memory_space<vmem>>, %arg5: memref<1x128xf32, #tpu.memory_space<vmem>>) attributes {dimension_semantics = [#tpu.dimension_semantics<arbitrary>], iteration_bounds = array<i64: 2>, scalar_prefetch = 0 : i64, scratch_operands = 0 : i64, tpu.core_type = #tpu.core_type<tc>, window_params = [{transform_indices = @transform_0, window_bounds = array<i64: 512, 128>}, {pipeline_mode = #tpu.pipeline_mode<synchronous>, transform_indices = @transform_1, window_bounds = array<i64: 128, 128>}, {transform_indices = @transform_2, window_bounds = array<i64: 512, 128>}, {pipeline_mode = #tpu.pipeline_mode<synchronous>, transform_indices = @transform_3, window_bounds = array<i64: 1, 128>}, {pipeline_mode = #tpu.pipeline_mode<synchronous>, transform_indices = @transform_4, window_bounds = array<i64: 1, 128>}]} {
    %c0_i32 = arith.constant 0 : i32
    %0 = arith.cmpi eq, %arg0, %c0_i32 : i32
    %1 = arith.extui %0 : i1 to i32
    %c0_i32_0 = arith.constant 0 : i32
    %2 = arith.cmpi ne, %1, %c0_i32_0 : i32
    scf.if %2 {
      %cst_37 = arith.constant 0.000000e+00 : f32
      %45 = vector.broadcast %cst_37 : f32 to vector<1x128xf32>
      %c0_38 = arith.constant 0 : index
      %c0_39 = arith.constant 0 : index
      %46 = vector.load %arg4[%c0_38, %c0_39] : memref<1x128xf32, #tpu.memory_space<vmem>>, vector<1x128xf32>
      tpu.vector_store %arg4[%c0_38, %c0_39], %45 {strides = array<i32>} : memref<1x128xf32, #tpu.memory_space<vmem>>, vector<1x128xf32>,
      %cst_40 = arith.constant 0.000000e+00 : f32
      %47 = vector.broadcast %cst_40 : f32 to vector<1x128xf32>
      %c0_41 = arith.constant 0 : index
      %c0_42 = arith.constant 0 : index
      %48 = vector.load %arg5[%c0_41, %c0_42] : memref<1x128xf32, #tpu.memory_space<vmem>>, vector<1x128xf32>
      tpu.vector_store %arg5[%c0_41, %c0_42], %47 {strides = array<i32>} : memref<1x128xf32, #tpu.memory_space<vmem>>, vector<1x128xf32>,
    } else {
    }
    %c0 = arith.constant 0 : index
    %c0_1 = arith.constant 0 : index
    %3 = vector.load %arg2[%c0, %c0_1] : memref<128x128xbf16, #tpu.memory_space<vmem>>, vector<128x128xbf16>
    %cst = arith.constant 0.000000e+00 : f32
    %4 = vector.broadcast %cst : f32 to vector<1x128xf32>
    %cst_2 = arith.constant 0.000000e+00 : f32
    %5 = vector.broadcast %cst_2 : f32 to vector<1x128xf32>
    %cst_3 = arith.constant 1.000000e+00 : f32
    %6 = vector.broadcast %cst_3 : f32 to vector<1x128xf32>
    %c0_4 = arith.constant 0 : index
    %c0_5 = arith.constant 0 : index
    %7 = vector.load %arg1[%c0_4, %c0_5] : memref<512x128xbf16, #tpu.memory_space<vmem>>, vector<128x128xbf16>
    %cst_6 = arith.constant dense<0.000000e+00> : vector<128x128xf32>
    %8 = tpu.matmul %7, %3, %cst_6 {dimension_numbers = #tpu.dot_dimension_numbers<[1], [0], [0], [1], [0, 0, 1, 1], [], []>} : vector<128x128xbf16>, vector<128x128xbf16>, vector<128x128xf32> -> vector<128x128xf32>
    %c0_7 = arith.constant 0 : index
    %c0_8 = arith.constant 0 : index
    %9 = vector.load %arg3[%c0_7, %c0_8] : memref<512x128xf32, #tpu.memory_space<vmem>>, vector<128x128xf32>
    tpu.vector_store %arg3[%c0_7, %c0_8], %8 {strides = array<i32>} : memref<512x128xf32, #tpu.memory_space<vmem>>, vector<128x128xf32>,
    %cst_9 = arith.constant dense<0.000000e+00> : vector<1x128xf32>
    %10 = tpu.matmul %6, %8, %cst_9 {dimension_numbers = #tpu.dot_dimension_numbers<[1], [0], [0], [1], [0, 0, 1, 1], [], []>} : vector<1x128xf32>, vector<128x128xf32>, vector<1x128xf32> -> vector<1x128xf32>
    %11 = arith.addf %4, %10 : vector<1x128xf32>
    %12 = arith.mulf %8, %8 : vector<128x128xf32>
    %cst_10 = arith.constant dense<0.000000e+00> : vector<1x128xf32>
    %13 = tpu.matmul %6, %12, %cst_10 {dimension_numbers = #tpu.dot_dimension_numbers<[1], [0], [0], [1], [0, 0, 1, 1], [], []>} : vector<1x128xf32>, vector<128x128xf32>, vector<1x128xf32> -> vector<1x128xf32>
    %14 = arith.addf %5, %13 : vector<1x128xf32>
    %c128 = arith.constant 128 : index
    %c0_11 = arith.constant 0 : index
    %15 = vector.load %arg1[%c128, %c0_11] : memref<512x128xbf16, #tpu.memory_space<vmem>>, vector<128x128xbf16>
    %cst_12 = arith.constant dense<0.000000e+00> : vector<128x128xf32>
    %16 = tpu.matmul %15, %3, %cst_12 {dimension_numbers = #tpu.dot_dimension_numbers<[1], [0], [0], [1], [0, 0, 1, 1], [], []>} : vector<128x128xbf16>, vector<128x128xbf16>, vector<128x128xf32> -> vector<128x128xf32>
    %c128_13 = arith.constant 128 : index
    %c0_14 = arith.constant 0 : index
    %17 = vector.load %arg3[%c128_13, %c0_14] : memref<512x128xf32, #tpu.memory_space<vmem>>, vector<128x128xf32>
    tpu.vector_store %arg3[%c128_13, %c0_14], %16 {strides = array<i32>} : memref<512x128xf32, #tpu.memory_space<vmem>>, vector<128x128xf32>,
    %cst_15 = arith.constant dense<0.000000e+00> : vector<1x128xf32>
    %18 = tpu.matmul %6, %16, %cst_15 {dimension_numbers = #tpu.dot_dimension_numbers<[1], [0], [0], [1], [0, 0, 1, 1], [], []>} : vector<1x128xf32>, vector<128x128xf32>, vector<1x128xf32> -> vector<1x128xf32>
    %19 = arith.addf %11, %18 : vector<1x128xf32>
    %20 = arith.mulf %16, %16 : vector<128x128xf32>
    %cst_16 = arith.constant dense<0.000000e+00> : vector<1x128xf32>
    %21 = tpu.matmul %6, %20, %cst_16 {dimension_numbers = #tpu.dot_dimension_numbers<[1], [0], [0], [1], [0, 0, 1, 1], [], []>} : vector<1x128xf32>, vector<128x128xf32>, vector<1x128xf32> -> vector<1x128xf32>
    %22 = arith.addf %14, %21 : vector<1x128xf32>
    %c256 = arith.constant 256 : index
    %c0_17 = arith.constant 0 : index
    %23 = vector.load %arg1[%c256, %c0_17] : memref<512x128xbf16, #tpu.memory_space<vmem>>, vector<128x128xbf16>
    %cst_18 = arith.constant dense<0.000000e+00> : vector<128x128xf32>
    %24 = tpu.matmul %23, %3, %cst_18 {dimension_numbers = #tpu.dot_dimension_numbers<[1], [0], [0], [1], [0, 0, 1, 1], [], []>} : vector<128x128xbf16>, vector<128x128xbf16>, vector<128x128xf32> -> vector<128x128xf32>
    %c256_19 = arith.constant 256 : index
    %c0_20 = arith.constant 0 : index
    %25 = vector.load %arg3[%c256_19, %c0_20] : memref<512x128xf32, #tpu.memory_space<vmem>>, vector<128x128xf32>
    tpu.vector_store %arg3[%c256_19, %c0_20], %24 {strides = array<i32>} : memref<512x128xf32, #tpu.memory_space<vmem>>, vector<128x128xf32>,
    %cst_21 = arith.constant dense<0.000000e+00> : vector<1x128xf32>
    %26 = tpu.matmul %6, %24, %cst_21 {dimension_numbers = #tpu.dot_dimension_numbers<[1], [0], [0], [1], [0, 0, 1, 1], [], []>} : vector<1x128xf32>, vector<128x128xf32>, vector<1x128xf32> -> vector<1x128xf32>
    %27 = arith.addf %19, %26 : vector<1x128xf32>
    %28 = arith.mulf %24, %24 : vector<128x128xf32>
    %cst_22 = arith.constant dense<0.000000e+00> : vector<1x128xf32>
    %29 = tpu.matmul %6, %28, %cst_22 {dimension_numbers = #tpu.dot_dimension_numbers<[1], [0], [0], [1], [0, 0, 1, 1], [], []>} : vector<1x128xf32>, vector<128x128xf32>, vector<1x128xf32> -> vector<1x128xf32>
    %30 = arith.addf %22, %29 : vector<1x128xf32>
    %c384 = arith.constant 384 : index
    %c0_23 = arith.constant 0 : index
    %31 = vector.load %arg1[%c384, %c0_23] : memref<512x128xbf16, #tpu.memory_space<vmem>>, vector<128x128xbf16>
    %cst_24 = arith.constant dense<0.000000e+00> : vector<128x128xf32>
    %32 = tpu.matmul %31, %3, %cst_24 {dimension_numbers = #tpu.dot_dimension_numbers<[1], [0], [0], [1], [0, 0, 1, 1], [], []>} : vector<128x128xbf16>, vector<128x128xbf16>, vector<128x128xf32> -> vector<128x128xf32>
    %c384_25 = arith.constant 384 : index
    %c0_26 = arith.constant 0 : index
    %33 = vector.load %arg3[%c384_25, %c0_26] : memref<512x128xf32, #tpu.memory_space<vmem>>, vector<128x128xf32>
    tpu.vector_store %arg3[%c384_25, %c0_26], %32 {strides = array<i32>} : memref<512x128xf32, #tpu.memory_space<vmem>>, vector<128x128xf32>,
    %cst_27 = arith.constant dense<0.000000e+00> : vector<1x128xf32>
    %34 = tpu.matmul %6, %32, %cst_27 {dimension_numbers = #tpu.dot_dimension_numbers<[1], [0], [0], [1], [0, 0, 1, 1], [], []>} : vector<1x128xf32>, vector<128x128xf32>, vector<1x128xf32> -> vector<1x128xf32>
    %35 = arith.addf %27, %34 : vector<1x128xf32>
    %36 = arith.mulf %32, %32 : vector<128x128xf32>
    %cst_28 = arith.constant dense<0.000000e+00> : vector<1x128xf32>
    %37 = tpu.matmul %6, %36, %cst_28 {dimension_numbers = #tpu.dot_dimension_numbers<[1], [0], [0], [1], [0, 0, 1, 1], [], []>} : vector<1x128xf32>, vector<128x128xf32>, vector<1x128xf32> -> vector<1x128xf32>
    %38 = arith.addf %30, %37 : vector<1x128xf32>
    %c0_29 = arith.constant 0 : index
    %c0_30 = arith.constant 0 : index
    %39 = vector.load %arg4[%c0_29, %c0_30] : memref<1x128xf32, #tpu.memory_space<vmem>>, vector<1x128xf32>
    %40 = arith.addf %39, %35 : vector<1x128xf32>
    %c0_31 = arith.constant 0 : index
    %c0_32 = arith.constant 0 : index
    %41 = vector.load %arg4[%c0_31, %c0_32] : memref<1x128xf32, #tpu.memory_space<vmem>>, vector<1x128xf32>
    tpu.vector_store %arg4[%c0_31, %c0_32], %40 {strides = array<i32>} : memref<1x128xf32, #tpu.memory_space<vmem>>, vector<1x128xf32>,
    %c0_33 = arith.constant 0 : index
    %c0_34 = arith.constant 0 : index
    %42 = vector.load %arg5[%c0_33, %c0_34] : memref<1x128xf32, #tpu.memory_space<vmem>>, vector<1x128xf32>
    %43 = arith.addf %42, %38 : vector<1x128xf32>
    %c0_35 = arith.constant 0 : index
    %c0_36 = arith.constant 0 : index
    %44 = vector.load %arg5[%c0_35, %c0_36] : memref<1x128xf32, #tpu.memory_space<vmem>>, vector<1x128xf32>
    tpu.vector_store %arg5[%c0_35, %c0_36], %43 {strides = array<i32>} : memref<1x128xf32, #tpu.memory_space<vmem>>, vector<1x128xf32>,
    return
  }
  func.func @transform_0(%arg0: i32) -> (i32, i32) {
    %c0_i32 = arith.constant 0 : i32
    %c0_i32_0 = arith.constant 0 : i32
    return %arg0, %c0_i32 : i32, i32
  }
  func.func @transform_1(%arg0: i32) -> (i32, i32) {
    %c0_i32 = arith.constant 0 : i32
    %c0_i32_0 = arith.constant 0 : i32
    %c0_i32_1 = arith.constant 0 : i32
    return %c0_i32, %c0_i32_0 : i32, i32
  }
  func.func @transform_2(%arg0: i32) -> (i32, i32) {
    %c0_i32 = arith.constant 0 : i32
    %c0_i32_0 = arith.constant 0 : i32
    return %arg0, %c0_i32 : i32, i32
  }
  func.func @transform_3(%arg0: i32) -> (i32, i32) {
    %c0_i32 = arith.constant 0 : i32
    %c0_i32_0 = arith.constant 0 : i32
    %c0_i32_1 = arith.constant 0 : i32
    return %c0_i32, %c0_i32_0 : i32, i32
  }
  func.func @transform_4(%arg0: i32) -> (i32, i32) {
    %c0_i32 = arith.constant 0 : i32
    %c0_i32_0 = arith.constant 0 : i32
    %c0_i32_1 = arith.constant 0 : i32
    return %c0_i32, %c0_i32_0 : i32, i32
  }
}

module attributes {stable_mosaic.version = 11 : i64} {
  func.func @_bn_act_kernel(%arg0: i32, %arg1: memref<512x128xf32, #tpu.memory_space<vmem>>, %arg2: memref<1x128xf32, #tpu.memory_space<vmem>>, %arg3: memref<1x128xf32, #tpu.memory_space<vmem>>, %arg4: memref<512x128xbf16, #tpu.memory_space<vmem>>) attributes {dimension_semantics = [#tpu.dimension_semantics<parallel>], iteration_bounds = array<i64: 2>, scalar_prefetch = 0 : i64, scratch_operands = 0 : i64, tpu.core_type = #tpu.core_type<tc>, window_params = [{transform_indices = @transform_0, window_bounds = array<i64: 512, 128>}, {pipeline_mode = #tpu.pipeline_mode<synchronous>, transform_indices = @transform_1, window_bounds = array<i64: 1, 128>}, {pipeline_mode = #tpu.pipeline_mode<synchronous>, transform_indices = @transform_2, window_bounds = array<i64: 1, 128>}, {transform_indices = @transform_3, window_bounds = array<i64: 512, 128>}]} {
    %c0 = arith.constant 0 : index
    %c0_0 = arith.constant 0 : index
    %0 = vector.load %arg2[%c0, %c0_0] : memref<1x128xf32, #tpu.memory_space<vmem>>, vector<1x128xf32>
    %c0_1 = arith.constant 0 : index
    %c0_2 = arith.constant 0 : index
    %1 = vector.load %arg3[%c0_1, %c0_2] : memref<1x128xf32, #tpu.memory_space<vmem>>, vector<1x128xf32>
    %c0_3 = arith.constant 0 : index
    %c0_4 = arith.constant 0 : index
    %2 = vector.load %arg1[%c0_3, %c0_4] : memref<512x128xf32, #tpu.memory_space<vmem>>, vector<128x128xf32>
    %3 = vector.broadcast %0 : vector<1x128xf32> to vector<128x128xf32>
    %4 = arith.mulf %2, %3 : vector<128x128xf32>
    %5 = vector.broadcast %1 : vector<1x128xf32> to vector<128x128xf32>
    %6 = arith.addf %4, %5 : vector<128x128xf32>
    %cst = arith.constant 0.000000e+00 : f32
    %7 = vector.broadcast %cst : f32 to vector<128x128xf32>
    %8 = arith.maximumf %6, %7 : vector<128x128xf32>
    %9 = arith.truncf %8 : vector<128x128xf32> to vector<128x128xbf16>
    %c0_5 = arith.constant 0 : index
    %c0_6 = arith.constant 0 : index
    %10 = vector.load %arg4[%c0_5, %c0_6] : memref<512x128xbf16, #tpu.memory_space<vmem>>, vector<128x128xbf16>
    tpu.vector_store %arg4[%c0_5, %c0_6], %9 {strides = array<i32>} : memref<512x128xbf16, #tpu.memory_space<vmem>>, vector<128x128xbf16>,
    %c128 = arith.constant 128 : index
    %c0_7 = arith.constant 0 : index
    %11 = vector.load %arg1[%c128, %c0_7] : memref<512x128xf32, #tpu.memory_space<vmem>>, vector<128x128xf32>
    %12 = vector.broadcast %0 : vector<1x128xf32> to vector<128x128xf32>
    %13 = arith.mulf %11, %12 : vector<128x128xf32>
    %14 = vector.broadcast %1 : vector<1x128xf32> to vector<128x128xf32>
    %15 = arith.addf %13, %14 : vector<128x128xf32>
    %cst_8 = arith.constant 0.000000e+00 : f32
    %16 = vector.broadcast %cst_8 : f32 to vector<128x128xf32>
    %17 = arith.maximumf %15, %16 : vector<128x128xf32>
    %18 = arith.truncf %17 : vector<128x128xf32> to vector<128x128xbf16>
    %c128_9 = arith.constant 128 : index
    %c0_10 = arith.constant 0 : index
    %19 = vector.load %arg4[%c128_9, %c0_10] : memref<512x128xbf16, #tpu.memory_space<vmem>>, vector<128x128xbf16>
    tpu.vector_store %arg4[%c128_9, %c0_10], %18 {strides = array<i32>} : memref<512x128xbf16, #tpu.memory_space<vmem>>, vector<128x128xbf16>,
    %c256 = arith.constant 256 : index
    %c0_11 = arith.constant 0 : index
    %20 = vector.load %arg1[%c256, %c0_11] : memref<512x128xf32, #tpu.memory_space<vmem>>, vector<128x128xf32>
    %21 = vector.broadcast %0 : vector<1x128xf32> to vector<128x128xf32>
    %22 = arith.mulf %20, %21 : vector<128x128xf32>
    %23 = vector.broadcast %1 : vector<1x128xf32> to vector<128x128xf32>
    %24 = arith.addf %22, %23 : vector<128x128xf32>
    %cst_12 = arith.constant 0.000000e+00 : f32
    %25 = vector.broadcast %cst_12 : f32 to vector<128x128xf32>
    %26 = arith.maximumf %24, %25 : vector<128x128xf32>
    %27 = arith.truncf %26 : vector<128x128xf32> to vector<128x128xbf16>
    %c256_13 = arith.constant 256 : index
    %c0_14 = arith.constant 0 : index
    %28 = vector.load %arg4[%c256_13, %c0_14] : memref<512x128xbf16, #tpu.memory_space<vmem>>, vector<128x128xbf16>
    tpu.vector_store %arg4[%c256_13, %c0_14], %27 {strides = array<i32>} : memref<512x128xbf16, #tpu.memory_space<vmem>>, vector<128x128xbf16>,
    %c384 = arith.constant 384 : index
    %c0_15 = arith.constant 0 : index
    %29 = vector.load %arg1[%c384, %c0_15] : memref<512x128xf32, #tpu.memory_space<vmem>>, vector<128x128xf32>
    %30 = vector.broadcast %0 : vector<1x128xf32> to vector<128x128xf32>
    %31 = arith.mulf %29, %30 : vector<128x128xf32>
    %32 = vector.broadcast %1 : vector<1x128xf32> to vector<128x128xf32>
    %33 = arith.addf %31, %32 : vector<128x128xf32>
    %cst_16 = arith.constant 0.000000e+00 : f32
    %34 = vector.broadcast %cst_16 : f32 to vector<128x128xf32>
    %35 = arith.maximumf %33, %34 : vector<128x128xf32>
    %36 = arith.truncf %35 : vector<128x128xf32> to vector<128x128xbf16>
    %c384_17 = arith.constant 384 : index
    %c0_18 = arith.constant 0 : index
    %37 = vector.load %arg4[%c384_17, %c0_18] : memref<512x128xbf16, #tpu.memory_space<vmem>>, vector<128x128xbf16>
    tpu.vector_store %arg4[%c384_17, %c0_18], %36 {strides = array<i32>} : memref<512x128xbf16, #tpu.memory_space<vmem>>, vector<128x128xbf16>,
    return
  }
  func.func @transform_0(%arg0: i32) -> (i32, i32) {
    %c0_i32 = arith.constant 0 : i32
    %c0_i32_0 = arith.constant 0 : i32
    return %arg0, %c0_i32 : i32, i32
  }
  func.func @transform_1(%arg0: i32) -> (i32, i32) {
    %c0_i32 = arith.constant 0 : i32
    %c0_i32_0 = arith.constant 0 : i32
    %c0_i32_1 = arith.constant 0 : i32
    return %c0_i32, %c0_i32_0 : i32, i32
  }
  func.func @transform_2(%arg0: i32) -> (i32, i32) {
    %c0_i32 = arith.constant 0 : i32
    %c0_i32_0 = arith.constant 0 : i32
    %c0_i32_1 = arith.constant 0 : i32
    return %c0_i32, %c0_i32_0 : i32, i32
  }
  func.func @transform_3(%arg0: i32) -> (i32, i32) {
    %c0_i32 = arith.constant 0 : i32
    %c0_i32_0 = arith.constant 0 : i32
    return %arg0, %c0_i32 : i32, i32
  }
}

module attributes {stable_mosaic.version = 11 : i64} {
  func.func @_conv3x3x3_stats_kernel(%arg0: i32, %arg1: i32, %arg2: i32, %arg3: memref<1x1x10x10x128xbf16, #tpu.memory_space<vmem>>, %arg4: memref<3x9x128x128xbf16, #tpu.memory_space<vmem>>, %arg5: memref<1x1x64x128xf32, #tpu.memory_space<vmem>>, %arg6: memref<1x128xf32, #tpu.memory_space<vmem>>, %arg7: memref<1x128xf32, #tpu.memory_space<vmem>>, %arg8: memref<64x128xf32, #tpu.memory_space<vmem>>) attributes {dimension_semantics = [#tpu.dimension_semantics<arbitrary>, #tpu.dimension_semantics<arbitrary>, #tpu.dimension_semantics<arbitrary>], iteration_bounds = array<i64: 2, 8, 3>, scalar_prefetch = 0 : i64, scratch_operands = 1 : i64, tpu.core_type = #tpu.core_type<tc>, window_params = [{transform_indices = @transform_0, window_bounds = array<i64: 1, 1, 10, 10, 128>}, {pipeline_mode = #tpu.pipeline_mode<synchronous>, transform_indices = @transform_1, window_bounds = array<i64: 3, 9, 128, 128>}, {transform_indices = @transform_2, window_bounds = array<i64: 1, 1, 64, 128>}, {pipeline_mode = #tpu.pipeline_mode<synchronous>, transform_indices = @transform_3, window_bounds = array<i64: 1, 128>}, {pipeline_mode = #tpu.pipeline_mode<synchronous>, transform_indices = @transform_4, window_bounds = array<i64: 1, 128>}]} {
    %c0_i32 = arith.constant 0 : i32
    %0 = arith.cmpi eq, %arg0, %c0_i32 : i32
    %c0_i32_0 = arith.constant 0 : i32
    %1 = arith.cmpi eq, %arg1, %c0_i32_0 : i32
    %2 = arith.andi %0, %1 : i1
    %c0_i32_1 = arith.constant 0 : i32
    %3 = arith.cmpi eq, %arg2, %c0_i32_1 : i32
    %4 = arith.andi %2, %3 : i1
    %5 = arith.extui %4 : i1 to i32
    %c0_i32_2 = arith.constant 0 : i32
    %6 = arith.cmpi ne, %5, %c0_i32_2 : i32
    scf.if %6 {
      %cst_73 = arith.constant 0.000000e+00 : f32
      %106 = vector.broadcast %cst_73 : f32 to vector<1x128xf32>
      %c0_74 = arith.constant 0 : index
      %c0_75 = arith.constant 0 : index
      %107 = vector.load %arg6[%c0_74, %c0_75] : memref<1x128xf32, #tpu.memory_space<vmem>>, vector<1x128xf32>
      tpu.vector_store %arg6[%c0_74, %c0_75], %106 {strides = array<i32>} : memref<1x128xf32, #tpu.memory_space<vmem>>, vector<1x128xf32>,
      %cst_76 = arith.constant 0.000000e+00 : f32
      %108 = vector.broadcast %cst_76 : f32 to vector<1x128xf32>
      %c0_77 = arith.constant 0 : index
      %c0_78 = arith.constant 0 : index
      %109 = vector.load %arg7[%c0_77, %c0_78] : memref<1x128xf32, #tpu.memory_space<vmem>>, vector<1x128xf32>
      tpu.vector_store %arg7[%c0_77, %c0_78], %108 {strides = array<i32>} : memref<1x128xf32, #tpu.memory_space<vmem>>, vector<1x128xf32>,
    } else {
    }
    %c0_i32_3 = arith.constant 0 : i32
    %7 = arith.cmpi eq, %arg2, %c0_i32_3 : i32
    %8 = arith.extui %7 : i1 to i32
    %c0_i32_4 = arith.constant 0 : i32
    %9 = arith.cmpi ne, %8, %c0_i32_4 : i32
    scf.if %9 {
      %cst_73 = arith.constant 0.000000e+00 : f32
      %106 = vector.broadcast %cst_73 : f32 to vector<64x128xf32>
      %c0_74 = arith.constant 0 : index
      %c0_75 = arith.constant 0 : index
      %107 = vector.load %arg8[%c0_74, %c0_75] : memref<64x128xf32, #tpu.memory_space<vmem>>, vector<64x128xf32>
      tpu.vector_store %arg8[%c0_74, %c0_75], %106 {strides = array<i32>} : memref<64x128xf32, #tpu.memory_space<vmem>>, vector<64x128xf32>,
    } else {
    }
    %c0 = arith.constant 0 : index
    %c0_5 = arith.constant 0 : index
    %c0_6 = arith.constant 0 : index
    %c0_7 = arith.constant 0 : index
    %c0_8 = arith.constant 0 : index
    %10 = vector.load %arg3[%c0, %c0_5, %c0_6, %c0_7, %c0_8] : memref<1x1x10x10x128xbf16, #tpu.memory_space<vmem>>, vector<1x1x10x10x128xbf16>
    %11 = vector.shape_cast %10 : vector<1x1x10x10x128xbf16> to vector<10x10x128xbf16>
    %12 = arith.extf %11 : vector<10x10x128xbf16> to vector<10x10x128xf32>
    %13 = vector.extract_strided_slice %12 {offsets = [0, 0, 0], sizes = [8, 8, 128], strides = [1, 1, 1]} : vector<10x10x128xf32> to vector<8x8x128xf32>
    %14 = vector.shape_cast %13 : vector<8x8x128xf32> to vector<64x128xf32>
    %c0_9 = arith.constant 0 : index
    %c0_10 = arith.constant 0 : index
    %15 = vector.load %arg8[%c0_9, %c0_10] : memref<64x128xf32, #tpu.memory_space<vmem>>, vector<64x128xf32>
    %16 = arith.truncf %14 : vector<64x128xf32> to vector<64x128xbf16>
    %17 = arith.index_cast %arg2 : i32 to index
    %c0_11 = arith.constant 0 : index
    %c0_12 = arith.constant 0 : index
    %c0_13 = arith.constant 0 : index
    %18 = vector.load %arg4[%17, %c0_11, %c0_12, %c0_13] : memref<3x9x128x128xbf16, #tpu.memory_space<vmem>>, vector<1x1x128x128xbf16>
    %19 = vector.shape_cast %18 : vector<1x1x128x128xbf16> to vector<128x128xbf16>
    %cst = arith.constant dense<0.000000e+00> : vector<64x128xf32>
    %20 = tpu.matmul %16, %19, %cst {dimension_numbers = #tpu.dot_dimension_numbers<[1], [0], [0], [1], [0, 0, 1, 1], [], []>} : vector<64x128xbf16>, vector<128x128xbf16>, vector<64x128xf32> -> vector<64x128xf32>
    %21 = arith.addf %15, %20 : vector<64x128xf32>
    %c0_14 = arith.constant 0 : index
    %c0_15 = arith.constant 0 : index
    %22 = vector.load %arg8[%c0_14, %c0_15] : memref<64x128xf32, #tpu.memory_space<vmem>>, vector<64x128xf32>
    tpu.vector_store %arg8[%c0_14, %c0_15], %21 {strides = array<i32>} : memref<64x128xf32, #tpu.memory_space<vmem>>, vector<64x128xf32>,
    %23 = vector.extract_strided_slice %12 {offsets = [0, 1, 0], sizes = [8, 8, 128], strides = [1, 1, 1]} : vector<10x10x128xf32> to vector<8x8x128xf32>
    %24 = vector.shape_cast %23 : vector<8x8x128xf32> to vector<64x128xf32>
    %c0_16 = arith.constant 0 : index
    %c0_17 = arith.constant 0 : index
    %25 = vector.load %arg8[%c0_16, %c0_17] : memref<64x128xf32, #tpu.memory_space<vmem>>, vector<64x128xf32>
    %26 = arith.truncf %24 : vector<64x128xf32> to vector<64x128xbf16>
    %27 = arith.index_cast %arg2 : i32 to index
    %c1 = arith.constant 1 : index
    %c0_18 = arith.constant 0 : index
    %c0_19 = arith.constant 0 : index
    %28 = vector.load %arg4[%27, %c1, %c0_18, %c0_19] : memref<3x9x128x128xbf16, #tpu.memory_space<vmem>>, vector<1x1x128x128xbf16>
    %29 = vector.shape_cast %28 : vector<1x1x128x128xbf16> to vector<128x128xbf16>
    %cst_20 = arith.constant dense<0.000000e+00> : vector<64x128xf32>
    %30 = tpu.matmul %26, %29, %cst_20 {dimension_numbers = #tpu.dot_dimension_numbers<[1], [0], [0], [1], [0, 0, 1, 1], [], []>} : vector<64x128xbf16>, vector<128x128xbf16>, vector<64x128xf32> -> vector<64x128xf32>
    %31 = arith.addf %25, %30 : vector<64x128xf32>
    %c0_21 = arith.constant 0 : index
    %c0_22 = arith.constant 0 : index
    %32 = vector.load %arg8[%c0_21, %c0_22] : memref<64x128xf32, #tpu.memory_space<vmem>>, vector<64x128xf32>
    tpu.vector_store %arg8[%c0_21, %c0_22], %31 {strides = array<i32>} : memref<64x128xf32, #tpu.memory_space<vmem>>, vector<64x128xf32>,
    %33 = vector.extract_strided_slice %12 {offsets = [0, 2, 0], sizes = [8, 8, 128], strides = [1, 1, 1]} : vector<10x10x128xf32> to vector<8x8x128xf32>
    %34 = vector.shape_cast %33 : vector<8x8x128xf32> to vector<64x128xf32>
    %c0_23 = arith.constant 0 : index
    %c0_24 = arith.constant 0 : index
    %35 = vector.load %arg8[%c0_23, %c0_24] : memref<64x128xf32, #tpu.memory_space<vmem>>, vector<64x128xf32>
    %36 = arith.truncf %34 : vector<64x128xf32> to vector<64x128xbf16>
    %37 = arith.index_cast %arg2 : i32 to index
    %c2 = arith.constant 2 : index
    %c0_25 = arith.constant 0 : index
    %c0_26 = arith.constant 0 : index
    %38 = vector.load %arg4[%37, %c2, %c0_25, %c0_26] : memref<3x9x128x128xbf16, #tpu.memory_space<vmem>>, vector<1x1x128x128xbf16>
    %39 = vector.shape_cast %38 : vector<1x1x128x128xbf16> to vector<128x128xbf16>
    %cst_27 = arith.constant dense<0.000000e+00> : vector<64x128xf32>
    %40 = tpu.matmul %36, %39, %cst_27 {dimension_numbers = #tpu.dot_dimension_numbers<[1], [0], [0], [1], [0, 0, 1, 1], [], []>} : vector<64x128xbf16>, vector<128x128xbf16>, vector<64x128xf32> -> vector<64x128xf32>
    %41 = arith.addf %35, %40 : vector<64x128xf32>
    %c0_28 = arith.constant 0 : index
    %c0_29 = arith.constant 0 : index
    %42 = vector.load %arg8[%c0_28, %c0_29] : memref<64x128xf32, #tpu.memory_space<vmem>>, vector<64x128xf32>
    tpu.vector_store %arg8[%c0_28, %c0_29], %41 {strides = array<i32>} : memref<64x128xf32, #tpu.memory_space<vmem>>, vector<64x128xf32>,
    %43 = vector.extract_strided_slice %12 {offsets = [1, 0, 0], sizes = [8, 8, 128], strides = [1, 1, 1]} : vector<10x10x128xf32> to vector<8x8x128xf32>
    %44 = vector.shape_cast %43 : vector<8x8x128xf32> to vector<64x128xf32>
    %c0_30 = arith.constant 0 : index
    %c0_31 = arith.constant 0 : index
    %45 = vector.load %arg8[%c0_30, %c0_31] : memref<64x128xf32, #tpu.memory_space<vmem>>, vector<64x128xf32>
    %46 = arith.truncf %44 : vector<64x128xf32> to vector<64x128xbf16>
    %47 = arith.index_cast %arg2 : i32 to index
    %c3 = arith.constant 3 : index
    %c0_32 = arith.constant 0 : index
    %c0_33 = arith.constant 0 : index
    %48 = vector.load %arg4[%47, %c3, %c0_32, %c0_33] : memref<3x9x128x128xbf16, #tpu.memory_space<vmem>>, vector<1x1x128x128xbf16>
    %49 = vector.shape_cast %48 : vector<1x1x128x128xbf16> to vector<128x128xbf16>
    %cst_34 = arith.constant dense<0.000000e+00> : vector<64x128xf32>
    %50 = tpu.matmul %46, %49, %cst_34 {dimension_numbers = #tpu.dot_dimension_numbers<[1], [0], [0], [1], [0, 0, 1, 1], [], []>} : vector<64x128xbf16>, vector<128x128xbf16>, vector<64x128xf32> -> vector<64x128xf32>
    %51 = arith.addf %45, %50 : vector<64x128xf32>
    %c0_35 = arith.constant 0 : index
    %c0_36 = arith.constant 0 : index
    %52 = vector.load %arg8[%c0_35, %c0_36] : memref<64x128xf32, #tpu.memory_space<vmem>>, vector<64x128xf32>
    tpu.vector_store %arg8[%c0_35, %c0_36], %51 {strides = array<i32>} : memref<64x128xf32, #tpu.memory_space<vmem>>, vector<64x128xf32>,
    %53 = vector.extract_strided_slice %12 {offsets = [1, 1, 0], sizes = [8, 8, 128], strides = [1, 1, 1]} : vector<10x10x128xf32> to vector<8x8x128xf32>
    %54 = vector.shape_cast %53 : vector<8x8x128xf32> to vector<64x128xf32>
    %c0_37 = arith.constant 0 : index
    %c0_38 = arith.constant 0 : index
    %55 = vector.load %arg8[%c0_37, %c0_38] : memref<64x128xf32, #tpu.memory_space<vmem>>, vector<64x128xf32>
    %56 = arith.truncf %54 : vector<64x128xf32> to vector<64x128xbf16>
    %57 = arith.index_cast %arg2 : i32 to index
    %c4 = arith.constant 4 : index
    %c0_39 = arith.constant 0 : index
    %c0_40 = arith.constant 0 : index
    %58 = vector.load %arg4[%57, %c4, %c0_39, %c0_40] : memref<3x9x128x128xbf16, #tpu.memory_space<vmem>>, vector<1x1x128x128xbf16>
    %59 = vector.shape_cast %58 : vector<1x1x128x128xbf16> to vector<128x128xbf16>
    %cst_41 = arith.constant dense<0.000000e+00> : vector<64x128xf32>
    %60 = tpu.matmul %56, %59, %cst_41 {dimension_numbers = #tpu.dot_dimension_numbers<[1], [0], [0], [1], [0, 0, 1, 1], [], []>} : vector<64x128xbf16>, vector<128x128xbf16>, vector<64x128xf32> -> vector<64x128xf32>
    %61 = arith.addf %55, %60 : vector<64x128xf32>
    %c0_42 = arith.constant 0 : index
    %c0_43 = arith.constant 0 : index
    %62 = vector.load %arg8[%c0_42, %c0_43] : memref<64x128xf32, #tpu.memory_space<vmem>>, vector<64x128xf32>
    tpu.vector_store %arg8[%c0_42, %c0_43], %61 {strides = array<i32>} : memref<64x128xf32, #tpu.memory_space<vmem>>, vector<64x128xf32>,
    %63 = vector.extract_strided_slice %12 {offsets = [1, 2, 0], sizes = [8, 8, 128], strides = [1, 1, 1]} : vector<10x10x128xf32> to vector<8x8x128xf32>
    %64 = vector.shape_cast %63 : vector<8x8x128xf32> to vector<64x128xf32>
    %c0_44 = arith.constant 0 : index
    %c0_45 = arith.constant 0 : index
    %65 = vector.load %arg8[%c0_44, %c0_45] : memref<64x128xf32, #tpu.memory_space<vmem>>, vector<64x128xf32>
    %66 = arith.truncf %64 : vector<64x128xf32> to vector<64x128xbf16>
    %67 = arith.index_cast %arg2 : i32 to index
    %c5 = arith.constant 5 : index
    %c0_46 = arith.constant 0 : index
    %c0_47 = arith.constant 0 : index
    %68 = vector.load %arg4[%67, %c5, %c0_46, %c0_47] : memref<3x9x128x128xbf16, #tpu.memory_space<vmem>>, vector<1x1x128x128xbf16>
    %69 = vector.shape_cast %68 : vector<1x1x128x128xbf16> to vector<128x128xbf16>
    %cst_48 = arith.constant dense<0.000000e+00> : vector<64x128xf32>
    %70 = tpu.matmul %66, %69, %cst_48 {dimension_numbers = #tpu.dot_dimension_numbers<[1], [0], [0], [1], [0, 0, 1, 1], [], []>} : vector<64x128xbf16>, vector<128x128xbf16>, vector<64x128xf32> -> vector<64x128xf32>
    %71 = arith.addf %65, %70 : vector<64x128xf32>
    %c0_49 = arith.constant 0 : index
    %c0_50 = arith.constant 0 : index
    %72 = vector.load %arg8[%c0_49, %c0_50] : memref<64x128xf32, #tpu.memory_space<vmem>>, vector<64x128xf32>
    tpu.vector_store %arg8[%c0_49, %c0_50], %71 {strides = array<i32>} : memref<64x128xf32, #tpu.memory_space<vmem>>, vector<64x128xf32>,
    %73 = vector.extract_strided_slice %12 {offsets = [2, 0, 0], sizes = [8, 8, 128], strides = [1, 1, 1]} : vector<10x10x128xf32> to vector<8x8x128xf32>
    %74 = vector.shape_cast %73 : vector<8x8x128xf32> to vector<64x128xf32>
    %c0_51 = arith.constant 0 : index
    %c0_52 = arith.constant 0 : index
    %75 = vector.load %arg8[%c0_51, %c0_52] : memref<64x128xf32, #tpu.memory_space<vmem>>, vector<64x128xf32>
    %76 = arith.truncf %74 : vector<64x128xf32> to vector<64x128xbf16>
    %77 = arith.index_cast %arg2 : i32 to index
    %c6 = arith.constant 6 : index
    %c0_53 = arith.constant 0 : index
    %c0_54 = arith.constant 0 : index
    %78 = vector.load %arg4[%77, %c6, %c0_53, %c0_54] : memref<3x9x128x128xbf16, #tpu.memory_space<vmem>>, vector<1x1x128x128xbf16>
    %79 = vector.shape_cast %78 : vector<1x1x128x128xbf16> to vector<128x128xbf16>
    %cst_55 = arith.constant dense<0.000000e+00> : vector<64x128xf32>
    %80 = tpu.matmul %76, %79, %cst_55 {dimension_numbers = #tpu.dot_dimension_numbers<[1], [0], [0], [1], [0, 0, 1, 1], [], []>} : vector<64x128xbf16>, vector<128x128xbf16>, vector<64x128xf32> -> vector<64x128xf32>
    %81 = arith.addf %75, %80 : vector<64x128xf32>
    %c0_56 = arith.constant 0 : index
    %c0_57 = arith.constant 0 : index
    %82 = vector.load %arg8[%c0_56, %c0_57] : memref<64x128xf32, #tpu.memory_space<vmem>>, vector<64x128xf32>
    tpu.vector_store %arg8[%c0_56, %c0_57], %81 {strides = array<i32>} : memref<64x128xf32, #tpu.memory_space<vmem>>, vector<64x128xf32>,
    %83 = vector.extract_strided_slice %12 {offsets = [2, 1, 0], sizes = [8, 8, 128], strides = [1, 1, 1]} : vector<10x10x128xf32> to vector<8x8x128xf32>
    %84 = vector.shape_cast %83 : vector<8x8x128xf32> to vector<64x128xf32>
    %c0_58 = arith.constant 0 : index
    %c0_59 = arith.constant 0 : index
    %85 = vector.load %arg8[%c0_58, %c0_59] : memref<64x128xf32, #tpu.memory_space<vmem>>, vector<64x128xf32>
    %86 = arith.truncf %84 : vector<64x128xf32> to vector<64x128xbf16>
    %87 = arith.index_cast %arg2 : i32 to index
    %c7 = arith.constant 7 : index
    %c0_60 = arith.constant 0 : index
    %c0_61 = arith.constant 0 : index
    %88 = vector.load %arg4[%87, %c7, %c0_60, %c0_61] : memref<3x9x128x128xbf16, #tpu.memory_space<vmem>>, vector<1x1x128x128xbf16>
    %89 = vector.shape_cast %88 : vector<1x1x128x128xbf16> to vector<128x128xbf16>
    %cst_62 = arith.constant dense<0.000000e+00> : vector<64x128xf32>
    %90 = tpu.matmul %86, %89, %cst_62 {dimension_numbers = #tpu.dot_dimension_numbers<[1], [0], [0], [1], [0, 0, 1, 1], [], []>} : vector<64x128xbf16>, vector<128x128xbf16>, vector<64x128xf32> -> vector<64x128xf32>
    %91 = arith.addf %85, %90 : vector<64x128xf32>
    %c0_63 = arith.constant 0 : index
    %c0_64 = arith.constant 0 : index
    %92 = vector.load %arg8[%c0_63, %c0_64] : memref<64x128xf32, #tpu.memory_space<vmem>>, vector<64x128xf32>
    tpu.vector_store %arg8[%c0_63, %c0_64], %91 {strides = array<i32>} : memref<64x128xf32, #tpu.memory_space<vmem>>, vector<64x128xf32>,
    %93 = vector.extract_strided_slice %12 {offsets = [2, 2, 0], sizes = [8, 8, 128], strides = [1, 1, 1]} : vector<10x10x128xf32> to vector<8x8x128xf32>
    %94 = vector.shape_cast %93 : vector<8x8x128xf32> to vector<64x128xf32>
    %c0_65 = arith.constant 0 : index
    %c0_66 = arith.constant 0 : index
    %95 = vector.load %arg8[%c0_65, %c0_66] : memref<64x128xf32, #tpu.memory_space<vmem>>, vector<64x128xf32>
    %96 = arith.truncf %94 : vector<64x128xf32> to vector<64x128xbf16>
    %97 = arith.index_cast %arg2 : i32 to index
    %c8 = arith.constant 8 : index
    %c0_67 = arith.constant 0 : index
    %c0_68 = arith.constant 0 : index
    %98 = vector.load %arg4[%97, %c8, %c0_67, %c0_68] : memref<3x9x128x128xbf16, #tpu.memory_space<vmem>>, vector<1x1x128x128xbf16>
    %99 = vector.shape_cast %98 : vector<1x1x128x128xbf16> to vector<128x128xbf16>
    %cst_69 = arith.constant dense<0.000000e+00> : vector<64x128xf32>
    %100 = tpu.matmul %96, %99, %cst_69 {dimension_numbers = #tpu.dot_dimension_numbers<[1], [0], [0], [1], [0, 0, 1, 1], [], []>} : vector<64x128xbf16>, vector<128x128xbf16>, vector<64x128xf32> -> vector<64x128xf32>
    %101 = arith.addf %95, %100 : vector<64x128xf32>
    %c0_70 = arith.constant 0 : index
    %c0_71 = arith.constant 0 : index
    %102 = vector.load %arg8[%c0_70, %c0_71] : memref<64x128xf32, #tpu.memory_space<vmem>>, vector<64x128xf32>
    tpu.vector_store %arg8[%c0_70, %c0_71], %101 {strides = array<i32>} : memref<64x128xf32, #tpu.memory_space<vmem>>, vector<64x128xf32>,
    %c2_i32 = arith.constant 2 : i32
    %103 = arith.cmpi eq, %arg2, %c2_i32 : i32
    %104 = arith.extui %103 : i1 to i32
    %c0_i32_72 = arith.constant 0 : i32
    %105 = arith.cmpi ne, %104, %c0_i32_72 : i32
    scf.if %105 {
      %c0_73 = arith.constant 0 : index
      %c0_74 = arith.constant 0 : index
      %106 = vector.load %arg8[%c0_73, %c0_74] : memref<64x128xf32, #tpu.memory_space<vmem>>, vector<64x128xf32>
      %c0_75 = arith.constant 0 : index
      %c0_76 = arith.constant 0 : index
      %c0_77 = arith.constant 0 : index
      %c0_78 = arith.constant 0 : index
      %107 = vector.load %arg5[%c0_75, %c0_76, %c0_77, %c0_78] : memref<1x1x64x128xf32, #tpu.memory_space<vmem>>, vector<1x1x64x128xf32>
      %108 = vector.shape_cast %107 : vector<1x1x64x128xf32> to vector<64x128xf32>
      %109 = vector.shape_cast %106 : vector<64x128xf32> to vector<1x1x64x128xf32>
      tpu.vector_store %arg5[%c0_75, %c0_76, %c0_77, %c0_78], %109 {strides = array<i32>} : memref<1x1x64x128xf32, #tpu.memory_space<vmem>>, vector<1x1x64x128xf32>,
      %cst_79 = arith.constant 1.000000e+00 : f32
      %110 = vector.broadcast %cst_79 : f32 to vector<1x64xf32>
      %c0_80 = arith.constant 0 : index
      %c0_81 = arith.constant 0 : index
      %111 = vector.load %arg6[%c0_80, %c0_81] : memref<1x128xf32, #tpu.memory_space<vmem>>, vector<1x128xf32>
      %cst_82 = arith.constant dense<0.000000e+00> : vector<1x128xf32>
      %112 = tpu.matmul %110, %106, %cst_82 {dimension_numbers = #tpu.dot_dimension_numbers<[1], [0], [0], [1], [0, 0, 1, 1], [], []>} : vector<1x64xf32>, vector<64x128xf32>, vector<1x128xf32> -> vector<1x128xf32>
      %113 = arith.addf %111, %112 : vector<1x128xf32>
      %c0_83 = arith.constant 0 : index
      %c0_84 = arith.constant 0 : index
      %114 = vector.load %arg6[%c0_83, %c0_84] : memref<1x128xf32, #tpu.memory_space<vmem>>, vector<1x128xf32>
      tpu.vector_store %arg6[%c0_83, %c0_84], %113 {strides = array<i32>} : memref<1x128xf32, #tpu.memory_space<vmem>>, vector<1x128xf32>,
      %c0_85 = arith.constant 0 : index
      %c0_86 = arith.constant 0 : index
      %115 = vector.load %arg7[%c0_85, %c0_86] : memref<1x128xf32, #tpu.memory_space<vmem>>, vector<1x128xf32>
      %116 = arith.mulf %106, %106 : vector<64x128xf32>
      %cst_87 = arith.constant dense<0.000000e+00> : vector<1x128xf32>
      %117 = tpu.matmul %110, %116, %cst_87 {dimension_numbers = #tpu.dot_dimension_numbers<[1], [0], [0], [1], [0, 0, 1, 1], [], []>} : vector<1x64xf32>, vector<64x128xf32>, vector<1x128xf32> -> vector<1x128xf32>
      %118 = arith.addf %115, %117 : vector<1x128xf32>
      %c0_88 = arith.constant 0 : index
      %c0_89 = arith.constant 0 : index
      %119 = vector.load %arg7[%c0_88, %c0_89] : memref<1x128xf32, #tpu.memory_space<vmem>>, vector<1x128xf32>
      tpu.vector_store %arg7[%c0_88, %c0_89], %118 {strides = array<i32>} : memref<1x128xf32, #tpu.memory_space<vmem>>, vector<1x128xf32>,
    } else {
    }
    return
  }
  func.func @transform_0(%arg0: i32, %arg1: i32, %arg2: i32) -> (i32, i32, i32, i32, i32) {
    %0 = arith.addi %arg1, %arg2 : i32
    %c0_i32 = arith.constant 0 : i32
    %c0_i32_0 = arith.constant 0 : i32
    %c0_i32_1 = arith.constant 0 : i32
    %c0_i32_2 = arith.constant 0 : i32
    return %arg0, %0, %c0_i32, %c0_i32_0, %c0_i32_1 : i32, i32, i32, i32, i32
  }
  func.func @transform_1(%arg0: i32, %arg1: i32, %arg2: i32) -> (i32, i32, i32, i32) {
    %c0_i32 = arith.constant 0 : i32
    %c0_i32_0 = arith.constant 0 : i32
    %c0_i32_1 = arith.constant 0 : i32
    %c0_i32_2 = arith.constant 0 : i32
    %c0_i32_3 = arith.constant 0 : i32
    return %c0_i32, %c0_i32_0, %c0_i32_1, %c0_i32_2 : i32, i32, i32, i32
  }
  func.func @transform_2(%arg0: i32, %arg1: i32, %arg2: i32) -> (i32, i32, i32, i32) {
    %c0_i32 = arith.constant 0 : i32
    %c0_i32_0 = arith.constant 0 : i32
    %c0_i32_1 = arith.constant 0 : i32
    return %arg0, %arg1, %c0_i32, %c0_i32_0 : i32, i32, i32, i32
  }
  func.func @transform_3(%arg0: i32, %arg1: i32, %arg2: i32) -> (i32, i32) {
    %c0_i32 = arith.constant 0 : i32
    %c0_i32_0 = arith.constant 0 : i32
    %c0_i32_1 = arith.constant 0 : i32
    return %c0_i32, %c0_i32_0 : i32, i32
  }
  func.func @transform_4(%arg0: i32, %arg1: i32, %arg2: i32) -> (i32, i32) {
    %c0_i32 = arith.constant 0 : i32
    %c0_i32_0 = arith.constant 0 : i32
    %c0_i32_1 = arith.constant 0 : i32
    return %c0_i32, %c0_i32_0 : i32, i32
  }
}

module attributes {stable_mosaic.version = 11 : i64} {
  func.func @_bn_add_act_kernel(%arg0: i32, %arg1: memref<512x128xf32, #tpu.memory_space<vmem>>, %arg2: memref<1x128xf32, #tpu.memory_space<vmem>>, %arg3: memref<1x128xf32, #tpu.memory_space<vmem>>, %arg4: memref<512x128xf32, #tpu.memory_space<vmem>>, %arg5: memref<512x128xf32, #tpu.memory_space<vmem>>) attributes {dimension_semantics = [#tpu.dimension_semantics<parallel>], iteration_bounds = array<i64: 2>, scalar_prefetch = 0 : i64, scratch_operands = 0 : i64, tpu.core_type = #tpu.core_type<tc>, window_params = [{transform_indices = @transform_0, window_bounds = array<i64: 512, 128>}, {pipeline_mode = #tpu.pipeline_mode<synchronous>, transform_indices = @transform_1, window_bounds = array<i64: 1, 128>}, {pipeline_mode = #tpu.pipeline_mode<synchronous>, transform_indices = @transform_2, window_bounds = array<i64: 1, 128>}, {transform_indices = @transform_3, window_bounds = array<i64: 512, 128>}, {transform_indices = @transform_4, window_bounds = array<i64: 512, 128>}]} {
    %c0 = arith.constant 0 : index
    %c0_0 = arith.constant 0 : index
    %0 = vector.load %arg2[%c0, %c0_0] : memref<1x128xf32, #tpu.memory_space<vmem>>, vector<1x128xf32>
    %c0_1 = arith.constant 0 : index
    %c0_2 = arith.constant 0 : index
    %1 = vector.load %arg3[%c0_1, %c0_2] : memref<1x128xf32, #tpu.memory_space<vmem>>, vector<1x128xf32>
    %c0_3 = arith.constant 0 : index
    %c0_4 = arith.constant 0 : index
    %2 = vector.load %arg1[%c0_3, %c0_4] : memref<512x128xf32, #tpu.memory_space<vmem>>, vector<128x128xf32>
    %3 = vector.broadcast %0 : vector<1x128xf32> to vector<128x128xf32>
    %4 = arith.mulf %2, %3 : vector<128x128xf32>
    %5 = vector.broadcast %1 : vector<1x128xf32> to vector<128x128xf32>
    %6 = arith.addf %4, %5 : vector<128x128xf32>
    %c0_5 = arith.constant 0 : index
    %c0_6 = arith.constant 0 : index
    %7 = vector.load %arg4[%c0_5, %c0_6] : memref<512x128xf32, #tpu.memory_space<vmem>>, vector<128x128xf32>
    %8 = arith.addf %6, %7 : vector<128x128xf32>
    %cst = arith.constant 0.000000e+00 : f32
    %9 = vector.broadcast %cst : f32 to vector<128x128xf32>
    %10 = arith.maximumf %8, %9 : vector<128x128xf32>
    %c0_7 = arith.constant 0 : index
    %c0_8 = arith.constant 0 : index
    %11 = vector.load %arg5[%c0_7, %c0_8] : memref<512x128xf32, #tpu.memory_space<vmem>>, vector<128x128xf32>
    tpu.vector_store %arg5[%c0_7, %c0_8], %10 {strides = array<i32>} : memref<512x128xf32, #tpu.memory_space<vmem>>, vector<128x128xf32>,
    %c128 = arith.constant 128 : index
    %c0_9 = arith.constant 0 : index
    %12 = vector.load %arg1[%c128, %c0_9] : memref<512x128xf32, #tpu.memory_space<vmem>>, vector<128x128xf32>
    %13 = vector.broadcast %0 : vector<1x128xf32> to vector<128x128xf32>
    %14 = arith.mulf %12, %13 : vector<128x128xf32>
    %15 = vector.broadcast %1 : vector<1x128xf32> to vector<128x128xf32>
    %16 = arith.addf %14, %15 : vector<128x128xf32>
    %c128_10 = arith.constant 128 : index
    %c0_11 = arith.constant 0 : index
    %17 = vector.load %arg4[%c128_10, %c0_11] : memref<512x128xf32, #tpu.memory_space<vmem>>, vector<128x128xf32>
    %18 = arith.addf %16, %17 : vector<128x128xf32>
    %cst_12 = arith.constant 0.000000e+00 : f32
    %19 = vector.broadcast %cst_12 : f32 to vector<128x128xf32>
    %20 = arith.maximumf %18, %19 : vector<128x128xf32>
    %c128_13 = arith.constant 128 : index
    %c0_14 = arith.constant 0 : index
    %21 = vector.load %arg5[%c128_13, %c0_14] : memref<512x128xf32, #tpu.memory_space<vmem>>, vector<128x128xf32>
    tpu.vector_store %arg5[%c128_13, %c0_14], %20 {strides = array<i32>} : memref<512x128xf32, #tpu.memory_space<vmem>>, vector<128x128xf32>,
    %c256 = arith.constant 256 : index
    %c0_15 = arith.constant 0 : index
    %22 = vector.load %arg1[%c256, %c0_15] : memref<512x128xf32, #tpu.memory_space<vmem>>, vector<128x128xf32>
    %23 = vector.broadcast %0 : vector<1x128xf32> to vector<128x128xf32>
    %24 = arith.mulf %22, %23 : vector<128x128xf32>
    %25 = vector.broadcast %1 : vector<1x128xf32> to vector<128x128xf32>
    %26 = arith.addf %24, %25 : vector<128x128xf32>
    %c256_16 = arith.constant 256 : index
    %c0_17 = arith.constant 0 : index
    %27 = vector.load %arg4[%c256_16, %c0_17] : memref<512x128xf32, #tpu.memory_space<vmem>>, vector<128x128xf32>
    %28 = arith.addf %26, %27 : vector<128x128xf32>
    %cst_18 = arith.constant 0.000000e+00 : f32
    %29 = vector.broadcast %cst_18 : f32 to vector<128x128xf32>
    %30 = arith.maximumf %28, %29 : vector<128x128xf32>
    %c256_19 = arith.constant 256 : index
    %c0_20 = arith.constant 0 : index
    %31 = vector.load %arg5[%c256_19, %c0_20] : memref<512x128xf32, #tpu.memory_space<vmem>>, vector<128x128xf32>
    tpu.vector_store %arg5[%c256_19, %c0_20], %30 {strides = array<i32>} : memref<512x128xf32, #tpu.memory_space<vmem>>, vector<128x128xf32>,
    %c384 = arith.constant 384 : index
    %c0_21 = arith.constant 0 : index
    %32 = vector.load %arg1[%c384, %c0_21] : memref<512x128xf32, #tpu.memory_space<vmem>>, vector<128x128xf32>
    %33 = vector.broadcast %0 : vector<1x128xf32> to vector<128x128xf32>
    %34 = arith.mulf %32, %33 : vector<128x128xf32>
    %35 = vector.broadcast %1 : vector<1x128xf32> to vector<128x128xf32>
    %36 = arith.addf %34, %35 : vector<128x128xf32>
    %c384_22 = arith.constant 384 : index
    %c0_23 = arith.constant 0 : index
    %37 = vector.load %arg4[%c384_22, %c0_23] : memref<512x128xf32, #tpu.memory_space<vmem>>, vector<128x128xf32>
    %38 = arith.addf %36, %37 : vector<128x128xf32>
    %cst_24 = arith.constant 0.000000e+00 : f32
    %39 = vector.broadcast %cst_24 : f32 to vector<128x128xf32>
    %40 = arith.maximumf %38, %39 : vector<128x128xf32>
    %c384_25 = arith.constant 384 : index
    %c0_26 = arith.constant 0 : index
    %41 = vector.load %arg5[%c384_25, %c0_26] : memref<512x128xf32, #tpu.memory_space<vmem>>, vector<128x128xf32>
    tpu.vector_store %arg5[%c384_25, %c0_26], %40 {strides = array<i32>} : memref<512x128xf32, #tpu.memory_space<vmem>>, vector<128x128xf32>,
    return
  }
  func.func @transform_0(%arg0: i32) -> (i32, i32) {
    %c0_i32 = arith.constant 0 : i32
    %c0_i32_0 = arith.constant 0 : i32
    return %arg0, %c0_i32 : i32, i32
  }
  func.func @transform_1(%arg0: i32) -> (i32, i32) {
    %c0_i32 = arith.constant 0 : i32
    %c0_i32_0 = arith.constant 0 : i32
    %c0_i32_1 = arith.constant 0 : i32
    return %c0_i32, %c0_i32_0 : i32, i32
  }
  func.func @transform_2(%arg0: i32) -> (i32, i32) {
    %c0_i32 = arith.constant 0 : i32
    %c0_i32_0 = arith.constant 0 : i32
    %c0_i32_1 = arith.constant 0 : i32
    return %c0_i32, %c0_i32_0 : i32, i32
  }
  func.func @transform_3(%arg0: i32) -> (i32, i32) {
    %c0_i32 = arith.constant 0 : i32
    %c0_i32_0 = arith.constant 0 : i32
    return %arg0, %c0_i32 : i32, i32
  }
  func.func @transform_4(%arg0: i32) -> (i32, i32) {
    %c0_i32 = arith.constant 0 : i32
    %c0_i32_0 = arith.constant 0 : i32
    return %arg0, %c0_i32 : i32, i32
  }
}

</mosaic_0001>

<llo_original>
// kernel: bottleneck_forward.7
$region0: #{bottleneck_forward.7}
  #allocation0 [shape = 'u32[]', space=smem, size = 0x4, offset = 0x4, fixed_abs, tag = 'smem constant byte address 0x4 - core index']
  #allocation1 [shape = 'u32[144,128]{1,0:T(1,128)}', space=vmem, size = 0x12000, scoped, tag = 'internal scratch']
  %s0 = inlined_call_operand.vmem [shape: f32[1024,128], index: 0, kind: input, shape index: {}]
  %s1 = inlined_call_operand.vmem [shape: f32[1,128], index: 1, kind: input, shape index: {}]
  %s2 = inlined_call_operand.vmem [shape: f32[1,128], index: 2, kind: input, shape index: {}]
  %s3 = inlined_call_operand.vmem [shape: bf16[1024,128], index: 3, kind: output, shape index: {}]
  %s4 = sld [smem:[#allocation0]]
  $region45: #{bottleneck_forward.7} parent=0
    _
  %s6 = ssub.s32 1, %s4
  %s7 = scalar_select 0, %s6, %s4
  loop: start=0, step=1, limit=4
  $region2: #{bottleneck_forward.7} parent=0 // loop_pre_header
    _
  $region3: #{bottleneck_forward.7} parent=0 // loop_header
    %s9 = sphi 0, %s13
    %p10 = scmp.ge.s32.totalorder %s9, 4
    %s19 = sphi 0, %s21
    %s22 = sphi 0, %s19
    %s23 = sphi 0, %s22
    %s39 = sphi 0, %s23
    %s43 = sphi 0, %s43
    %s45 = sphi 0, %s43
    %s46 = sphi 0, %s45
    %s60 = sphi 0, %s46
    %s64 = sphi 0, %s64
    %s66 = sphi 0, %s64
    %s67 = sphi 0, %s66
    %s81 = sphi 0, %s67
    %s87 = sphi 0, %s89
    %s90 = sphi 0, %s87
    %s91 = sphi 0, %s90
    %s107 = sphi 0, %s91
  $region4: #{bottleneck_forward.7} parent=0 // loop_header_branch
    %12 = sbr.rel (%p10) target = $region8
  $region5: #{bottleneck_forward.7} parent=0 // loop_body
    %s14 = ssub.s32 %s9, 1
    %s15 = ssub.s32 %s9, 2
    %s16 = sadd.s32 %s9, 1
    %s17 = ssub.s32 %s9, %s16
    %p18 = scmp.eq.s32.totalorder %s17, 0
    %s20 = sadd.s32 %s19, 1
    %s21 = scalar_select %p18, %s19, %s20
    %p24 = pneg %p18
    %p25 = scmp.eq.s32.totalorder %s9, 1
    %p26 = por %p24, %p25
    %p27 = scmp.ne.s32.totalorder %s19, %s22
    %p28 = scmp.eq.s32.totalorder %s9, 0
    %p29 = por %p27, %p28
    %p30 = scmp.ne.s32.totalorder %s19, %s22
    %p31 = scmp.eq.s32.totalorder %s14, 1
    %p32 = por %p30, %p31
    %p33 = scmp.ne.s32.totalorder %s22, %s23
    %p34 = scmp.eq.s32.totalorder %s14, 0
    %p35 = por %p33, %p34
    %p36 = scmp.ne.s32.totalorder %s22, %s23
    %p37 = scmp.eq.s32.totalorder %s15, 1
    %p38 = por %p36, %p37
    %p40 = scmp.ne.s32.totalorder %s23, %s39
    %p41 = scmp.eq.s32.totalorder %s15, 0
    %p42 = por %p40, %p41
    %s44 = sadd.s32 %s43, 1
    %p47 = scmp.eq.s32.totalorder %s9, 1
    %p48 = scmp.ne.s32.totalorder %s43, %s45
    %p49 = scmp.eq.s32.totalorder %s9, 0
    %p50 = por %p48, %p49
    %p51 = scmp.ne.s32.totalorder %s43, %s45
    %p52 = scmp.eq.s32.totalorder %s14, 1
    %p53 = por %p51, %p52
    %p54 = scmp.ne.s32.totalorder %s45, %s46
    %p55 = scmp.eq.s32.totalorder %s14, 0
    %p56 = por %p54, %p55
    %p57 = scmp.ne.s32.totalorder %s45, %s46
    %p58 = scmp.eq.s32.totalorder %s15, 1
    %p59 = por %p57, %p58
    %p61 = scmp.ne.s32.totalorder %s46, %s60
    %p62 = scmp.eq.s32.totalorder %s15, 0
    %p63 = por %p61, %p62
    %s65 = sadd.s32 %s64, 1
    %p68 = scmp.eq.s32.totalorder %s9, 1
    %p69 = scmp.ne.s32.totalorder %s64, %s66
    %p70 = scmp.eq.s32.totalorder %s9, 0
    %p71 = por %p69, %p70
    %p72 = scmp.ne.s32.totalorder %s64, %s66
    %p73 = scmp.eq.s32.totalorder %s14, 1
    %p74 = por %p72, %p73
    %p75 = scmp.ne.s32.totalorder %s66, %s67
    %p76 = scmp.eq.s32.totalorder %s14, 0
    %p77 = por %p75, %p76
    %p78 = scmp.ne.s32.totalorder %s66, %s67
    %p79 = scmp.eq.s32.totalorder %s15, 1
    %p80 = por %p78, %p79
    %p82 = scmp.ne.s32.totalorder %s67, %s81
    %p83 = scmp.eq.s32.totalorder %s15, 0
    %p84 = por %p82, %p83
    %s85 = ssub.s32 %s9, %s16
    %p86 = scmp.eq.s32.totalorder %s85, 0
    %s88 = sadd.s32 %s87, 1
    %s89 = scalar_select %p86, %s87, %s88
    %p92 = pneg %p86
    %p93 = scmp.eq.s32.totalorder %s9, 1
    %p94 = por %p92, %p93
    %p95 = scmp.ne.s32.totalorder %s87, %s90
    %p96 = scmp.eq.s32.totalorder %s9, 0
    %p97 = por %p95, %p96
    %p98 = scmp.ne.s32.totalorder %s87, %s90
    %p99 = scmp.eq.s32.totalorder %s14, 1
    %p100 = por %p98, %p99
    %p101 = scmp.ne.s32.totalorder %s90, %s91
    %p102 = scmp.eq.s32.totalorder %s14, 0
    %p103 = por %p101, %p102
    %p104 = scmp.ne.s32.totalorder %s90, %s91
    %p105 = scmp.eq.s32.totalorder %s15, 1
    %p106 = por %p104, %p105
    %p108 = scmp.ne.s32.totalorder %s91, %s107
    %p109 = scmp.eq.s32.totalorder %s15, 0
    %p110 = por %p108, %p109
    %p111 = scmp.le.s32.totalorder 1, %s9
    %p112 = scmp.lt.s32.totalorder %s9, 3
    %p113 = pnand %p111, %p112
    %p114 = pneg %p113
    // Predicated region
    $region9: #{bottleneck_forward.7} parent=5 // pred_check
      _
    $region10: #{bottleneck_forward.7} parent=5 // pred_check_branch
      %116 = sbr.rel (%p113) target = $region12
    $region11: #{bottleneck_forward.7} parent=5 // pred_region
      %s117 = ssub.s32 %s9, 1
      // Predicated region
      $region13: #{bottleneck_forward.7} parent=11 // pred_check
        %p118 = pneg %p56
      $region14: #{bottleneck_forward.7} parent=11 // pred_check_branch
        %120 = sbr.rel (%p118) target = $region16
      $region15: #{bottleneck_forward.7} parent=11 // pred_region
        _
      $region16: #{bottleneck_forward.7} parent=11 // pred_fallthru
        _
      // Predicated region
      $region17: #{bottleneck_forward.7} parent=11 // pred_check
        %p121 = pneg %p77
      $region18: #{bottleneck_forward.7} parent=11 // pred_check_branch
        %123 = sbr.rel (%p121) target = $region20
      $region19: #{bottleneck_forward.7} parent=11 // pred_region
        _
      $region20: #{bottleneck_forward.7} parent=11 // pred_fallthru
        _
    $region12: #{bottleneck_forward.7} parent=5 // pred_fallthru
      _
    %p124 = scmp.lt.s32.totalorder %s9, 2
    // Predicated region
    $region21: #{bottleneck_forward.7} parent=5 // pred_check
      %p125 = pneg %p124
    $region22: #{bottleneck_forward.7} parent=5 // pred_check_branch
      %127 = sbr.rel (%p125) target = $region24
    $region23: #{bottleneck_forward.7} parent=5 // pred_region
      // Predicated region
      $region25: #{bottleneck_forward.7} parent=23 // pred_check
        %p128 = pneg %p29
      $region26: #{bottleneck_forward.7} parent=23 // pred_check_branch
        %130 = sbr.rel (%p128) target = $region28
      $region27: #{bottleneck_forward.7} parent=23 // pred_region
        %s131 = smul.u32 64, %s9
        %p132 = scmp.lt.s32.totalorder %s131, 127
        %s133 = scalar_select %p132, %s131, 127
        %s134 = smul.addr %s133, 8
        %s135 = scalar_lea.vmem %s0, %s134
        %s136 = smul.u32 64, %s9
      $region28: #{bottleneck_forward.7} parent=23 // pred_fallthru
        _
    $region24: #{bottleneck_forward.7} parent=5 // pred_fallthru
      _
    %p137 = scmp.le.s32.totalorder 1, %s9
    %p138 = scmp.lt.s32.totalorder %s9, 3
    %p139 = pnand %p137, %p138
    %p140 = pneg %p139
    // Predicated region
    $region29: #{bottleneck_forward.7} parent=5 // pred_check
      _
    $region30: #{bottleneck_forward.7} parent=5 // pred_check_branch
      %142 = sbr.rel (%p139) target = $region32
    $region31: #{bottleneck_forward.7} parent=5 // pred_region
      %s143 = ssub.s32 %s9, 1
      %s144 = smul.u32 64, %s14
      %p145 = scmp.lt.s32.totalorder %s144, 127
      %s146 = scalar_select %p145, %s144, 127
      %s147 = smul.addr %s146, 8
      %s148 = scalar_lea.vmem %s0, %s147
      %p149 = pneg %p35
      %p150 = pneg %p32
      %p151 = pneg %p56
      %p152 = pneg %p53
      %p153 = pneg %p77
      %p154 = pneg %p74
      %p155 = pneg %p103
      %p156 = pneg %p100
      %s157 = smul.u32 64, %s14
      %p158 = scmp.lt.s32.totalorder %s157, 127
      %s159 = scalar_select %p158, %s157, 127
      %s160 = smul.addr %s159, 4
      %s161 = scalar_lea.vmem %s3, %s160
      %s162 = smul.u32 64, %s14
      %p163 = scmp.lt.s32.totalorder %s162, 127
      %s164 = scalar_select %p163, %s162, 127
      %s165 = smul.addr %s164, 8
      %s166 = scalar_lea.vmem %s0, %s165
      %s167 = smul.u32 64, %s14
      %s168 = smul.u32 64, %s14
      %p169 = scmp.lt.s32.totalorder %s168, 127
      %s170 = scalar_select %p169, %s168, 127
      %s171 = smul.addr %s170, 4
      %s172 = scalar_lea.vmem %s3, %s171
      %s173 = smul.u32 64, %s14
      %v174 = vld [vmem:[%s1] sm:$0x1]
      %v175 = vld [vmem:[%s2] sm:$0x1]
      %v176 = vld [vmem:[%s166] sm:$0xff]
      %v177 = vld [vmem:[%s166 + $0x8] sm:$0xff]
      %v178 = vld [vmem:[%s166 + $0x10] sm:$0xff]
      %v179 = vld [vmem:[%s166 + $0x18] sm:$0xff]
      %v180 = vld [vmem:[%s166 + $0x20] sm:$0xff]
      %v181 = vld [vmem:[%s166 + $0x28] sm:$0xff]
      %v182 = vld [vmem:[%s166 + $0x30] sm:$0xff]
      %v183 = vld [vmem:[%s166 + $0x38] sm:$0xff]
      %v184 = vld [vmem:[%s166 + $0x40] sm:$0xff]
      %v185 = vld [vmem:[%s166 + $0x48] sm:$0xff]
      %v186 = vld [vmem:[%s166 + $0x50] sm:$0xff]
      %v187 = vld [vmem:[%s166 + $0x58] sm:$0xff]
      %v188 = vld [vmem:[%s166 + $0x60] sm:$0xff]
      %v189 = vld [vmem:[%s166 + $0x68] sm:$0xff]
      %v190 = vld [vmem:[%s166 + $0x70] sm:$0xff]
      %v191 = vld [vmem:[%s166 + $0x78] sm:$0xff]
      %v193 = vlaneseq
      %v194 = vshrl.u32 %v193, 7
      %v195 = vsub.s32 0, %v194
      %v196 = vrot.slane %v174, %v195
      %v198 = vmul.f32 %v176, %v196
      %v199 = vmul.f32 %v177, %v196
      %v200 = vmul.f32 %v178, %v196
      %v201 = vmul.f32 %v179, %v196
      %v202 = vmul.f32 %v180, %v196
      %v203 = vmul.f32 %v181, %v196
      %v204 = vmul.f32 %v182, %v196
      %v205 = vmul.f32 %v183, %v196
      %v206 = vmul.f32 %v184, %v196
      %v207 = vmul.f32 %v185, %v196
      %v208 = vmul.f32 %v186, %v196
      %v209 = vmul.f32 %v187, %v196
      %v210 = vmul.f32 %v188, %v196
      %v211 = vmul.f32 %v189, %v196
      %v212 = vmul.f32 %v190, %v196
      %v213 = vmul.f32 %v191, %v196
      %v215 = vlaneseq
      %v216 = vshrl.u32 %v215, 7
      %v217 = vsub.s32 0, %v216
      %v218 = vrot.slane %v175, %v217
      %v220 = vadd.f32 %v198, %v218
      %v221 = vadd.f32 %v199, %v218
      %v222 = vadd.f32 %v200, %v218
      %v223 = vadd.f32 %v201, %v218
      %v224 = vadd.f32 %v202, %v218
      %v225 = vadd.f32 %v203, %v218
      %v226 = vadd.f32 %v204, %v218
      %v227 = vadd.f32 %v205, %v218
      %v228 = vadd.f32 %v206, %v218
      %v229 = vadd.f32 %v207, %v218
      %v230 = vadd.f32 %v208, %v218
      %v231 = vadd.f32 %v209, %v218
      %v232 = vadd.f32 %v210, %v218
      %v233 = vadd.f32 %v211, %v218
      %v234 = vadd.f32 %v212, %v218
      %v235 = vadd.f32 %v213, %v218
      %v236 = vmax.f32 %v220, 0.0
      %v237 = vmax.f32 %v221, 0.0
      %v238 = vmax.f32 %v222, 0.0
      %v239 = vmax.f32 %v223, 0.0
      %v240 = vmax.f32 %v224, 0.0
      %v241 = vmax.f32 %v225, 0.0
      %v242 = vmax.f32 %v226, 0.0
      %v243 = vmax.f32 %v227, 0.0
      %v244 = vmax.f32 %v228, 0.0
      %v245 = vmax.f32 %v229, 0.0
      %v246 = vmax.f32 %v230, 0.0
      %v247 = vmax.f32 %v231, 0.0
      %v248 = vmax.f32 %v232, 0.0
      %v249 = vmax.f32 %v233, 0.0
      %v250 = vmax.f32 %v234, 0.0
      %v251 = vmax.f32 %v235, 0.0
      %v252 = vpack.c.bf16 %v237, %v236
      %v253 = vpack.c.bf16 %v239, %v238
      %v254 = vpack.c.bf16 %v241, %v240
      %v255 = vpack.c.bf16 %v243, %v242
      %v256 = vpack.c.bf16 %v245, %v244
      %v257 = vpack.c.bf16 %v247, %v246
      %v258 = vpack.c.bf16 %v249, %v248
      %v259 = vpack.c.bf16 %v251, %v250
      %v268 = vunpack.c.l.b16 %v252
      %v269 = vunpack.c.h.b16 %v252
      %v270 = vunpack.c.l.b16 %v253
      %v271 = vunpack.c.h.b16 %v253
      %v272 = vunpack.c.l.b16 %v254
      %v273 = vunpack.c.h.b16 %v254
      %v274 = vunpack.c.l.b16 %v255
      %v275 = vunpack.c.h.b16 %v255
      %v276 = vunpack.c.l.b16 %v256
      %v277 = vunpack.c.h.b16 %v256
      %v278 = vunpack.c.l.b16 %v257
      %v279 = vunpack.c.h.b16 %v257
      %v280 = vunpack.c.l.b16 %v258
      %v281 = vunpack.c.h.b16 %v258
      %v282 = vunpack.c.l.b16 %v259
      %v283 = vunpack.c.h.b16 %v259
      %v284 = vpack.c.b16 %v268, %v268
      %v285 = vpack.c.b16 %v269, %v269
      %v286 = vpack.c.b16 %v270, %v270
      %v287 = vpack.c.b16 %v271, %v271
      %v288 = vpack.c.b16 %v272, %v272
      %v289 = vpack.c.b16 %v273, %v273
      %v290 = vpack.c.b16 %v274, %v274
      %v291 = vpack.c.b16 %v275, %v275
      %v292 = vpack.c.b16 %v276, %v276
      %v293 = vpack.c.b16 %v277, %v277
      %v294 = vpack.c.b16 %v278, %v278
      %v295 = vpack.c.b16 %v279, %v279
      %v296 = vpack.c.b16 %v280, %v280
      %v297 = vpack.c.b16 %v281, %v281
      %v298 = vpack.c.b16 %v282, %v282
      %v299 = vpack.c.b16 %v283, %v283
      %316 = vst [vmem:[%s172] sm:$0xf] %v284
      %317 = vst [vmem:[%s172 + $0x4] sm:$0xf] %v285
      %318 = vst [vmem:[%s172 + $0x8] sm:$0xf] %v286
      %319 = vst [vmem:[%s172 + $0xc] sm:$0xf] %v287
      %320 = vst [vmem:[%s172 + $0x10] sm:$0xf] %v288
      %321 = vst [vmem:[%s172 + $0x14] sm:$0xf] %v289
      %322 = vst [vmem:[%s172 + $0x18] sm:$0xf] %v290
      %323 = vst [vmem:[%s172 + $0x1c] sm:$0xf] %v291
      %324 = vst [vmem:[%s172 + $0x20] sm:$0xf] %v292
      %325 = vst [vmem:[%s172 + $0x24] sm:$0xf] %v293
      %326 = vst [vmem:[%s172 + $0x28] sm:$0xf] %v294
      %327 = vst [vmem:[%s172 + $0x2c] sm:$0xf] %v295
      %328 = vst [vmem:[%s172 + $0x30] sm:$0xf] %v296
      %329 = vst [vmem:[%s172 + $0x34] sm:$0xf] %v297
      %330 = vst [vmem:[%s172 + $0x38] sm:$0xf] %v298
      %331 = vst [vmem:[%s172 + $0x3c] sm:$0xf] %v299
      %v332 = vld [vmem:[%s166 + $0x80] sm:$0xff]
      %v333 = vld [vmem:[%s166 + $0x88] sm:$0xff]
      %v334 = vld [vmem:[%s166 + $0x90] sm:$0xff]
      %v335 = vld [vmem:[%s166 + $0x98] sm:$0xff]
      %v336 = vld [vmem:[%s166 + $0xa0] sm:$0xff]
      %v337 = vld [vmem:[%s166 + $0xa8] sm:$0xff]
      %v338 = vld [vmem:[%s166 + $0xb0] sm:$0xff]
      %v339 = vld [vmem:[%s166 + $0xb8] sm:$0xff]
      %v340 = vld [vmem:[%s166 + $0xc0] sm:$0xff]
      %v341 = vld [vmem:[%s166 + $0xc8] sm:$0xff]
      %v342 = vld [vmem:[%s166 + $0xd0] sm:$0xff]
      %v343 = vld [vmem:[%s166 + $0xd8] sm:$0xff]
      %v344 = vld [vmem:[%s166 + $0xe0] sm:$0xff]
      %v345 = vld [vmem:[%s166 + $0xe8] sm:$0xff]
      %v346 = vld [vmem:[%s166 + $0xf0] sm:$0xff]
      %v347 = vld [vmem:[%s166 + $0xf8] sm:$0xff]
      %v348 = vmul.f32 %v332, %v196
      %v349 = vmul.f32 %v333, %v196
      %v350 = vmul.f32 %v334, %v196
      %v351 = vmul.f32 %v335, %v196
      %v352 = vmul.f32 %v336, %v196
      %v353 = vmul.f32 %v337, %v196
      %v354 = vmul.f32 %v338, %v196
      %v355 = vmul.f32 %v339, %v196
      %v356 = vmul.f32 %v340, %v196
      %v357 = vmul.f32 %v341, %v196
      %v358 = vmul.f32 %v342, %v196
      %v359 = vmul.f32 %v343, %v196
      %v360 = vmul.f32 %v344, %v196
      %v361 = vmul.f32 %v345, %v196
      %v362 = vmul.f32 %v346, %v196
      %v363 = vmul.f32 %v347, %v196
      %v364 = vadd.f32 %v348, %v218
      %v365 = vadd.f32 %v349, %v218
      %v366 = vadd.f32 %v350, %v218
      %v367 = vadd.f32 %v351, %v218
      %v368 = vadd.f32 %v352, %v218
      %v369 = vadd.f32 %v353, %v218
      %v370 = vadd.f32 %v354, %v218
      %v371 = vadd.f32 %v355, %v218
      %v372 = vadd.f32 %v356, %v218
      %v373 = vadd.f32 %v357, %v218
      %v374 = vadd.f32 %v358, %v218
      %v375 = vadd.f32 %v359, %v218
      %v376 = vadd.f32 %v360, %v218
      %v377 = vadd.f32 %v361, %v218
      %v378 = vadd.f32 %v362, %v218
      %v379 = vadd.f32 %v363, %v218
      %v380 = vmax.f32 %v364, 0.0
      %v381 = vmax.f32 %v365, 0.0
      %v382 = vmax.f32 %v366, 0.0
      %v383 = vmax.f32 %v367, 0.0
      %v384 = vmax.f32 %v368, 0.0
      %v385 = vmax.f32 %v369, 0.0
      %v386 = vmax.f32 %v370, 0.0
      %v387 = vmax.f32 %v371, 0.0
      %v388 = vmax.f32 %v372, 0.0
      %v389 = vmax.f32 %v373, 0.0
      %v390 = vmax.f32 %v374, 0.0
      %v391 = vmax.f32 %v375, 0.0
      %v392 = vmax.f32 %v376, 0.0
      %v393 = vmax.f32 %v377, 0.0
      %v394 = vmax.f32 %v378, 0.0
      %v395 = vmax.f32 %v379, 0.0
      %v396 = vpack.c.bf16 %v381, %v380
      %v397 = vpack.c.bf16 %v383, %v382
      %v398 = vpack.c.bf16 %v385, %v384
      %v399 = vpack.c.bf16 %v387, %v386
      %v400 = vpack.c.bf16 %v389, %v388
      %v401 = vpack.c.bf16 %v391, %v390
      %v402 = vpack.c.bf16 %v393, %v392
      %v403 = vpack.c.bf16 %v395, %v394
      %v412 = vunpack.c.l.b16 %v396
      %v413 = vunpack.c.h.b16 %v396
      %v414 = vunpack.c.l.b16 %v397
      %v415 = vunpack.c.h.b16 %v397
      %v416 = vunpack.c.l.b16 %v398
      %v417 = vunpack.c.h.b16 %v398
      %v418 = vunpack.c.l.b16 %v399
      %v419 = vunpack.c.h.b16 %v399
      %v420 = vunpack.c.l.b16 %v400
      %v421 = vunpack.c.h.b16 %v400
      %v422 = vunpack.c.l.b16 %v401
      %v423 = vunpack.c.h.b16 %v401
      %v424 = vunpack.c.l.b16 %v402
      %v425 = vunpack.c.h.b16 %v402
      %v426 = vunpack.c.l.b16 %v403
      %v427 = vunpack.c.h.b16 %v403
      %v428 = vpack.c.b16 %v412, %v412
      %v429 = vpack.c.b16 %v413, %v413
      %v430 = vpack.c.b16 %v414, %v414
      %v431 = vpack.c.b16 %v415, %v415
      %v432 = vpack.c.b16 %v416, %v416
      %v433 = vpack.c.b16 %v417, %v417
      %v434 = vpack.c.b16 %v418, %v418
      %v435 = vpack.c.b16 %v419, %v419
      %v436 = vpack.c.b16 %v420, %v420
      %v437 = vpack.c.b16 %v421, %v421
      %v438 = vpack.c.b16 %v422, %v422
      %v439 = vpack.c.b16 %v423, %v423
      %v440 = vpack.c.b16 %v424, %v424
      %v441 = vpack.c.b16 %v425, %v425
      %v442 = vpack.c.b16 %v426, %v426
      %v443 = vpack.c.b16 %v427, %v427
      %460 = vst [vmem:[%s172 + $0x40] sm:$0xf] %v428
      %461 = vst [vmem:[%s172 + $0x44] sm:$0xf] %v429
      %462 = vst [vmem:[%s172 + $0x48] sm:$0xf] %v430
      %463 = vst [vmem:[%s172 + $0x4c] sm:$0xf] %v431
      %464 = vst [vmem:[%s172 + $0x50] sm:$0xf] %v432
      %465 = vst [vmem:[%s172 + $0x54] sm:$0xf] %v433
      %466 = vst [vmem:[%s172 + $0x58] sm:$0xf] %v434
      %467 = vst [vmem:[%s172 + $0x5c] sm:$0xf] %v435
      %468 = vst [vmem:[%s172 + $0x60] sm:$0xf] %v436
      %469 = vst [vmem:[%s172 + $0x64] sm:$0xf] %v437
      %470 = vst [vmem:[%s172 + $0x68] sm:$0xf] %v438
      %471 = vst [vmem:[%s172 + $0x6c] sm:$0xf] %v439
      %472 = vst [vmem:[%s172 + $0x70] sm:$0xf] %v440
      %473 = vst [vmem:[%s172 + $0x74] sm:$0xf] %v441
      %474 = vst [vmem:[%s172 + $0x78] sm:$0xf] %v442
      %475 = vst [vmem:[%s172 + $0x7c] sm:$0xf] %v443
      %v476 = vld [vmem:[%s166 + $0x100] sm:$0xff]
      %v477 = vld [vmem:[%s166 + $0x108] sm:$0xff]
      %v478 = vld [vmem:[%s166 + $0x110] sm:$0xff]
      %v479 = vld [vmem:[%s166 + $0x118] sm:$0xff]
      %v480 = vld [vmem:[%s166 + $0x120] sm:$0xff]
      %v481 = vld [vmem:[%s166 + $0x128] sm:$0xff]
      %v482 = vld [vmem:[%s166 + $0x130] sm:$0xff]
      %v483 = vld [vmem:[%s166 + $0x138] sm:$0xff]
      %v484 = vld [vmem:[%s166 + $0x140] sm:$0xff]
      %v485 = vld [vmem:[%s166 + $0x148] sm:$0xff]
      %v486 = vld [vmem:[%s166 + $0x150] sm:$0xff]
      %v487 = vld [vmem:[%s166 + $0x158] sm:$0xff]
      %v488 = vld [vmem:[%s166 + $0x160] sm:$0xff]
      %v489 = vld [vmem:[%s166 + $0x168] sm:$0xff]
      %v490 = vld [vmem:[%s166 + $0x170] sm:$0xff]
      %v491 = vld [vmem:[%s166 + $0x178] sm:$0xff]
      %v492 = vmul.f32 %v476, %v196
      %v493 = vmul.f32 %v477, %v196
      %v494 = vmul.f32 %v478, %v196
      %v495 = vmul.f32 %v479, %v196
      %v496 = vmul.f32 %v480, %v196
      %v497 = vmul.f32 %v481, %v196
      %v498 = vmul.f32 %v482, %v196
      %v499 = vmul.f32 %v483, %v196
      %v500 = vmul.f32 %v484, %v196
      %v501 = vmul.f32 %v485, %v196
      %v502 = vmul.f32 %v486, %v196
      %v503 = vmul.f32 %v487, %v196
      %v504 = vmul.f32 %v488, %v196
      %v505 = vmul.f32 %v489, %v196
      %v506 = vmul.f32 %v490, %v196
      %v507 = vmul.f32 %v491, %v196
      %v508 = vadd.f32 %v492, %v218
      %v509 = vadd.f32 %v493, %v218
      %v510 = vadd.f32 %v494, %v218
      %v511 = vadd.f32 %v495, %v218
      %v512 = vadd.f32 %v496, %v218
      %v513 = vadd.f32 %v497, %v218
      %v514 = vadd.f32 %v498, %v218
      %v515 = vadd.f32 %v499, %v218
      %v516 = vadd.f32 %v500, %v218
      %v517 = vadd.f32 %v501, %v218
      %v518 = vadd.f32 %v502, %v218
      %v519 = vadd.f32 %v503, %v218
      %v520 = vadd.f32 %v504, %v218
      %v521 = vadd.f32 %v505, %v218
      %v522 = vadd.f32 %v506, %v218
      %v523 = vadd.f32 %v507, %v218
      %v524 = vmax.f32 %v508, 0.0
      %v525 = vmax.f32 %v509, 0.0
      %v526 = vmax.f32 %v510, 0.0
      %v527 = vmax.f32 %v511, 0.0
      %v528 = vmax.f32 %v512, 0.0
      %v529 = vmax.f32 %v513, 0.0
      %v530 = vmax.f32 %v514, 0.0
      %v531 = vmax.f32 %v515, 0.0
      %v532 = vmax.f32 %v516, 0.0
      %v533 = vmax.f32 %v517, 0.0
      %v534 = vmax.f32 %v518, 0.0
      %v535 = vmax.f32 %v519, 0.0
      %v536 = vmax.f32 %v520, 0.0
      %v537 = vmax.f32 %v521, 0.0
      %v538 = vmax.f32 %v522, 0.0
      %v539 = vmax.f32 %v523, 0.0
      %v540 = vpack.c.bf16 %v525, %v524
      %v541 = vpack.c.bf16 %v527, %v526
      %v542 = vpack.c.bf16 %v529, %v528
      %v543 = vpack.c.bf16 %v531, %v530
      %v544 = vpack.c.bf16 %v533, %v532
      %v545 = vpack.c.bf16 %v535, %v534
      %v546 = vpack.c.bf16 %v537, %v536
      %v547 = vpack.c.bf16 %v539, %v538
      %v556 = vunpack.c.l.b16 %v540
      %v557 = vunpack.c.h.b16 %v540
      %v558 = vunpack.c.l.b16 %v541
      %v559 = vunpack.c.h.b16 %v541
      %v560 = vunpack.c.l.b16 %v542
      %v561 = vunpack.c.h.b16 %v542
      %v562 = vunpack.c.l.b16 %v543
      %v563 = vunpack.c.h.b16 %v543
      %v564 = vunpack.c.l.b16 %v544
      %v565 = vunpack.c.h.b16 %v544
      %v566 = vunpack.c.l.b16 %v545
      %v567 = vunpack.c.h.b16 %v545
      %v568 = vunpack.c.l.b16 %v546
      %v569 = vunpack.c.h.b16 %v546
      %v570 = vunpack.c.l.b16 %v547
      %v571 = vunpack.c.h.b16 %v547
      %v572 = vpack.c.b16 %v556, %v556
      %v573 = vpack.c.b16 %v557, %v557
      %v574 = vpack.c.b16 %v558, %v558
      %v575 = vpack.c.b16 %v559, %v559
      %v576 = vpack.c.b16 %v560, %v560
      %v577 = vpack.c.b16 %v561, %v561
      %v578 = vpack.c.b16 %v562, %v562
      %v579 = vpack.c.b16 %v563, %v563
      %v580 = vpack.c.b16 %v564, %v564
      %v581 = vpack.c.b16 %v565, %v565
      %v582 = vpack.c.b16 %v566, %v566
      %v583 = vpack.c.b16 %v567, %v567
      %v584 = vpack.c.b16 %v568, %v568
      %v585 = vpack.c.b16 %v569, %v569
      %v586 = vpack.c.b16 %v570, %v570
      %v587 = vpack.c.b16 %v571, %v571
      %604 = vst [vmem:[%s172 + $0x80] sm:$0xf] %v572
      %605 = vst [vmem:[%s172 + $0x84] sm:$0xf] %v573
      %606 = vst [vmem:[%s172 + $0x88] sm:$0xf] %v574
      %607 = vst [vmem:[%s172 + $0x8c] sm:$0xf] %v575
      %608 = vst [vmem:[%s172 + $0x90] sm:$0xf] %v576
      %609 = vst [vmem:[%s172 + $0x94] sm:$0xf] %v577
      %610 = vst [vmem:[%s172 + $0x98] sm:$0xf] %v578
      %611 = vst [vmem:[%s172 + $0x9c] sm:$0xf] %v579
      %612 = vst [vmem:[%s172 + $0xa0] sm:$0xf] %v580
      %613 = vst [vmem:[%s172 + $0xa4] sm:$0xf] %v581
      %614 = vst [vmem:[%s172 + $0xa8] sm:$0xf] %v582
      %615 = vst [vmem:[%s172 + $0xac] sm:$0xf] %v583
      %616 = vst [vmem:[%s172 + $0xb0] sm:$0xf] %v584
      %617 = vst [vmem:[%s172 + $0xb4] sm:$0xf] %v585
      %618 = vst [vmem:[%s172 + $0xb8] sm:$0xf] %v586
      %619 = vst [vmem:[%s172 + $0xbc] sm:$0xf] %v587
      %v620 = vld [vmem:[%s166 + $0x180] sm:$0xff]
      %v621 = vld [vmem:[%s166 + $0x188] sm:$0xff]
      %v622 = vld [vmem:[%s166 + $0x190] sm:$0xff]
      %v623 = vld [vmem:[%s166 + $0x198] sm:$0xff]
      %v624 = vld [vmem:[%s166 + $0x1a0] sm:$0xff]
      %v625 = vld [vmem:[%s166 + $0x1a8] sm:$0xff]
      %v626 = vld [vmem:[%s166 + $0x1b0] sm:$0xff]
      %v627 = vld [vmem:[%s166 + $0x1b8] sm:$0xff]
      %v628 = vld [vmem:[%s166 + $0x1c0] sm:$0xff]
      %v629 = vld [vmem:[%s166 + $0x1c8] sm:$0xff]
      %v630 = vld [vmem:[%s166 + $0x1d0] sm:$0xff]
      %v631 = vld [vmem:[%s166 + $0x1d8] sm:$0xff]
      %v632 = vld [vmem:[%s166 + $0x1e0] sm:$0xff]
      %v633 = vld [vmem:[%s166 + $0x1e8] sm:$0xff]
      %v634 = vld [vmem:[%s166 + $0x1f0] sm:$0xff]
      %v635 = vld [vmem:[%s166 + $0x1f8] sm:$0xff]
      %v636 = vmul.f32 %v620, %v196
      %v637 = vmul.f32 %v621, %v196
      %v638 = vmul.f32 %v622, %v196
      %v639 = vmul.f32 %v623, %v196
      %v640 = vmul.f32 %v624, %v196
      %v641 = vmul.f32 %v625, %v196
      %v642 = vmul.f32 %v626, %v196
      %v643 = vmul.f32 %v627, %v196
      %v644 = vmul.f32 %v628, %v196
      %v645 = vmul.f32 %v629, %v196
      %v646 = vmul.f32 %v630, %v196
      %v647 = vmul.f32 %v631, %v196
      %v648 = vmul.f32 %v632, %v196
      %v649 = vmul.f32 %v633, %v196
      %v650 = vmul.f32 %v634, %v196
      %v651 = vmul.f32 %v635, %v196
      %v652 = vadd.f32 %v636, %v218
      %v653 = vadd.f32 %v637, %v218
      %v654 = vadd.f32 %v638, %v218
      %v655 = vadd.f32 %v639, %v218
      %v656 = vadd.f32 %v640, %v218
      %v657 = vadd.f32 %v641, %v218
      %v658 = vadd.f32 %v642, %v218
      %v659 = vadd.f32 %v643, %v218
      %v660 = vadd.f32 %v644, %v218
      %v661 = vadd.f32 %v645, %v218
      %v662 = vadd.f32 %v646, %v218
      %v663 = vadd.f32 %v647, %v218
      %v664 = vadd.f32 %v648, %v218
      %v665 = vadd.f32 %v649, %v218
      %v666 = vadd.f32 %v650, %v218
      %v667 = vadd.f32 %v651, %v218
      %v668 = vmax.f32 %v652, 0.0
      %v669 = vmax.f32 %v653, 0.0
      %v670 = vmax.f32 %v654, 0.0
      %v671 = vmax.f32 %v655, 0.0
      %v672 = vmax.f32 %v656, 0.0
      %v673 = vmax.f32 %v657, 0.0
      %v674 = vmax.f32 %v658, 0.0
      %v675 = vmax.f32 %v659, 0.0
      %v676 = vmax.f32 %v660, 0.0
      %v677 = vmax.f32 %v661, 0.0
      %v678 = vmax.f32 %v662, 0.0
      %v679 = vmax.f32 %v663, 0.0
      %v680 = vmax.f32 %v664, 0.0
      %v681 = vmax.f32 %v665, 0.0
      %v682 = vmax.f32 %v666, 0.0
      %v683 = vmax.f32 %v667, 0.0
      %v684 = vpack.c.bf16 %v669, %v668
      %v685 = vpack.c.bf16 %v671, %v670
      %v686 = vpack.c.bf16 %v673, %v672
      %v687 = vpack.c.bf16 %v675, %v674
      %v688 = vpack.c.bf16 %v677, %v676
      %v689 = vpack.c.bf16 %v679, %v678
      %v690 = vpack.c.bf16 %v681, %v680
      %v691 = vpack.c.bf16 %v683, %v682
      %v700 = vunpack.c.l.b16 %v684
      %v701 = vunpack.c.h.b16 %v684
      %v702 = vunpack.c.l.b16 %v685
      %v703 = vunpack.c.h.b16 %v685
      %v704 = vunpack.c.l.b16 %v686
      %v705 = vunpack.c.h.b16 %v686
      %v706 = vunpack.c.l.b16 %v687
      %v707 = vunpack.c.h.b16 %v687
      %v708 = vunpack.c.l.b16 %v688
      %v709 = vunpack.c.h.b16 %v688
      %v710 = vunpack.c.l.b16 %v689
      %v711 = vunpack.c.h.b16 %v689
      %v712 = vunpack.c.l.b16 %v690
      %v713 = vunpack.c.h.b16 %v690
      %v714 = vunpack.c.l.b16 %v691
      %v715 = vunpack.c.h.b16 %v691
      %v716 = vpack.c.b16 %v700, %v700
      %v717 = vpack.c.b16 %v701, %v701
      %v718 = vpack.c.b16 %v702, %v702
      %v719 = vpack.c.b16 %v703, %v703
      %v720 = vpack.c.b16 %v704, %v704
      %v721 = vpack.c.b16 %v705, %v705
      %v722 = vpack.c.b16 %v706, %v706
      %v723 = vpack.c.b16 %v707, %v707
      %v724 = vpack.c.b16 %v708, %v708
      %v725 = vpack.c.b16 %v709, %v709
      %v726 = vpack.c.b16 %v710, %v710
      %v727 = vpack.c.b16 %v711, %v711
      %v728 = vpack.c.b16 %v712, %v712
      %v729 = vpack.c.b16 %v713, %v713
      %v730 = vpack.c.b16 %v714, %v714
      %v731 = vpack.c.b16 %v715, %v715
      %748 = vst [vmem:[%s172 + $0xc0] sm:$0xf] %v716
      %749 = vst [vmem:[%s172 + $0xc4] sm:$0xf] %v717
      %750 = vst [vmem:[%s172 + $0xc8] sm:$0xf] %v718
      %751 = vst [vmem:[%s172 + $0xcc] sm:$0xf] %v719
      %752 = vst [vmem:[%s172 + $0xd0] sm:$0xf] %v720
      %753 = vst [vmem:[%s172 + $0xd4] sm:$0xf] %v721
      %754 = vst [vmem:[%s172 + $0xd8] sm:$0xf] %v722
      %755 = vst [vmem:[%s172 + $0xdc] sm:$0xf] %v723
      %756 = vst [vmem:[%s172 + $0xe0] sm:$0xf] %v724
      %757 = vst [vmem:[%s172 + $0xe4] sm:$0xf] %v725
      %758 = vst [vmem:[%s172 + $0xe8] sm:$0xf] %v726
      %759 = vst [vmem:[%s172 + $0xec] sm:$0xf] %v727
      %760 = vst [vmem:[%s172 + $0xf0] sm:$0xf] %v728
      %761 = vst [vmem:[%s172 + $0xf4] sm:$0xf] %v729
      %762 = vst [vmem:[%s172 + $0xf8] sm:$0xf] %v730
      %763 = vst [vmem:[%s172 + $0xfc] sm:$0xf] %v731
      %s764 = smul.u32 64, %s14
      %p765 = scmp.lt.s32.totalorder %s764, 127
      %s766 = scalar_select %p765, %s764, 127
      %s767 = smul.addr %s766, 4
      %s768 = scalar_lea.vmem %s3, %s767
      // Predicated region
      $region33: #{bottleneck_forward.7} parent=31 // pred_check
        %p769 = pneg %p100
      $region34: #{bottleneck_forward.7} parent=31 // pred_check_branch
        %771 = sbr.rel (%p769) target = $region36
      $region35: #{bottleneck_forward.7} parent=31 // pred_region
        %s772 = smul.u32 64, %s14
      $region36: #{bottleneck_forward.7} parent=31 // pred_fallthru
        _
    $region32: #{bottleneck_forward.7} parent=5 // pred_fallthru
      _
    %p773 = scmp.le.s32.totalorder 2, %s9
    // Predicated region
    $region37: #{bottleneck_forward.7} parent=5 // pred_check
      %p774 = pneg %p773
    $region38: #{bottleneck_forward.7} parent=5 // pred_check_branch
      %776 = sbr.rel (%p774) target = $region40
    $region39: #{bottleneck_forward.7} parent=5 // pred_region
      %s777 = ssub.s32 %s9, 2
      // Predicated region
      $region41: #{bottleneck_forward.7} parent=39 // pred_check
        %p778 = pneg %p106
      $region42: #{bottleneck_forward.7} parent=39 // pred_check_branch
        %780 = sbr.rel (%p778) target = $region44
      $region43: #{bottleneck_forward.7} parent=39 // pred_region
        %s781 = smul.u32 64, %s15
        %p782 = scmp.lt.s32.totalorder %s781, 127
        %s783 = scalar_select %p782, %s781, 127
        %s784 = smul.addr %s783, 4
        %s785 = scalar_lea.vmem %s3, %s784
      $region44: #{bottleneck_forward.7} parent=39 // pred_fallthru
        _
    $region40: #{bottleneck_forward.7} parent=5 // pred_fallthru
      _
  $region6: #{bottleneck_forward.7} parent=0 // loop_footer
    %s13 = sadd.s32 1, %s9
  $region7: #{bottleneck_forward.7} parent=0 // loop_footer_branch
    %8 = sbr.rel target = $region3
  $region8: #{bottleneck_forward.7} parent=0 // loop_exit
    _

// kernel: bottleneck_forward.6
$region0: #{bottleneck_forward.6}
  #allocation0 [shape = 'u32[]', space=smem, size = 0x4, offset = 0x4, fixed_abs, tag = 'smem constant byte address 0x4 - core index']
  #allocation1 [shape = 'u32[144,128]{1,0:T(1,128)}', space=vmem, size = 0x12000, scoped, tag = 'internal scratch']
  %s0 = inlined_call_operand.vmem [shape: bf16[1024,128], index: 0, kind: input, shape index: {}]
  %s1 = inlined_call_operand.vmem [shape: bf16[128,128], index: 1, kind: input, shape index: {}]
  %s2 = inlined_call_operand.vmem [shape: f32[1024,128], index: 2, kind: output, shape index: {0}]
  %s3 = inlined_call_operand.vmem [shape: f32[1,128], index: 3, kind: output, shape index: {1}]
  %s4 = inlined_call_operand.vmem [shape: f32[1,128], index: 4, kind: output, shape index: {2}]
  %5 = xla_tuple %s2, %s3, %s4
  %s6 = sld [smem:[#allocation0]]
  $region61: #{bottleneck_forward.6} parent=0
    _
  %s8 = ssub.s32 1, %s6
  %s9 = scalar_select 0, %s8, %s6
  loop: start=0, step=1, limit=4
  $region2: #{bottleneck_forward.6} parent=0 // loop_pre_header
    _
  $region3: #{bottleneck_forward.6} parent=0 // loop_header
    %s11 = sphi 0, %s15
    %p12 = scmp.ge.s32.totalorder %s11, 4
    %s21 = sphi 0, %s23
    %s24 = sphi 0, %s21
    %s25 = sphi 0, %s24
    %s41 = sphi 0, %s25
    %s45 = sphi 0, %s45
    %s47 = sphi 0, %s45
    %s48 = sphi 0, %s47
    %s62 = sphi 0, %s48
    %s68 = sphi 0, %s70
    %s71 = sphi 0, %s68
    %s72 = sphi 0, %s71
    %s88 = sphi 0, %s72
    %s92 = sphi 0, %s92
    %s94 = sphi 0, %s92
    %s95 = sphi 0, %s94
    %s109 = sphi 0, %s95
    %s113 = sphi 0, %s113
    %s115 = sphi 0, %s113
    %s116 = sphi 0, %s115
    %s130 = sphi 0, %s116
  $region4: #{bottleneck_forward.6} parent=0 // loop_header_branch
    %14 = sbr.rel (%p12) target = $region8
  $region5: #{bottleneck_forward.6} parent=0 // loop_body
    %s16 = ssub.s32 %s11, 1
    %s17 = ssub.s32 %s11, 2
    %s18 = sadd.s32 %s11, 1
    %s19 = ssub.s32 %s11, %s18
    %p20 = scmp.eq.s32.totalorder %s19, 0
    %s22 = sadd.s32 %s21, 1
    %s23 = scalar_select %p20, %s21, %s22
    %p26 = pneg %p20
    %p27 = scmp.eq.s32.totalorder %s11, 1
    %p28 = por %p26, %p27
    %p29 = scmp.ne.s32.totalorder %s21, %s24
    %p30 = scmp.eq.s32.totalorder %s11, 0
    %p31 = por %p29, %p30
    %p32 = scmp.ne.s32.totalorder %s21, %s24
    %p33 = scmp.eq.s32.totalorder %s16, 1
    %p34 = por %p32, %p33
    %p35 = scmp.ne.s32.totalorder %s24, %s25
    %p36 = scmp.eq.s32.totalorder %s16, 0
    %p37 = por %p35, %p36
    %p38 = scmp.ne.s32.totalorder %s24, %s25
    %p39 = scmp.eq.s32.totalorder %s17, 1
    %p40 = por %p38, %p39
    %p42 = scmp.ne.s32.totalorder %s25, %s41
    %p43 = scmp.eq.s32.totalorder %s17, 0
    %p44 = por %p42, %p43
    %s46 = sadd.s32 %s45, 1
    %p49 = scmp.eq.s32.totalorder %s11, 1
    %p50 = scmp.ne.s32.totalorder %s45, %s47
    %p51 = scmp.eq.s32.totalorder %s11, 0
    %p52 = por %p50, %p51
    %p53 = scmp.ne.s32.totalorder %s45, %s47
    %p54 = scmp.eq.s32.totalorder %s16, 1
    %p55 = por %p53, %p54
    %p56 = scmp.ne.s32.totalorder %s47, %s48
    %p57 = scmp.eq.s32.totalorder %s16, 0
    %p58 = por %p56, %p57
    %p59 = scmp.ne.s32.totalorder %s47, %s48
    %p60 = scmp.eq.s32.totalorder %s17, 1
    %p61 = por %p59, %p60
    %p63 = scmp.ne.s32.totalorder %s48, %s62
    %p64 = scmp.eq.s32.totalorder %s17, 0
    %p65 = por %p63, %p64
    %s66 = ssub.s32 %s11, %s18
    %p67 = scmp.eq.s32.totalorder %s66, 0
    %s69 = sadd.s32 %s68, 1
    %s70 = scalar_select %p67, %s68, %s69
    %p73 = pneg %p67
    %p74 = scmp.eq.s32.totalorder %s11, 1
    %p75 = por %p73, %p74
    %p76 = scmp.ne.s32.totalorder %s68, %s71
    %p77 = scmp.eq.s32.totalorder %s11, 0
    %p78 = por %p76, %p77
    %p79 = scmp.ne.s32.totalorder %s68, %s71
    %p80 = scmp.eq.s32.totalorder %s16, 1
    %p81 = por %p79, %p80
    %p82 = scmp.ne.s32.totalorder %s71, %s72
    %p83 = scmp.eq.s32.totalorder %s16, 0
    %p84 = por %p82, %p83
    %p85 = scmp.ne.s32.totalorder %s71, %s72
    %p86 = scmp.eq.s32.totalorder %s17, 1
    %p87 = por %p85, %p86
    %p89 = scmp.ne.s32.totalorder %s72, %s88
    %p90 = scmp.eq.s32.totalorder %s17, 0
    %p91 = por %p89, %p90
    %s93 = sadd.s32 %s92, 1
    %p96 = scmp.eq.s32.totalorder %s11, 1
    %p97 = scmp.ne.s32.totalorder %s92, %s94
    %p98 = scmp.eq.s32.totalorder %s11, 0
    %p99 = por %p97, %p98
    %p100 = scmp.ne.s32.totalorder %s92, %s94
    %p101 = scmp.eq.s32.totalorder %s16, 1
    %p102 = por %p100, %p101
    %p103 = scmp.ne.s32.totalorder %s94, %s95
    %p104 = scmp.eq.s32.totalorder %s16, 0
    %p105 = por %p103, %p104
    %p106 = scmp.ne.s32.totalorder %s94, %s95
    %p107 = scmp.eq.s32.totalorder %s17, 1
    %p108 = por %p106, %p107
    %p110 = scmp.ne.s32.totalorder %s95, %s109
    %p111 = scmp.eq.s32.totalorder %s17, 0
    %p112 = por %p110, %p111
    %s114 = sadd.s32 %s113, 1
    %p117 = scmp.eq.s32.totalorder %s11, 1
    %p118 = scmp.ne.s32.totalorder %s113, %s115
    %p119 = scmp.eq.s32.totalorder %s11, 0
    %p120 = por %p118, %p119
    %p121 = scmp.ne.s32.totalorder %s113, %s115
    %p122 = scmp.eq.s32.totalorder %s16, 1
    %p123 = por %p121, %p122
    %p124 = scmp.ne.s32.totalorder %s115, %s116
    %p125 = scmp.eq.s32.totalorder %s16, 0
    %p126 = por %p124, %p125
    %p127 = scmp.ne.s32.totalorder %s115, %s116
    %p128 = scmp.eq.s32.totalorder %s17, 1
    %p129 = por %p127, %p128
    %p131 = scmp.ne.s32.totalorder %s116, %s130
    %p132 = scmp.eq.s32.totalorder %s17, 0
    %p133 = por %p131, %p132
    %p134 = scmp.le.s32.totalorder 1, %s11
    %p135 = scmp.lt.s32.totalorder %s11, 3
    %p136 = pnand %p134, %p135
    %p137 = pneg %p136
    // Predicated region
    $region9: #{bottleneck_forward.6} parent=5 // pred_check
      _
    $region10: #{bottleneck_forward.6} parent=5 // pred_check_branch
      %139 = sbr.rel (%p136) target = $region12
    $region11: #{bottleneck_forward.6} parent=5 // pred_region
      %s140 = ssub.s32 %s11, 1
      // Predicated region
      $region13: #{bottleneck_forward.6} parent=11 // pred_check
        %p141 = pneg %p58
      $region14: #{bottleneck_forward.6} parent=11 // pred_check_branch
        %143 = sbr.rel (%p141) target = $region16
      $region15: #{bottleneck_forward.6} parent=11 // pred_region
        _
      $region16: #{bottleneck_forward.6} parent=11 // pred_fallthru
        _
    $region12: #{bottleneck_forward.6} parent=5 // pred_fallthru
      _
    %p144 = scmp.lt.s32.totalorder %s11, 2
    // Predicated region
    $region17: #{bottleneck_forward.6} parent=5 // pred_check
      %p145 = pneg %p144
    $region18: #{bottleneck_forward.6} parent=5 // pred_check_branch
      %147 = sbr.rel (%p145) target = $region20
    $region19: #{bottleneck_forward.6} parent=5 // pred_region
      // Predicated region
      $region21: #{bottleneck_forward.6} parent=19 // pred_check
        %p148 = pneg %p31
      $region22: #{bottleneck_forward.6} parent=19 // pred_check_branch
        %150 = sbr.rel (%p148) target = $region24
      $region23: #{bottleneck_forward.6} parent=19 // pred_region
        %s151 = smul.u32 64, %s11
        %p152 = scmp.lt.s32.totalorder %s151, 127
        %s153 = scalar_select %p152, %s151, 127
        %s154 = smul.addr %s153, 4
        %s155 = scalar_lea.vmem %s0, %s154
        %s156 = smul.u32 64, %s11
      $region24: #{bottleneck_forward.6} parent=19 // pred_fallthru
        _
    $region20: #{bottleneck_forward.6} parent=5 // pred_fallthru
      _
    %p157 = scmp.le.s32.totalorder 1, %s11
    %p158 = scmp.lt.s32.totalorder %s11, 3
    %p159 = pnand %p157, %p158
    %p160 = pneg %p159
    // Predicated region
    $region25: #{bottleneck_forward.6} parent=5 // pred_check
      _
    $region26: #{bottleneck_forward.6} parent=5 // pred_check_branch
      %162 = sbr.rel (%p159) target = $region28
    $region27: #{bottleneck_forward.6} parent=5 // pred_region
      %s163 = ssub.s32 %s11, 1
      %s164 = smul.u32 64, %s16
      %p165 = scmp.lt.s32.totalorder %s164, 127
      %s166 = scalar_select %p165, %s164, 127
      %s167 = smul.addr %s166, 4
      %s168 = scalar_lea.vmem %s0, %s167
      %p169 = pneg %p37
      %p170 = pneg %p34
      %p171 = pneg %p58
      %p172 = pneg %p55
      %p173 = pneg %p84
      %p174 = pneg %p81
      %s175 = smul.u32 64, %s16
      %p176 = scmp.lt.s32.totalorder %s175, 127
      %s177 = scalar_select %p176, %s175, 127
      %s178 = smul.addr %s177, 8
      %s179 = scalar_lea.vmem %s2, %s178
      %p180 = pneg %p105
      %p181 = pneg %p102
      %p182 = pneg %p126
      %p183 = pneg %p123
      %s184 = smul.u32 64, %s16
      %p185 = scmp.lt.s32.totalorder %s184, 127
      %s186 = scalar_select %p185, %s184, 127
      %s187 = smul.addr %s186, 4
      %s188 = scalar_lea.vmem %s0, %s187
      %s189 = smul.u32 64, %s16
      %s190 = smul.u32 64, %s16
      %p191 = scmp.lt.s32.totalorder %s190, 127
      %s192 = scalar_select %p191, %s190, 127
      %s193 = smul.addr %s192, 8
      %s194 = scalar_lea.vmem %s2, %s193
      %s195 = smul.u32 64, %s16
      %p197 = scmp.eq.s32.totalorder %s16, 0
      // Predicated region
      $region29: #{bottleneck_forward.6} parent=27 // pred_check
        %p198 = pneg %p197
      $region30: #{bottleneck_forward.6} parent=27 // pred_check_branch
        %200 = sbr.rel (%p198) target = $region32
      $region31: #{bottleneck_forward.6} parent=27 // pred_region
        %201 = vst [vmem:[%s3] sm:$0x1] 0.0
        %202 = vst [vmem:[%s4] sm:$0x1] 0.0
      $region32: #{bottleneck_forward.6} parent=27 // pred_fallthru
        _
      %v203 = vld [vmem:[%s1] sm:$0xf]
      %v204 = vld [vmem:[%s1 + $0x4] sm:$0xf]
      %v205 = vld [vmem:[%s1 + $0x8] sm:$0xf]
      %v206 = vld [vmem:[%s1 + $0xc] sm:$0xf]
      %v207 = vld [vmem:[%s1 + $0x10] sm:$0xf]
      %v208 = vld [vmem:[%s1 + $0x14] sm:$0xf]
      %v209 = vld [vmem:[%s1 + $0x18] sm:$0xf]
      %v210 = vld [vmem:[%s1 + $0x1c] sm:$0xf]
      %v211 = vld [vmem:[%s1 + $0x20] sm:$0xf]
      %v212 = vld [vmem:[%s1 + $0x24] sm:$0xf]
      %v213 = vld [vmem:[%s1 + $0x28] sm:$0xf]
      %v214 = vld [vmem:[%s1 + $0x2c] sm:$0xf]
      %v215 = vld [vmem:[%s1 + $0x30] sm:$0xf]
      %v216 = vld [vmem:[%s1 + $0x34] sm:$0xf]
      %v217 = vld [vmem:[%s1 + $0x38] sm:$0xf]
      %v218 = vld [vmem:[%s1 + $0x3c] sm:$0xf]
      %v219 = vld [vmem:[%s188] sm:$0xf]
      %v220 = vld [vmem:[%s188 + $0x4] sm:$0xf]
      %v221 = vld [vmem:[%s188 + $0x8] sm:$0xf]
      %v222 = vld [vmem:[%s188 + $0xc] sm:$0xf]
      %v223 = vld [vmem:[%s188 + $0x10] sm:$0xf]
      %v224 = vld [vmem:[%s188 + $0x14] sm:$0xf]
      %v225 = vld [vmem:[%s188 + $0x18] sm:$0xf]
      %v226 = vld [vmem:[%s188 + $0x1c] sm:$0xf]
      %v227 = vld [vmem:[%s188 + $0x20] sm:$0xf]
      %v228 = vld [vmem:[%s188 + $0x24] sm:$0xf]
      %v229 = vld [vmem:[%s188 + $0x28] sm:$0xf]
      %v230 = vld [vmem:[%s188 + $0x2c] sm:$0xf]
      %v231 = vld [vmem:[%s188 + $0x30] sm:$0xf]
      %v232 = vld [vmem:[%s188 + $0x34] sm:$0xf]
      %v233 = vld [vmem:[%s188 + $0x38] sm:$0xf]
      %v234 = vld [vmem:[%s188 + $0x3c] sm:$0xf]
      %v251 = vunpack.c.l.b16 %v219
      %v252 = vunpack.c.l.b16 %v220
      %v253 = vunpack.c.l.b16 %v221
      %v254 = vunpack.c.l.b16 %v222
      %v255 = vunpack.c.l.b16 %v223
      %v256 = vunpack.c.l.b16 %v224
      %v257 = vunpack.c.l.b16 %v225
      %v258 = vunpack.c.l.b16 %v226
      %v259 = vunpack.c.l.b16 %v227
      %v260 = vunpack.c.l.b16 %v228
      %v261 = vunpack.c.l.b16 %v229
      %v262 = vunpack.c.l.b16 %v230
      %v263 = vunpack.c.l.b16 %v231
      %v264 = vunpack.c.l.b16 %v232
      %v265 = vunpack.c.l.b16 %v233
      %v266 = vunpack.c.l.b16 %v234
      %v267 = vpack.c.b16 %v252, %v251
      %v268 = vpack.c.b16 %v254, %v253
      %v269 = vpack.c.b16 %v256, %v255
      %v270 = vpack.c.b16 %v258, %v257
      %v271 = vpack.c.b16 %v260, %v259
      %v272 = vpack.c.b16 %v262, %v261
      %v273 = vpack.c.b16 %v264, %v263
      %v274 = vpack.c.b16 %v266, %v265
      %v299 = vunpack.c.l.b16 %v203
      %v300 = vunpack.c.l.b16 %v204
      %v301 = vunpack.c.l.b16 %v205
      %v302 = vunpack.c.l.b16 %v206
      %v303 = vunpack.c.l.b16 %v207
      %v304 = vunpack.c.l.b16 %v208
      %v305 = vunpack.c.l.b16 %v209
      %v306 = vunpack.c.l.b16 %v210
      %v307 = vunpack.c.l.b16 %v211
      %v308 = vunpack.c.l.b16 %v212
      %v309 = vunpack.c.l.b16 %v213
      %v310 = vunpack.c.l.b16 %v214
      %v311 = vunpack.c.l.b16 %v215
      %v312 = vunpack.c.l.b16 %v216
      %v313 = vunpack.c.l.b16 %v217
      %v314 = vunpack.c.l.b16 %v218
      %v315 = vpack.c.b16 %v300, %v299
      %v316 = vpack.c.b16 %v302, %v301
      %v317 = vpack.c.b16 %v304, %v303
      %v318 = vpack.c.b16 %v306, %v305
      %v319 = vpack.c.b16 %v308, %v307
      %v320 = vpack.c.b16 %v310, %v309
      %v321 = vpack.c.b16 %v312, %v311
      %v322 = vpack.c.b16 %v314, %v313
      %331 = vmatprep.subr.bf16.mxu0 0
      %332 = vmatpush1.bf16.msra.mxu0 %v315
      %333 = vmatprep.subr.bf16.mxu0 0
      %334 = vmatpush1.bf16.msra.mxu0 %v316
      %335 = vmatprep.subr.bf16.mxu0 0
      %336 = vmatpush1.bf16.msra.mxu0 %v317
      %337 = vmatprep.subr.bf16.mxu0 0
      %338 = vmatpush1.bf16.msra.mxu0 %v318
      %339 = vmatprep.subr.bf16.mxu0 0
      %340 = vmatpush1.bf16.msra.mxu0 %v319
      %341 = vmatprep.subr.bf16.mxu0 0
      %342 = vmatpush1.bf16.msra.mxu0 %v320
      %343 = vmatprep.subr.bf16.mxu0 0
      %344 = vmatpush1.bf16.msra.mxu0 %v321
      %345 = vmatprep.subr.bf16.mxu0 0
      %346 = vmatpush1.bf16.msra.mxu0 %v322
      %347 = vmatprep.subr.bf16.mxu0 0
      %348 = vmatpush1.bf16.msra.mxu0 0
      %349 = vmatprep.subr.bf16.mxu0 0
      %350 = vmatpush1.bf16.msra.mxu0 0
      %351 = vmatprep.subr.bf16.mxu0 0
      %352 = vmatpush1.bf16.msra.mxu0 0
      %353 = vmatprep.subr.bf16.mxu0 0
      %354 = vmatpush1.bf16.msra.mxu0 0
      %355 = vmatprep.subr.bf16.mxu0 0
      %356 = vmatpush1.bf16.msra.mxu0 0
      %357 = vmatprep.subr.bf16.mxu0 0
      %358 = vmatpush1.bf16.msra.mxu0 0
      %359 = vmatprep.subr.bf16.mxu0 0
      %360 = vmatpush1.bf16.msra.mxu0 0
      %361 = vmatprep.subr.bf16.mxu0 0
      %362 = vmatpush1.bf16.msra.mxu0 0
      %363 = vmatprep.mubr.bf16.mxu0 0
      %364 = vmatmul.mubr.bf16.gmra.mrb[0].mxu0 %v267
      %v365 = vpop.f32.mrb[0].mxu0
      %v366 = vadd.f32 0.0, %v365
      %v367 = vpop.f32.mrb[0].mxu0
      %v368 = vpop.f32.mrb[0].mxu0
      %v369 = vadd.f32 0.0, %v368
      %v370 = vpop.f32.mrb[0].mxu0
      %371 = vmatprep.mubr.bf16.mxu0 0
      %372 = vmatmul.mubr.bf16.gmra.mrb[0].mxu0 %v268
      %v373 = vpop.f32.mrb[0].mxu0
      %v374 = vadd.f32 0.0, %v373
      %v375 = vpop.f32.mrb[0].mxu0
      %v376 = vpop.f32.mrb[0].mxu0
      %v377 = vadd.f32 0.0, %v376
      %v378 = vpop.f32.mrb[0].mxu0
      %379 = vmatprep.mubr.bf16.mxu0 0
      %380 = vmatmul.mubr.bf16.gmra.mrb[0].mxu0 %v269
      %v381 = vpop.f32.mrb[0].mxu0
      %v382 = vadd.f32 0.0, %v381
      %v383 = vpop.f32.mrb[0].mxu0
      %v384 = vpop.f32.mrb[0].mxu0
      %v385 = vadd.f32 0.0, %v384
      %v386 = vpop.f32.mrb[0].mxu0
      %387 = vmatprep.mubr.bf16.mxu0 0
      %388 = vmatmul.mubr.bf16.gmra.mrb[0].mxu0 %v270
      %v389 = vpop.f32.mrb[0].mxu0
      %v390 = vadd.f32 0.0, %v389
      %v391 = vpop.f32.mrb[0].mxu0
      %v392 = vpop.f32.mrb[0].mxu0
      %v393 = vadd.f32 0.0, %v392
      %v394 = vpop.f32.mrb[0].mxu0
      %395 = vmatprep.mubr.bf16.mxu0 0
      %396 = vmatmul.mubr.bf16.gmra.mrb[0].mxu0 %v271
      %v397 = vpop.f32.mrb[0].mxu0
      %v398 = vadd.f32 0.0, %v397
      %v399 = vpop.f32.mrb[0].mxu0
      %v400 = vpop.f32.mrb[0].mxu0
      %v401 = vadd.f32 0.0, %v400
      %v402 = vpop.f32.mrb[0].mxu0
      %403 = vmatprep.mubr.bf16.mxu0 0
      %404 = vmatmul.mubr.bf16.gmra.mrb[0].mxu0 %v272
      %v405 = vpop.f32.mrb[0].mxu0
      %v406 = vadd.f32 0.0, %v405
      %v407 = vpop.f32.mrb[0].mxu0
      %v408 = vpop.f32.mrb[0].mxu0
      %v409 = vadd.f32 0.0, %v408
      %v410 = vpop.f32.mrb[0].mxu0
      %411 = vmatprep.mubr.bf16.mxu0 0
      %412 = vmatmul.mubr.bf16.gmra.mrb[0].mxu0 %v273
      %v413 = vpop.f32.mrb[0].mxu0
      %v414 = vadd.f32 0.0, %v413
      %v415 = vpop.f32.mrb[0].mxu0
      %v416 = vpop.f32.mrb[0].mxu0
      %v417 = vadd.f32 0.0, %v416
      %v418 = vpop.f32.mrb[0].mxu0
      %419 = vmatprep.mubr.bf16.mxu0 0
      %420 = vmatmul.mubr.bf16.gmra.mrb[0].mxu0 %v274
      %v421 = vpop.f32.mrb[0].mxu0
      %v422 = vadd.f32 0.0, %v421
      %v423 = vpop.f32.mrb[0].mxu0
      %v424 = vpop.f32.mrb[0].mxu0
      %v425 = vadd.f32 0.0, %v424
      %v426 = vpop.f32.mrb[0].mxu0
      %427 = vdwg.mxu0
      %428 = vst [vmem:[%s194] sm:$0xff] %v366
      %429 = vst [vmem:[%s194 + $0x8] sm:$0xff] %v369
      %430 = vst [vmem:[%s194 + $0x10] sm:$0xff] %v374
      %431 = vst [vmem:[%s194 + $0x18] sm:$0xff] %v377
      %432 = vst [vmem:[%s194 + $0x20] sm:$0xff] %v382
      %433 = vst [vmem:[%s194 + $0x28] sm:$0xff] %v385
      %434 = vst [vmem:[%s194 + $0x30] sm:$0xff] %v390
      %435 = vst [vmem:[%s194 + $0x38] sm:$0xff] %v393
      %436 = vst [vmem:[%s194 + $0x40] sm:$0xff] %v398
      %437 = vst [vmem:[%s194 + $0x48] sm:$0xff] %v401
      %438 = vst [vmem:[%s194 + $0x50] sm:$0xff] %v406
      %439 = vst [vmem:[%s194 + $0x58] sm:$0xff] %v409
      %440 = vst [vmem:[%s194 + $0x60] sm:$0xff] %v414
      %441 = vst [vmem:[%s194 + $0x68] sm:$0xff] %v417
      %442 = vst [vmem:[%s194 + $0x70] sm:$0xff] %v422
      %443 = vst [vmem:[%s194 + $0x78] sm:$0xff] %v425
      %v444 = vmul.f32 %v366, %v366
      %v445 = vmul.f32 %v369, %v369
      %v446 = vmul.f32 %v374, %v374
      %v447 = vmul.f32 %v377, %v377
      %v448 = vmul.f32 %v382, %v382
      %v449 = vmul.f32 %v385, %v385
      %v450 = vmul.f32 %v390, %v390
      %v451 = vmul.f32 %v393, %v393
      %v452 = vmul.f32 %v398, %v398
      %v453 = vmul.f32 %v401, %v401
      %v454 = vmul.f32 %v406, %v406
      %v455 = vmul.f32 %v409, %v409
      %v456 = vmul.f32 %v414, %v414
      %v457 = vmul.f32 %v417, %v417
      %v458 = vmul.f32 %v422, %v422
      %v459 = vmul.f32 %v425, %v425
      %v460 = vld [vmem:[%s188 + $0x40] sm:$0xf]
      %v461 = vld [vmem:[%s188 + $0x44] sm:$0xf]
      %v462 = vld [vmem:[%s188 + $0x48] sm:$0xf]
      %v463 = vld [vmem:[%s188 + $0x4c] sm:$0xf]
      %v464 = vld [vmem:[%s188 + $0x50] sm:$0xf]
      %v465 = vld [vmem:[%s188 + $0x54] sm:$0xf]
      %v466 = vld [vmem:[%s188 + $0x58] sm:$0xf]
      %v467 = vld [vmem:[%s188 + $0x5c] sm:$0xf]
      %v468 = vld [vmem:[%s188 + $0x60] sm:$0xf]
      %v469 = vld [vmem:[%s188 + $0x64] sm:$0xf]
      %v470 = vld [vmem:[%s188 + $0x68] sm:$0xf]
      %v471 = vld [vmem:[%s188 + $0x6c] sm:$0xf]
      %v472 = vld [vmem:[%s188 + $0x70] sm:$0xf]
      %v473 = vld [vmem:[%s188 + $0x74] sm:$0xf]
      %v474 = vld [vmem:[%s188 + $0x78] sm:$0xf]
      %v475 = vld [vmem:[%s188 + $0x7c] sm:$0xf]
      %v492 = vunpack.c.l.b16 %v460
      %v493 = vunpack.c.l.b16 %v461
      %v494 = vunpack.c.l.b16 %v462
      %v495 = vunpack.c.l.b16 %v463
      %v496 = vunpack.c.l.b16 %v464
      %v497 = vunpack.c.l.b16 %v465
      %v498 = vunpack.c.l.b16 %v466
      %v499 = vunpack.c.l.b16 %v467
      %v500 = vunpack.c.l.b16 %v468
      %v501 = vunpack.c.l.b16 %v469
      %v502 = vunpack.c.l.b16 %v470
      %v503 = vunpack.c.l.b16 %v471
      %v504 = vunpack.c.l.b16 %v472
      %v505 = vunpack.c.l.b16 %v473
      %v506 = vunpack.c.l.b16 %v474
      %v507 = vunpack.c.l.b16 %v475
      %v508 = vpack.c.b16 %v493, %v492
      %v509 = vpack.c.b16 %v495, %v494
      %v510 = vpack.c.b16 %v497, %v496
      %v511 = vpack.c.b16 %v499, %v498
      %v512 = vpack.c.b16 %v501, %v500
      %v513 = vpack.c.b16 %v503, %v502
      %v514 = vpack.c.b16 %v505, %v504
      %v515 = vpack.c.b16 %v507, %v506
      %524 = vmatprep.subr.bf16.mxu0 0
      %525 = vmatpush1.bf16.msra.mxu0 %v315
      %526 = vmatprep.subr.bf16.mxu0 0
      %527 = vmatpush1.bf16.msra.mxu0 %v316
      %528 = vmatprep.subr.bf16.mxu0 0
      %529 = vmatpush1.bf16.msra.mxu0 %v317
      %530 = vmatprep.subr.bf16.mxu0 0
      %531 = vmatpush1.bf16.msra.mxu0 %v318
      %532 = vmatprep.subr.bf16.mxu0 0
      %533 = vmatpush1.bf16.msra.mxu0 %v319
      %534 = vmatprep.subr.bf16.mxu0 0
      %535 = vmatpush1.bf16.msra.mxu0 %v320
      %536 = vmatprep.subr.bf16.mxu0 0
      %537 = vmatpush1.bf16.msra.mxu0 %v321
      %538 = vmatprep.subr.bf16.mxu0 0
      %539 = vmatpush1.bf16.msra.mxu0 %v322
      %540 = vmatprep.subr.bf16.mxu0 0
      %541 = vmatpush1.bf16.msra.mxu0 0
      %542 = vmatprep.subr.bf16.mxu0 0
      %543 = vmatpush1.bf16.msra.mxu0 0
      %544 = vmatprep.subr.bf16.mxu0 0
      %545 = vmatpush1.bf16.msra.mxu0 0
      %546 = vmatprep.subr.bf16.mxu0 0
      %547 = vmatpush1.bf16.msra.mxu0 0
      %548 = vmatprep.subr.bf16.mxu0 0
      %549 = vmatpush1.bf16.msra.mxu0 0
      %550 = vmatprep.subr.bf16.mxu0 0
      %551 = vmatpush1.bf16.msra.mxu0 0
      %552 = vmatprep.subr.bf16.mxu0 0
      %553 = vmatpush1.bf16.msra.mxu0 0
      %554 = vmatprep.subr.bf16.mxu0 0
      %555 = vmatpush1.bf16.msra.mxu0 0
      %556 = vmatprep.mubr.bf16.mxu0 0
      %557 = vmatmul.mubr.bf16.gmra.mrb[0].mxu0 %v508
      %v558 = vpop.f32.mrb[0].mxu0
      %v559 = vadd.f32 0.0, %v558
      %v560 = vpop.f32.mrb[0].mxu0
      %v561 = vpop.f32.mrb[0].mxu0
      %v562 = vadd.f32 0.0, %v561
      %v563 = vpop.f32.mrb[0].mxu0
      %564 = vmatprep.mubr.bf16.mxu0 0
      %565 = vmatmul.mubr.bf16.gmra.mrb[0].mxu0 %v509
      %v566 = vpop.f32.mrb[0].mxu0
      %v567 = vadd.f32 0.0, %v566
      %v568 = vpop.f32.mrb[0].mxu0
      %v569 = vpop.f32.mrb[0].mxu0
      %v570 = vadd.f32 0.0, %v569
      %v571 = vpop.f32.mrb[0].mxu0
      %572 = vmatprep.mubr.bf16.mxu0 0
      %573 = vmatmul.mubr.bf16.gmra.mrb[0].mxu0 %v510
      %v574 = vpop.f32.mrb[0].mxu0
      %v575 = vadd.f32 0.0, %v574
      %v576 = vpop.f32.mrb[0].mxu0
      %v577 = vpop.f32.mrb[0].mxu0
      %v578 = vadd.f32 0.0, %v577
      %v579 = vpop.f32.mrb[0].mxu0
      %580 = vmatprep.mubr.bf16.mxu0 0
      %581 = vmatmul.mubr.bf16.gmra.mrb[0].mxu0 %v511
      %v582 = vpop.f32.mrb[0].mxu0
      %v583 = vadd.f32 0.0, %v582
      %v584 = vpop.f32.mrb[0].mxu0
      %v585 = vpop.f32.mrb[0].mxu0
      %v586 = vadd.f32 0.0, %v585
      %v587 = vpop.f32.mrb[0].mxu0
      %588 = vmatprep.mubr.bf16.mxu0 0
      %589 = vmatmul.mubr.bf16.gmra.mrb[0].mxu0 %v512
      %v590 = vpop.f32.mrb[0].mxu0
      %v591 = vadd.f32 0.0, %v590
      %v592 = vpop.f32.mrb[0].mxu0
      %v593 = vpop.f32.mrb[0].mxu0
      %v594 = vadd.f32 0.0, %v593
      %v595 = vpop.f32.mrb[0].mxu0
      %596 = vmatprep.mubr.bf16.mxu0 0
      %597 = vmatmul.mubr.bf16.gmra.mrb[0].mxu0 %v513
      %v598 = vpop.f32.mrb[0].mxu0
      %v599 = vadd.f32 0.0, %v598
      %v600 = vpop.f32.mrb[0].mxu0
      %v601 = vpop.f32.mrb[0].mxu0
      %v602 = vadd.f32 0.0, %v601
      %v603 = vpop.f32.mrb[0].mxu0
      %604 = vmatprep.mubr.bf16.mxu0 0
      %605 = vmatmul.mubr.bf16.gmra.mrb[0].mxu0 %v514
      %v606 = vpop.f32.mrb[0].mxu0
      %v607 = vadd.f32 0.0, %v606
      %v608 = vpop.f32.mrb[0].mxu0
      %v609 = vpop.f32.mrb[0].mxu0
      %v610 = vadd.f32 0.0, %v609
      %v611 = vpop.f32.mrb[0].mxu0
      %612 = vmatprep.mubr.bf16.mxu0 0
      %613 = vmatmul.mubr.bf16.gmra.mrb[0].mxu0 %v515
      %v614 = vpop.f32.mrb[0].mxu0
      %v615 = vadd.f32 0.0, %v614
      %v616 = vpop.f32.mrb[0].mxu0
      %v617 = vpop.f32.mrb[0].mxu0
      %v618 = vadd.f32 0.0, %v617
      %v619 = vpop.f32.mrb[0].mxu0
      %620 = vdwg.mxu0
      %621 = vst [vmem:[%s194 + $0x80] sm:$0xff] %v559
      %622 = vst [vmem:[%s194 + $0x88] sm:$0xff] %v562
      %623 = vst [vmem:[%s194 + $0x90] sm:$0xff] %v567
      %624 = vst [vmem:[%s194 + $0x98] sm:$0xff] %v570
      %625 = vst [vmem:[%s194 + $0xa0] sm:$0xff] %v575
      %626 = vst [vmem:[%s194 + $0xa8] sm:$0xff] %v578
      %627 = vst [vmem:[%s194 + $0xb0] sm:$0xff] %v583
      %628 = vst [vmem:[%s194 + $0xb8] sm:$0xff] %v586
      %629 = vst [vmem:[%s194 + $0xc0] sm:$0xff] %v591
      %630 = vst [vmem:[%s194 + $0xc8] sm:$0xff] %v594
      %631 = vst [vmem:[%s194 + $0xd0] sm:$0xff] %v599
      %632 = vst [vmem:[%s194 + $0xd8] sm:$0xff] %v602
      %633 = vst [vmem:[%s194 + $0xe0] sm:$0xff] %v607
      %634 = vst [vmem:[%s194 + $0xe8] sm:$0xff] %v610
      %635 = vst [vmem:[%s194 + $0xf0] sm:$0xff] %v615
      %636 = vst [vmem:[%s194 + $0xf8] sm:$0xff] %v618
      %637 = vmatprep.subr.mxu0 0.0
      %638 = vmatpush1.msra.mxu0 %v559
      %639 = vmatprep.subr.mxu0 0.0
      %640 = vmatpush1.msra.mxu0 %v562
      %641 = vmatprep.subr.mxu0 0.0
      %642 = vmatpush1.msra.mxu0 %v567
      %643 = vmatprep.subr.mxu0 0.0
      %644 = vmatpush1.msra.mxu0 %v570
      %645 = vmatprep.subr.mxu0 0.0
      %646 = vmatpush1.msra.mxu0 %v575
      %647 = vmatprep.subr.mxu0 0.0
      %648 = vmatpush1.msra.mxu0 %v578
      %649 = vmatprep.subr.mxu0 0.0
      %650 = vmatpush1.msra.mxu0 %v583
      %651 = vmatprep.subr.mxu0 0.0
      %652 = vmatpush1.msra.mxu0 %v586
      %653 = vmatprep.subr.mxu0 0.0
      %654 = vmatpush1.msra.mxu0 %v591
      %655 = vmatprep.subr.mxu0 0.0
      %656 = vmatpush1.msra.mxu0 %v594
      %657 = vmatprep.subr.mxu0 0.0
      %658 = vmatpush1.msra.mxu0 %v599
      %659 = vmatprep.subr.mxu0 0.0
      %660 = vmatpush1.msra.mxu0 %v602
      %661 = vmatprep.subr.mxu0 0.0
      %662 = vmatpush1.msra.mxu0 %v607
      %663 = vmatprep.subr.mxu0 0.0
      %664 = vmatpush1.msra.mxu0 %v610
      %665 = vmatprep.subr.mxu0 0.0
      %666 = vmatpush1.msra.mxu0 %v615
      %667 = vmatprep.subr.mxu0 0.0
      %668 = vmatpush1.msra.mxu0 %v618
      %669 = vmatprep.subr.mxu0 0.0
      %670 = vmatpush1.msra.mxu0 0.0
      %671 = vmatprep.subr.mxu0 0.0
      %672 = vmatpush1.msra.mxu0 0.0
      %673 = vmatprep.subr.mxu0 0.0
      %674 = vmatpush1.msra.mxu0 0.0
      %675 = vmatprep.subr.mxu0 0.0
      %676 = vmatpush1.msra.mxu0 0.0
      %677 = vmatprep.subr.mxu0 0.0
      %678 = vmatpush1.msra.mxu0 0.0
      %679 = vmatprep.subr.mxu0 0.0
      %680 = vmatpush1.msra.mxu0 0.0
      %681 = vmatprep.subr.mxu0 0.0
      %682 = vmatpush1.msra.mxu0 0.0
      %683 = vmatprep.subr.mxu0 0.0
      %684 = vmatpush1.msra.mxu0 0.0
      %685 = vmatprep.subr.mxu0 0.0
      %686 = vmatpush1.msra.mxu0 0.0
      %687 = vmatprep.subr.mxu0 0.0
      %688 = vmatpush1.msra.mxu0 0.0
      %689 = vmatprep.subr.mxu0 0.0
      %690 = vmatpush1.msra.mxu0 0.0
      %691 = vmatprep.subr.mxu0 0.0
      %692 = vmatpush1.msra.mxu0 0.0
      %693 = vmatprep.subr.mxu0 0.0
      %694 = vmatpush1.msra.mxu0 0.0
      %695 = vmatprep.subr.mxu0 0.0
      %696 = vmatpush1.msra.mxu0 0.0
      %697 = vmatprep.subr.mxu0 0.0
      %698 = vmatpush1.msra.mxu0 0.0
      %699 = vmatprep.subr.mxu0 0.0
      %700 = vmatpush1.msra.mxu0 0.0
      %701 = vmatprep.mubr.f32.mxu0 0.0
      %702 = vmatmul.mubr.f32.gmra.mrb[0].mxu0 1.0
      %v703 = vpop.f32.mrb[0].mxu0
      %v704 = vadd.f32 0.0, %v703
      %v705 = vpop.f32.mrb[0].mxu0
      %706 = vdwg.mxu0
      %707 = vmatprep.subr.mxu0 0.0
      %708 = vmatpush1.msra.mxu0 %v366
      %709 = vmatprep.subr.mxu0 0.0
      %710 = vmatpush1.msra.mxu0 %v369
      %711 = vmatprep.subr.mxu0 0.0
      %712 = vmatpush1.msra.mxu0 %v374
      %713 = vmatprep.subr.mxu0 0.0
      %714 = vmatpush1.msra.mxu0 %v377
      %715 = vmatprep.subr.mxu0 0.0
      %716 = vmatpush1.msra.mxu0 %v382
      %717 = vmatprep.subr.mxu0 0.0
      %718 = vmatpush1.msra.mxu0 %v385
      %719 = vmatprep.subr.mxu0 0.0
      %720 = vmatpush1.msra.mxu0 %v390
      %721 = vmatprep.subr.mxu0 0.0
      %722 = vmatpush1.msra.mxu0 %v393
      %723 = vmatprep.subr.mxu0 0.0
      %724 = vmatpush1.msra.mxu0 %v398
      %725 = vmatprep.subr.mxu0 0.0
      %726 = vmatpush1.msra.mxu0 %v401
      %727 = vmatprep.subr.mxu0 0.0
      %728 = vmatpush1.msra.mxu0 %v406
      %729 = vmatprep.subr.mxu0 0.0
      %730 = vmatpush1.msra.mxu0 %v409
      %731 = vmatprep.subr.mxu0 0.0
      %732 = vmatpush1.msra.mxu0 %v414
      %733 = vmatprep.subr.mxu0 0.0
      %734 = vmatpush1.msra.mxu0 %v417
      %735 = vmatprep.subr.mxu0 0.0
      %736 = vmatpush1.msra.mxu0 %v422
      %737 = vmatprep.subr.mxu0 0.0
      %738 = vmatpush1.msra.mxu0 %v425
      %739 = vmatprep.subr.mxu0 0.0
      %740 = vmatpush1.msra.mxu0 0.0
      %741 = vmatprep.subr.mxu0 0.0
      %742 = vmatpush1.msra.mxu0 0.0
      %743 = vmatprep.subr.mxu0 0.0
      %744 = vmatpush1.msra.mxu0 0.0
      %745 = vmatprep.subr.mxu0 0.0
      %746 = vmatpush1.msra.mxu0 0.0
      %747 = vmatprep.subr.mxu0 0.0
      %748 = vmatpush1.msra.mxu0 0.0
      %749 = vmatprep.subr.mxu0 0.0
      %750 = vmatpush1.msra.mxu0 0.0
      %751 = vmatprep.subr.mxu0 0.0
      %752 = vmatpush1.msra.mxu0 0.0
      %753 = vmatprep.subr.mxu0 0.0
      %754 = vmatpush1.msra.mxu0 0.0
      %755 = vmatprep.subr.mxu0 0.0
      %756 = vmatpush1.msra.mxu0 0.0
      %757 = vmatprep.subr.mxu0 0.0
      %758 = vmatpush1.msra.mxu0 0.0
      %759 = vmatprep.subr.mxu0 0.0
      %760 = vmatpush1.msra.mxu0 0.0
      %761 = vmatprep.subr.mxu0 0.0
      %762 = vmatpush1.msra.mxu0 0.0
      %763 = vmatprep.subr.mxu0 0.0
      %764 = vmatpush1.msra.mxu0 0.0
      %765 = vmatprep.subr.mxu0 0.0
      %766 = vmatpush1.msra.mxu0 0.0
      %767 = vmatprep.subr.mxu0 0.0
      %768 = vmatpush1.msra.mxu0 0.0
      %769 = vmatprep.subr.mxu0 0.0
      %770 = vmatpush1.msra.mxu0 0.0
      %771 = vmatprep.mubr.f32.mxu0 0.0
      %772 = vmatmul.mubr.f32.gmra.mrb[0].mxu0 1.0
      %v773 = vpop.f32.mrb[0].mxu0
      %v774 = vadd.f32 %v704, %v773
      %v775 = vpop.f32.mrb[0].mxu0
      %776 = vdwg.mxu0
      %v777 = vmul.f32 %v559, %v559
      %v778 = vmul.f32 %v562, %v562
      %v779 = vmul.f32 %v567, %v567
      %v780 = vmul.f32 %v570, %v570
      %v781 = vmul.f32 %v575, %v575
      %v782 = vmul.f32 %v578, %v578
      %v783 = vmul.f32 %v583, %v583
      %v784 = vmul.f32 %v586, %v586
      %v785 = vmul.f32 %v591, %v591
      %v786 = vmul.f32 %v594, %v594
      %v787 = vmul.f32 %v599, %v599
      %v788 = vmul.f32 %v602, %v602
      %v789 = vmul.f32 %v607, %v607
      %v790 = vmul.f32 %v610, %v610
      %v791 = vmul.f32 %v615, %v615
      %v792 = vmul.f32 %v618, %v618
      %793 = vmatprep.subr.mxu0 0.0
      %794 = vmatpush1.msra.mxu0 %v777
      %795 = vmatprep.subr.mxu0 0.0
      %796 = vmatpush1.msra.mxu0 %v778
      %797 = vmatprep.subr.mxu0 0.0
      %798 = vmatpush1.msra.mxu0 %v779
      %799 = vmatprep.subr.mxu0 0.0
      %800 = vmatpush1.msra.mxu0 %v780
      %801 = vmatprep.subr.mxu0 0.0
      %802 = vmatpush1.msra.mxu0 %v781
      %803 = vmatprep.subr.mxu0 0.0
      %804 = vmatpush1.msra.mxu0 %v782
      %805 = vmatprep.subr.mxu0 0.0
      %806 = vmatpush1.msra.mxu0 %v783
      %807 = vmatprep.subr.mxu0 0.0
      %808 = vmatpush1.msra.mxu0 %v784
      %809 = vmatprep.subr.mxu0 0.0
      %810 = vmatpush1.msra.mxu0 %v785
      %811 = vmatprep.subr.mxu0 0.0
      %812 = vmatpush1.msra.mxu0 %v786
      %813 = vmatprep.subr.mxu0 0.0
      %814 = vmatpush1.msra.mxu0 %v787
      %815 = vmatprep.subr.mxu0 0.0
      %816 = vmatpush1.msra.mxu0 %v788
      %817 = vmatprep.subr.mxu0 0.0
      %818 = vmatpush1.msra.mxu0 %v789
      %819 = vmatprep.subr.mxu0 0.0
      %820 = vmatpush1.msra.mxu0 %v790
      %821 = vmatprep.subr.mxu0 0.0
      %822 = vmatpush1.msra.mxu0 %v791
      %823 = vmatprep.subr.mxu0 0.0
      %824 = vmatpush1.msra.mxu0 %v792
      %825 = vmatprep.subr.mxu0 0.0
      %826 = vmatpush1.msra.mxu0 0.0
      %827 = vmatprep.subr.mxu0 0.0
      %828 = vmatpush1.msra.mxu0 0.0
      %829 = vmatprep.subr.mxu0 0.0
      %830 = vmatpush1.msra.mxu0 0.0
      %831 = vmatprep.subr.mxu0 0.0
      %832 = vmatpush1.msra.mxu0 0.0
      %833 = vmatprep.subr.mxu0 0.0
      %834 = vmatpush1.msra.mxu0 0.0
      %835 = vmatprep.subr.mxu0 0.0
      %836 = vmatpush1.msra.mxu0 0.0
      %837 = vmatprep.subr.mxu0 0.0
      %838 = vmatpush1.msra.mxu0 0.0
      %839 = vmatprep.subr.mxu0 0.0
      %840 = vmatpush1.msra.mxu0 0.0
      %841 = vmatprep.subr.mxu0 0.0
      %842 = vmatpush1.msra.mxu0 0.0
      %843 = vmatprep.subr.mxu0 0.0
      %844 = vmatpush1.msra.mxu0 0.0
      %845 = vmatprep.subr.mxu0 0.0
      %846 = vmatpush1.msra.mxu0 0.0
      %847 = vmatprep.subr.mxu0 0.0
      %848 = vmatpush1.msra.mxu0 0.0
      %849 = vmatprep.subr.mxu0 0.0
      %850 = vmatpush1.msra.mxu0 0.0
      %851 = vmatprep.subr.mxu0 0.0
      %852 = vmatpush1.msra.mxu0 0.0
      %853 = vmatprep.subr.mxu0 0.0
      %854 = vmatpush1.msra.mxu0 0.0
      %855 = vmatprep.subr.mxu0 0.0
      %856 = vmatpush1.msra.mxu0 0.0
      %857 = vmatprep.mubr.f32.mxu0 0.0
      %858 = vmatmul.mubr.f32.gmra.mrb[0].mxu0 1.0
      %v859 = vpop.f32.mrb[0].mxu0
      %v860 = vadd.f32 0.0, %v859
      %v861 = vpop.f32.mrb[0].mxu0
      %862 = vdwg.mxu0
      %863 = vmatprep.subr.mxu0 0.0
      %864 = vmatpush1.msra.mxu0 %v444
      %865 = vmatprep.subr.mxu0 0.0
      %866 = vmatpush1.msra.mxu0 %v445
      %867 = vmatprep.subr.mxu0 0.0
      %868 = vmatpush1.msra.mxu0 %v446
      %869 = vmatprep.subr.mxu0 0.0
      %870 = vmatpush1.msra.mxu0 %v447
      %871 = vmatprep.subr.mxu0 0.0
      %872 = vmatpush1.msra.mxu0 %v448
      %873 = vmatprep.subr.mxu0 0.0
      %874 = vmatpush1.msra.mxu0 %v449
      %875 = vmatprep.subr.mxu0 0.0
      %876 = vmatpush1.msra.mxu0 %v450
      %877 = vmatprep.subr.mxu0 0.0
      %878 = vmatpush1.msra.mxu0 %v451
      %879 = vmatprep.subr.mxu0 0.0
      %880 = vmatpush1.msra.mxu0 %v452
      %881 = vmatprep.subr.mxu0 0.0
      %882 = vmatpush1.msra.mxu0 %v453
      %883 = vmatprep.subr.mxu0 0.0
      %884 = vmatpush1.msra.mxu0 %v454
      %885 = vmatprep.subr.mxu0 0.0
      %886 = vmatpush1.msra.mxu0 %v455
      %887 = vmatprep.subr.mxu0 0.0
      %888 = vmatpush1.msra.mxu0 %v456
      %889 = vmatprep.subr.mxu0 0.0
      %890 = vmatpush1.msra.mxu0 %v457
      %891 = vmatprep.subr.mxu0 0.0
      %892 = vmatpush1.msra.mxu0 %v458
      %893 = vmatprep.subr.mxu0 0.0
      %894 = vmatpush1.msra.mxu0 %v459
      %895 = vmatprep.subr.mxu0 0.0
      %896 = vmatpush1.msra.mxu0 0.0
      %897 = vmatprep.subr.mxu0 0.0
      %898 = vmatpush1.msra.mxu0 0.0
      %899 = vmatprep.subr.mxu0 0.0
      %900 = vmatpush1.msra.mxu0 0.0
      %901 = vmatprep.subr.mxu0 0.0
      %902 = vmatpush1.msra.mxu0 0.0
      %903 = vmatprep.subr.mxu0 0.0
      %904 = vmatpush1.msra.mxu0 0.0
      %905 = vmatprep.subr.mxu0 0.0
      %906 = vmatpush1.msra.mxu0 0.0
      %907 = vmatprep.subr.mxu0 0.0
      %908 = vmatpush1.msra.mxu0 0.0
      %909 = vmatprep.subr.mxu0 0.0
      %910 = vmatpush1.msra.mxu0 0.0
      %911 = vmatprep.subr.mxu0 0.0
      %912 = vmatpush1.msra.mxu0 0.0
      %913 = vmatprep.subr.mxu0 0.0
      %914 = vmatpush1.msra.mxu0 0.0
      %915 = vmatprep.subr.mxu0 0.0
      %916 = vmatpush1.msra.mxu0 0.0
      %917 = vmatprep.subr.mxu0 0.0
      %918 = vmatpush1.msra.mxu0 0.0
      %919 = vmatprep.subr.mxu0 0.0
      %920 = vmatpush1.msra.mxu0 0.0
      %921 = vmatprep.subr.mxu0 0.0
      %922 = vmatpush1.msra.mxu0 0.0
      %923 = vmatprep.subr.mxu0 0.0
      %924 = vmatpush1.msra.mxu0 0.0
      %925 = vmatprep.subr.mxu0 0.0
      %926 = vmatpush1.msra.mxu0 0.0
      %927 = vmatprep.mubr.f32.mxu0 0.0
      %928 = vmatmul.mubr.f32.gmra.mrb[0].mxu0 1.0
      %v929 = vpop.f32.mrb[0].mxu0
      %v930 = vadd.f32 %v860, %v929
      %v931 = vpop.f32.mrb[0].mxu0
      %932 = vdwg.mxu0
      %v933 = vld [vmem:[%s188 + $0x80] sm:$0xf]
      %v934 = vld [vmem:[%s188 + $0x84] sm:$0xf]
      %v935 = vld [vmem:[%s188 + $0x88] sm:$0xf]
      %v936 = vld [vmem:[%s188 + $0x8c] sm:$0xf]
      %v937 = vld [vmem:[%s188 + $0x90] sm:$0xf]
      %v938 = vld [vmem:[%s188 + $0x94] sm:$0xf]
      %v939 = vld [vmem:[%s188 + $0x98] sm:$0xf]
      %v940 = vld [vmem:[%s188 + $0x9c] sm:$0xf]
      %v941 = vld [vmem:[%s188 + $0xa0] sm:$0xf]
      %v942 = vld [vmem:[%s188 + $0xa4] sm:$0xf]
      %v943 = vld [vmem:[%s188 + $0xa8] sm:$0xf]
      %v944 = vld [vmem:[%s188 + $0xac] sm:$0xf]
      %v945 = vld [vmem:[%s188 + $0xb0] sm:$0xf]
      %v946 = vld [vmem:[%s188 + $0xb4] sm:$0xf]
      %v947 = vld [vmem:[%s188 + $0xb8] sm:$0xf]
      %v948 = vld [vmem:[%s188 + $0xbc] sm:$0xf]
      %v965 = vunpack.c.l.b16 %v933
      %v966 = vunpack.c.l.b16 %v934
      %v967 = vunpack.c.l.b16 %v935
      %v968 = vunpack.c.l.b16 %v936
      %v969 = vunpack.c.l.b16 %v937
      %v970 = vunpack.c.l.b16 %v938
      %v971 = vunpack.c.l.b16 %v939
      %v972 = vunpack.c.l.b16 %v940
      %v973 = vunpack.c.l.b16 %v941
      %v974 = vunpack.c.l.b16 %v942
      %v975 = vunpack.c.l.b16 %v943
      %v976 = vunpack.c.l.b16 %v944
      %v977 = vunpack.c.l.b16 %v945
      %v978 = vunpack.c.l.b16 %v946
      %v979 = vunpack.c.l.b16 %v947
      %v980 = vunpack.c.l.b16 %v948
      %v981 = vpack.c.b16 %v966, %v965
      %v982 = vpack.c.b16 %v968, %v967
      %v983 = vpack.c.b16 %v970, %v969
      %v984 = vpack.c.b16 %v972, %v971
      %v985 = vpack.c.b16 %v974, %v973
      %v986 = vpack.c.b16 %v976, %v975
      %v987 = vpack.c.b16 %v978, %v977
      %v988 = vpack.c.b16 %v980, %v979
      %997 = vmatprep.subr.bf16.mxu0 0
      %998 = vmatpush1.bf16.msra.mxu0 %v315
      %999 = vmatprep.subr.bf16.mxu0 0
      %1000 = vmatpush1.bf16.msra.mxu0 %v316
      %1001 = vmatprep.subr.bf16.mxu0 0
      %1002 = vmatpush1.bf16.msra.mxu0 %v317
      %1003 = vmatprep.subr.bf16.mxu0 0
      %1004 = vmatpush1.bf16.msra.mxu0 %v318
      %1005 = vmatprep.subr.bf16.mxu0 0
      %1006 = vmatpush1.bf16.msra.mxu0 %v319
      %1007 = vmatprep.subr.bf16.mxu0 0
      %1008 = vmatpush1.bf16.msra.mxu0 %v320
      %1009 = vmatprep.subr.bf16.mxu0 0
      %1010 = vmatpush1.bf16.msra.mxu0 %v321
      %1011 = vmatprep.subr.bf16.mxu0 0
      %1012 = vmatpush1.bf16.msra.mxu0 %v322
      %1013 = vmatprep.subr.bf16.mxu0 0
      %1014 = vmatpush1.bf16.msra.mxu0 0
      %1015 = vmatprep.subr.bf16.mxu0 0
      %1016 = vmatpush1.bf16.msra.mxu0 0
      %1017 = vmatprep.subr.bf16.mxu0 0
      %1018 = vmatpush1.bf16.msra.mxu0 0
      %1019 = vmatprep.subr.bf16.mxu0 0
      %1020 = vmatpush1.bf16.msra.mxu0 0
      %1021 = vmatprep.subr.bf16.mxu0 0
      %1022 = vmatpush1.bf16.msra.mxu0 0
      %1023 = vmatprep.subr.bf16.mxu0 0
      %1024 = vmatpush1.bf16.msra.mxu0 0
      %1025 = vmatprep.subr.bf16.mxu0 0
      %1026 = vmatpush1.bf16.msra.mxu0 0
      %1027 = vmatprep.subr.bf16.mxu0 0
      %1028 = vmatpush1.bf16.msra.mxu0 0
      %1029 = vmatprep.mubr.bf16.mxu0 0
      %1030 = vmatmul.mubr.bf16.gmra.mrb[0].mxu0 %v981
      %v1031 = vpop.f32.mrb[0].mxu0
      %v1032 = vadd.f32 0.0, %v1031
      %v1033 = vpop.f32.mrb[0].mxu0
      %v1034 = vpop.f32.mrb[0].mxu0
      %v1035 = vadd.f32 0.0, %v1034
      %v1036 = vpop.f32.mrb[0].mxu0
      %1037 = vmatprep.mubr.bf16.mxu0 0
      %1038 = vmatmul.mubr.bf16.gmra.mrb[0].mxu0 %v982
      %v1039 = vpop.f32.mrb[0].mxu0
      %v1040 = vadd.f32 0.0, %v1039
      %v1041 = vpop.f32.mrb[0].mxu0
      %v1042 = vpop.f32.mrb[0].mxu0
      %v1043 = vadd.f32 0.0, %v1042
      %v1044 = vpop.f32.mrb[0].mxu0
      %1045 = vmatprep.mubr.bf16.mxu0 0
      %1046 = vmatmul.mubr.bf16.gmra.mrb[0].mxu0 %v983
      %v1047 = vpop.f32.mrb[0].mxu0
      %v1048 = vadd.f32 0.0, %v1047
      %v1049 = vpop.f32.mrb[0].mxu0
      %v1050 = vpop.f32.mrb[0].mxu0
      %v1051 = vadd.f32 0.0, %v1050
      %v1052 = vpop.f32.mrb[0].mxu0
      %1053 = vmatprep.mubr.bf16.mxu0 0
      %1054 = vmatmul.mubr.bf16.gmra.mrb[0].mxu0 %v984
      %v1055 = vpop.f32.mrb[0].mxu0
      %v1056 = vadd.f32 0.0, %v1055
      %v1057 = vpop.f32.mrb[0].mxu0
      %v1058 = vpop.f32.mrb[0].mxu0
      %v1059 = vadd.f32 0.0, %v1058
      %v1060 = vpop.f32.mrb[0].mxu0
      %1061 = vmatprep.mubr.bf16.mxu0 0
      %1062 = vmatmul.mubr.bf16.gmra.mrb[0].mxu0 %v985
      %v1063 = vpop.f32.mrb[0].mxu0
      %v1064 = vadd.f32 0.0, %v1063
      %v1065 = vpop.f32.mrb[0].mxu0
      %v1066 = vpop.f32.mrb[0].mxu0
      %v1067 = vadd.f32 0.0, %v1066
      %v1068 = vpop.f32.mrb[0].mxu0
      %1069 = vmatprep.mubr.bf16.mxu0 0
      %1070 = vmatmul.mubr.bf16.gmra.mrb[0].mxu0 %v986
      %v1071 = vpop.f32.mrb[0].mxu0
      %v1072 = vadd.f32 0.0, %v1071
      %v1073 = vpop.f32.mrb[0].mxu0
      %v1074 = vpop.f32.mrb[0].mxu0
      %v1075 = vadd.f32 0.0, %v1074
      %v1076 = vpop.f32.mrb[0].mxu0
      %1077 = vmatprep.mubr.bf16.mxu0 0
      %1078 = vmatmul.mubr.bf16.gmra.mrb[0].mxu0 %v987
      %v1079 = vpop.f32.mrb[0].mxu0
      %v1080 = vadd.f32 0.0, %v1079
      %v1081 = vpop.f32.mrb[0].mxu0
      %v1082 = vpop.f32.mrb[0].mxu0
      %v1083 = vadd.f32 0.0, %v1082
      %v1084 = vpop.f32.mrb[0].mxu0
      %1085 = vmatprep.mubr.bf16.mxu0 0
      %1086 = vmatmul.mubr.bf16.gmra.mrb[0].mxu0 %v988
      %v1087 = vpop.f32.mrb[0].mxu0
      %v1088 = vadd.f32 0.0, %v1087
      %v1089 = vpop.f32.mrb[0].mxu0
      %v1090 = vpop.f32.mrb[0].mxu0
      %v1091 = vadd.f32 0.0, %v1090
      %v1092 = vpop.f32.mrb[0].mxu0
      %1093 = vdwg.mxu0
      %1094 = vst [vmem:[%s194 + $0x100] sm:$0xff] %v1032
      %1095 = vst [vmem:[%s194 + $0x108] sm:$0xff] %v1035
      %1096 = vst [vmem:[%s194 + $0x110] sm:$0xff] %v1040
      %1097 = vst [vmem:[%s194 + $0x118] sm:$0xff] %v1043
      %1098 = vst [vmem:[%s194 + $0x120] sm:$0xff] %v1048
      %1099 = vst [vmem:[%s194 + $0x128] sm:$0xff] %v1051
      %1100 = vst [vmem:[%s194 + $0x130] sm:$0xff] %v1056
      %1101 = vst [vmem:[%s194 + $0x138] sm:$0xff] %v1059
      %1102 = vst [vmem:[%s194 + $0x140] sm:$0xff] %v1064
      %1103 = vst [vmem:[%s194 + $0x148] sm:$0xff] %v1067
      %1104 = vst [vmem:[%s194 + $0x150] sm:$0xff] %v1072
      %1105 = vst [vmem:[%s194 + $0x158] sm:$0xff] %v1075
      %1106 = vst [vmem:[%s194 + $0x160] sm:$0xff] %v1080
      %1107 = vst [vmem:[%s194 + $0x168] sm:$0xff] %v1083
      %1108 = vst [vmem:[%s194 + $0x170] sm:$0xff] %v1088
      %1109 = vst [vmem:[%s194 + $0x178] sm:$0xff] %v1091
      %1110 = vmatprep.subr.mxu0 0.0
      %1111 = vmatpush1.msra.mxu0 %v1032
      %1112 = vmatprep.subr.mxu0 0.0
      %1113 = vmatpush1.msra.mxu0 %v1035
      %1114 = vmatprep.subr.mxu0 0.0
      %1115 = vmatpush1.msra.mxu0 %v1040
      %1116 = vmatprep.subr.mxu0 0.0
      %1117 = vmatpush1.msra.mxu0 %v1043
      %1118 = vmatprep.subr.mxu0 0.0
      %1119 = vmatpush1.msra.mxu0 %v1048
      %1120 = vmatprep.subr.mxu0 0.0
      %1121 = vmatpush1.msra.mxu0 %v1051
      %1122 = vmatprep.subr.mxu0 0.0
      %1123 = vmatpush1.msra.mxu0 %v1056
      %1124 = vmatprep.subr.mxu0 0.0
      %1125 = vmatpush1.msra.mxu0 %v1059
      %1126 = vmatprep.subr.mxu0 0.0
      %1127 = vmatpush1.msra.mxu0 %v1064
      %1128 = vmatprep.subr.mxu0 0.0
      %1129 = vmatpush1.msra.mxu0 %v1067
      %1130 = vmatprep.subr.mxu0 0.0
      %1131 = vmatpush1.msra.mxu0 %v1072
      %1132 = vmatprep.subr.mxu0 0.0
      %1133 = vmatpush1.msra.mxu0 %v1075
      %1134 = vmatprep.subr.mxu0 0.0
      %1135 = vmatpush1.msra.mxu0 %v1080
      %1136 = vmatprep.subr.mxu0 0.0
      %1137 = vmatpush1.msra.mxu0 %v1083
      %1138 = vmatprep.subr.mxu0 0.0
      %1139 = vmatpush1.msra.mxu0 %v1088
      %1140 = vmatprep.subr.mxu0 0.0
      %1141 = vmatpush1.msra.mxu0 %v1091
      %1142 = vmatprep.subr.mxu0 0.0
      %1143 = vmatpush1.msra.mxu0 0.0
      %1144 = vmatprep.subr.mxu0 0.0
      %1145 = vmatpush1.msra.mxu0 0.0
      %1146 = vmatprep.subr.mxu0 0.0
      %1147 = vmatpush1.msra.mxu0 0.0
      %1148 = vmatprep.subr.mxu0 0.0
      %1149 = vmatpush1.msra.mxu0 0.0
      %1150 = vmatprep.subr.mxu0 0.0
      %1151 = vmatpush1.msra.mxu0 0.0
      %1152 = vmatprep.subr.mxu0 0.0
      %1153 = vmatpush1.msra.mxu0 0.0
      %1154 = vmatprep.subr.mxu0 0.0
      %1155 = vmatpush1.msra.mxu0 0.0
      %1156 = vmatprep.subr.mxu0 0.0
      %1157 = vmatpush1.msra.mxu0 0.0
      %1158 = vmatprep.subr.mxu0 0.0
      %1159 = vmatpush1.msra.mxu0 0.0
      %1160 = vmatprep.subr.mxu0 0.0
      %1161 = vmatpush1.msra.mxu0 0.0
      %1162 = vmatprep.subr.mxu0 0.0
      %1163 = vmatpush1.msra.mxu0 0.0
      %1164 = vmatprep.subr.mxu0 0.0
      %1165 = vmatpush1.msra.mxu0 0.0
      %1166 = vmatprep.subr.mxu0 0.0
      %1167 = vmatpush1.msra.mxu0 0.0
      %1168 = vmatprep.subr.mxu0 0.0
      %1169 = vmatpush1.msra.mxu0 0.0
      %1170 = vmatprep.subr.mxu0 0.0
      %1171 = vmatpush1.msra.mxu0 0.0
      %1172 = vmatprep.subr.mxu0 0.0
      %1173 = vmatpush1.msra.mxu0 0.0
      %1174 = vmatprep.mubr.f32.mxu0 0.0
      %1175 = vmatmul.mubr.f32.gmra.mrb[0].mxu0 1.0
      %v1176 = vpop.f32.mrb[0].mxu0
      %v1177 = vadd.f32 0.0, %v1176
      %v1178 = vpop.f32.mrb[0].mxu0
      %1179 = vdwg.mxu0
      %v1180 = vadd.f32 %v774, %v1177
      %v1181 = vmul.f32 %v1032, %v1032
      %v1182 = vmul.f32 %v1035, %v1035
      %v1183 = vmul.f32 %v1040, %v1040
      %v1184 = vmul.f32 %v1043, %v1043
      %v1185 = vmul.f32 %v1048, %v1048
      %v1186 = vmul.f32 %v1051, %v1051
      %v1187 = vmul.f32 %v1056, %v1056
      %v1188 = vmul.f32 %v1059, %v1059
      %v1189 = vmul.f32 %v1064, %v1064
      %v1190 = vmul.f32 %v1067, %v1067
      %v1191 = vmul.f32 %v1072, %v1072
      %v1192 = vmul.f32 %v1075, %v1075
      %v1193 = vmul.f32 %v1080, %v1080
      %v1194 = vmul.f32 %v1083, %v1083
      %v1195 = vmul.f32 %v1088, %v1088
      %v1196 = vmul.f32 %v1091, %v1091
      %1197 = vmatprep.subr.mxu0 0.0
      %1198 = vmatpush1.msra.mxu0 %v1181
      %1199 = vmatprep.subr.mxu0 0.0
      %1200 = vmatpush1.msra.mxu0 %v1182
      %1201 = vmatprep.subr.mxu0 0.0
      %1202 = vmatpush1.msra.mxu0 %v1183
      %1203 = vmatprep.subr.mxu0 0.0
      %1204 = vmatpush1.msra.mxu0 %v1184
      %1205 = vmatprep.subr.mxu0 0.0
      %1206 = vmatpush1.msra.mxu0 %v1185
      %1207 = vmatprep.subr.mxu0 0.0
      %1208 = vmatpush1.msra.mxu0 %v1186
      %1209 = vmatprep.subr.mxu0 0.0
      %1210 = vmatpush1.msra.mxu0 %v1187
      %1211 = vmatprep.subr.mxu0 0.0
      %1212 = vmatpush1.msra.mxu0 %v1188
      %1213 = vmatprep.subr.mxu0 0.0
      %1214 = vmatpush1.msra.mxu0 %v1189
      %1215 = vmatprep.subr.mxu0 0.0
      %1216 = vmatpush1.msra.mxu0 %v1190
      %1217 = vmatprep.subr.mxu0 0.0
      %1218 = vmatpush1.msra.mxu0 %v1191
      %1219 = vmatprep.subr.mxu0 0.0
      %1220 = vmatpush1.msra.mxu0 %v1192
      %1221 = vmatprep.subr.mxu0 0.0
      %1222 = vmatpush1.msra.mxu0 %v1193
      %1223 = vmatprep.subr.mxu0 0.0
      %1224 = vmatpush1.msra.mxu0 %v1194
      %1225 = vmatprep.subr.mxu0 0.0
      %1226 = vmatpush1.msra.mxu0 %v1195
      %1227 = vmatprep.subr.mxu0 0.0
      %1228 = vmatpush1.msra.mxu0 %v1196
      %1229 = vmatprep.subr.mxu0 0.0
      %1230 = vmatpush1.msra.mxu0 0.0
      %1231 = vmatprep.subr.mxu0 0.0
      %1232 = vmatpush1.msra.mxu0 0.0
      %1233 = vmatprep.subr.mxu0 0.0
      %1234 = vmatpush1.msra.mxu0 0.0
      %1235 = vmatprep.subr.mxu0 0.0
      %1236 = vmatpush1.msra.mxu0 0.0
      %1237 = vmatprep.subr.mxu0 0.0
      %1238 = vmatpush1.msra.mxu0 0.0
      %1239 = vmatprep.subr.mxu0 0.0
      %1240 = vmatpush1.msra.mxu0 0.0
      %1241 = vmatprep.subr.mxu0 0.0
      %1242 = vmatpush1.msra.mxu0 0.0
      %1243 = vmatprep.subr.mxu0 0.0
      %1244 = vmatpush1.msra.mxu0 0.0
      %1245 = vmatprep.subr.mxu0 0.0
      %1246 = vmatpush1.msra.mxu0 0.0
      %1247 = vmatprep.subr.mxu0 0.0
      %1248 = vmatpush1.msra.mxu0 0.0
      %1249 = vmatprep.subr.mxu0 0.0
      %1250 = vmatpush1.msra.mxu0 0.0
      %1251 = vmatprep.subr.mxu0 0.0
      %1252 = vmatpush1.msra.mxu0 0.0
      %1253 = vmatprep.subr.mxu0 0.0
      %1254 = vmatpush1.msra.mxu0 0.0
      %1255 = vmatprep.subr.mxu0 0.0
      %1256 = vmatpush1.msra.mxu0 0.0
      %1257 = vmatprep.subr.mxu0 0.0
      %1258 = vmatpush1.msra.mxu0 0.0
      %1259 = vmatprep.subr.mxu0 0.0
      %1260 = vmatpush1.msra.mxu0 0.0
      %1261 = vmatprep.mubr.f32.mxu0 0.0
      %1262 = vmatmul.mubr.f32.gmra.mrb[0].mxu0 1.0
      %v1263 = vpop.f32.mrb[0].mxu0
      %v1264 = vadd.f32 0.0, %v1263
      %v1265 = vpop.f32.mrb[0].mxu0
      %1266 = vdwg.mxu0
      %v1267 = vadd.f32 %v930, %v1264
      %v1268 = vld [vmem:[%s188 + $0xc0] sm:$0xf]
      %v1269 = vld [vmem:[%s188 + $0xc4] sm:$0xf]
      %v1270 = vld [vmem:[%s188 + $0xc8] sm:$0xf]
      %v1271 = vld [vmem:[%s188 + $0xcc] sm:$0xf]
      %v1272 = vld [vmem:[%s188 + $0xd0] sm:$0xf]
      %v1273 = vld [vmem:[%s188 + $0xd4] sm:$0xf]
      %v1274 = vld [vmem:[%s188 + $0xd8] sm:$0xf]
      %v1275 = vld [vmem:[%s188 + $0xdc] sm:$0xf]
      %v1276 = vld [vmem:[%s188 + $0xe0] sm:$0xf]
      %v1277 = vld [vmem:[%s188 + $0xe4] sm:$0xf]
      %v1278 = vld [vmem:[%s188 + $0xe8] sm:$0xf]
      %v1279 = vld [vmem:[%s188 + $0xec] sm:$0xf]
      %v1280 = vld [vmem:[%s188 + $0xf0] sm:$0xf]
      %v1281 = vld [vmem:[%s188 + $0xf4] sm:$0xf]
      %v1282 = vld [vmem:[%s188 + $0xf8] sm:$0xf]
      %v1283 = vld [vmem:[%s188 + $0xfc] sm:$0xf]
      %v1300 = vunpack.c.l.b16 %v1268
      %v1301 = vunpack.c.l.b16 %v1269
      %v1302 = vunpack.c.l.b16 %v1270
      %v1303 = vunpack.c.l.b16 %v1271
      %v1304 = vunpack.c.l.b16 %v1272
      %v1305 = vunpack.c.l.b16 %v1273
      %v1306 = vunpack.c.l.b16 %v1274
      %v1307 = vunpack.c.l.b16 %v1275
      %v1308 = vunpack.c.l.b16 %v1276
      %v1309 = vunpack.c.l.b16 %v1277
      %v1310 = vunpack.c.l.b16 %v1278
      %v1311 = vunpack.c.l.b16 %v1279
      %v1312 = vunpack.c.l.b16 %v1280
      %v1313 = vunpack.c.l.b16 %v1281
      %v1314 = vunpack.c.l.b16 %v1282
      %v1315 = vunpack.c.l.b16 %v1283
      %v1316 = vpack.c.b16 %v1301, %v1300
      %v1317 = vpack.c.b16 %v1303, %v1302
      %v1318 = vpack.c.b16 %v1305, %v1304
      %v1319 = vpack.c.b16 %v1307, %v1306
      %v1320 = vpack.c.b16 %v1309, %v1308
      %v1321 = vpack.c.b16 %v1311, %v1310
      %v1322 = vpack.c.b16 %v1313, %v1312
      %v1323 = vpack.c.b16 %v1315, %v1314
      %1332 = vmatprep.subr.bf16.mxu0 0
      %1333 = vmatpush1.bf16.msra.mxu0 %v315
      %1334 = vmatprep.subr.bf16.mxu0 0
      %1335 = vmatpush1.bf16.msra.mxu0 %v316
      %1336 = vmatprep.subr.bf16.mxu0 0
      %1337 = vmatpush1.bf16.msra.mxu0 %v317
      %1338 = vmatprep.subr.bf16.mxu0 0
      %1339 = vmatpush1.bf16.msra.mxu0 %v318
      %1340 = vmatprep.subr.bf16.mxu0 0
      %1341 = vmatpush1.bf16.msra.mxu0 %v319
      %1342 = vmatprep.subr.bf16.mxu0 0
      %1343 = vmatpush1.bf16.msra.mxu0 %v320
      %1344 = vmatprep.subr.bf16.mxu0 0
      %1345 = vmatpush1.bf16.msra.mxu0 %v321
      %1346 = vmatprep.subr.bf16.mxu0 0
      %1347 = vmatpush1.bf16.msra.mxu0 %v322
      %1348 = vmatprep.subr.bf16.mxu0 0
      %1349 = vmatpush1.bf16.msra.mxu0 0
      %1350 = vmatprep.subr.bf16.mxu0 0
      %1351 = vmatpush1.bf16.msra.mxu0 0
      %1352 = vmatprep.subr.bf16.mxu0 0
      %1353 = vmatpush1.bf16.msra.mxu0 0
      %1354 = vmatprep.subr.bf16.mxu0 0
      %1355 = vmatpush1.bf16.msra.mxu0 0
      %1356 = vmatprep.subr.bf16.mxu0 0
      %1357 = vmatpush1.bf16.msra.mxu0 0
      %1358 = vmatprep.subr.bf16.mxu0 0
      %1359 = vmatpush1.bf16.msra.mxu0 0
      %1360 = vmatprep.subr.bf16.mxu0 0
      %1361 = vmatpush1.bf16.msra.mxu0 0
      %1362 = vmatprep.subr.bf16.mxu0 0
      %1363 = vmatpush1.bf16.msra.mxu0 0
      %1364 = vmatprep.mubr.bf16.mxu0 0
      %1365 = vmatmul.mubr.bf16.gmra.mrb[0].mxu0 %v1316
      %v1366 = vpop.f32.mrb[0].mxu0
      %v1367 = vadd.f32 0.0, %v1366
      %v1368 = vpop.f32.mrb[0].mxu0
      %v1369 = vpop.f32.mrb[0].mxu0
      %v1370 = vadd.f32 0.0, %v1369
      %v1371 = vpop.f32.mrb[0].mxu0
      %1372 = vmatprep.mubr.bf16.mxu0 0
      %1373 = vmatmul.mubr.bf16.gmra.mrb[0].mxu0 %v1317
      %v1374 = vpop.f32.mrb[0].mxu0
      %v1375 = vadd.f32 0.0, %v1374
      %v1376 = vpop.f32.mrb[0].mxu0
      %v1377 = vpop.f32.mrb[0].mxu0
      %v1378 = vadd.f32 0.0, %v1377
      %v1379 = vpop.f32.mrb[0].mxu0
      %1380 = vmatprep.mubr.bf16.mxu0 0
      %1381 = vmatmul.mubr.bf16.gmra.mrb[0].mxu0 %v1318
      %v1382 = vpop.f32.mrb[0].mxu0
      %v1383 = vadd.f32 0.0, %v1382
      %v1384 = vpop.f32.mrb[0].mxu0
      %v1385 = vpop.f32.mrb[0].mxu0
      %v1386 = vadd.f32 0.0, %v1385
      %v1387 = vpop.f32.mrb[0].mxu0
      %1388 = vmatprep.mubr.bf16.mxu0 0
      %1389 = vmatmul.mubr.bf16.gmra.mrb[0].mxu0 %v1319
      %v1390 = vpop.f32.mrb[0].mxu0
      %v1391 = vadd.f32 0.0, %v1390
      %v1392 = vpop.f32.mrb[0].mxu0
      %v1393 = vpop.f32.mrb[0].mxu0
      %v1394 = vadd.f32 0.0, %v1393
      %v1395 = vpop.f32.mrb[0].mxu0
      %1396 = vmatprep.mubr.bf16.mxu0 0
      %1397 = vmatmul.mubr.bf16.gmra.mrb[0].mxu0 %v1320
      %v1398 = vpop.f32.mrb[0].mxu0
      %v1399 = vadd.f32 0.0, %v1398
      %v1400 = vpop.f32.mrb[0].mxu0
      %v1401 = vpop.f32.mrb[0].mxu0
      %v1402 = vadd.f32 0.0, %v1401
      %v1403 = vpop.f32.mrb[0].mxu0
      %1404 = vmatprep.mubr.bf16.mxu0 0
      %1405 = vmatmul.mubr.bf16.gmra.mrb[0].mxu0 %v1321
      %v1406 = vpop.f32.mrb[0].mxu0
      %v1407 = vadd.f32 0.0, %v1406
      %v1408 = vpop.f32.mrb[0].mxu0
      %v1409 = vpop.f32.mrb[0].mxu0
      %v1410 = vadd.f32 0.0, %v1409
      %v1411 = vpop.f32.mrb[0].mxu0
      %1412 = vmatprep.mubr.bf16.mxu0 0
      %1413 = vmatmul.mubr.bf16.gmra.mrb[0].mxu0 %v1322
      %v1414 = vpop.f32.mrb[0].mxu0
      %v1415 = vadd.f32 0.0, %v1414
      %v1416 = vpop.f32.mrb[0].mxu0
      %v1417 = vpop.f32.mrb[0].mxu0
      %v1418 = vadd.f32 0.0, %v1417
      %v1419 = vpop.f32.mrb[0].mxu0
      %1420 = vmatprep.mubr.bf16.mxu0 0
      %1421 = vmatmul.mubr.bf16.gmra.mrb[0].mxu0 %v1323
      %v1422 = vpop.f32.mrb[0].mxu0
      %v1423 = vadd.f32 0.0, %v1422
      %v1424 = vpop.f32.mrb[0].mxu0
      %v1425 = vpop.f32.mrb[0].mxu0
      %v1426 = vadd.f32 0.0, %v1425
      %v1427 = vpop.f32.mrb[0].mxu0
      %1428 = vdwg.mxu0
      %1429 = vst [vmem:[%s194 + $0x180] sm:$0xff] %v1367
      %1430 = vst [vmem:[%s194 + $0x188] sm:$0xff] %v1370
      %1431 = vst [vmem:[%s194 + $0x190] sm:$0xff] %v1375
      %1432 = vst [vmem:[%s194 + $0x198] sm:$0xff] %v1378
      %1433 = vst [vmem:[%s194 + $0x1a0] sm:$0xff] %v1383
      %1434 = vst [vmem:[%s194 + $0x1a8] sm:$0xff] %v1386
      %1435 = vst [vmem:[%s194 + $0x1b0] sm:$0xff] %v1391
      %1436 = vst [vmem:[%s194 + $0x1b8] sm:$0xff] %v1394
      %1437 = vst [vmem:[%s194 + $0x1c0] sm:$0xff] %v1399
      %1438 = vst [vmem:[%s194 + $0x1c8] sm:$0xff] %v1402
      %1439 = vst [vmem:[%s194 + $0x1d0] sm:$0xff] %v1407
      %1440 = vst [vmem:[%s194 + $0x1d8] sm:$0xff] %v1410
      %1441 = vst [vmem:[%s194 + $0x1e0] sm:$0xff] %v1415
      %1442 = vst [vmem:[%s194 + $0x1e8] sm:$0xff] %v1418
      %1443 = vst [vmem:[%s194 + $0x1f0] sm:$0xff] %v1423
      %1444 = vst [vmem:[%s194 + $0x1f8] sm:$0xff] %v1426
      %1445 = vmatprep.subr.mxu0 0.0
      %1446 = vmatpush1.msra.mxu0 %v1367
      %1447 = vmatprep.subr.mxu0 0.0
      %1448 = vmatpush1.msra.mxu0 %v1370
      %1449 = vmatprep.subr.mxu0 0.0
      %1450 = vmatpush1.msra.mxu0 %v1375
      %1451 = vmatprep.subr.mxu0 0.0
      %1452 = vmatpush1.msra.mxu0 %v1378
      %1453 = vmatprep.subr.mxu0 0.0
      %1454 = vmatpush1.msra.mxu0 %v1383
      %1455 = vmatprep.subr.mxu0 0.0
      %1456 = vmatpush1.msra.mxu0 %v1386
      %1457 = vmatprep.subr.mxu0 0.0
      %1458 = vmatpush1.msra.mxu0 %v1391
      %1459 = vmatprep.subr.mxu0 0.0
      %1460 = vmatpush1.msra.mxu0 %v1394
      %1461 = vmatprep.subr.mxu0 0.0
      %1462 = vmatpush1.msra.mxu0 %v1399
      %1463 = vmatprep.subr.mxu0 0.0
      %1464 = vmatpush1.msra.mxu0 %v1402
      %1465 = vmatprep.subr.mxu0 0.0
      %1466 = vmatpush1.msra.mxu0 %v1407
      %1467 = vmatprep.subr.mxu0 0.0
      %1468 = vmatpush1.msra.mxu0 %v1410
      %1469 = vmatprep.subr.mxu0 0.0
      %1470 = vmatpush1.msra.mxu0 %v1415
      %1471 = vmatprep.subr.mxu0 0.0
      %1472 = vmatpush1.msra.mxu0 %v1418
      %1473 = vmatprep.subr.mxu0 0.0
      %1474 = vmatpush1.msra.mxu0 %v1423
      %1475 = vmatprep.subr.mxu0 0.0
      %1476 = vmatpush1.msra.mxu0 %v1426
      %1477 = vmatprep.subr.mxu0 0.0
      %1478 = vmatpush1.msra.mxu0 0.0
      %1479 = vmatprep.subr.mxu0 0.0
      %1480 = vmatpush1.msra.mxu0 0.0
      %1481 = vmatprep.subr.mxu0 0.0
      %1482 = vmatpush1.msra.mxu0 0.0
      %1483 = vmatprep.subr.mxu0 0.0
      %1484 = vmatpush1.msra.mxu0 0.0
      %1485 = vmatprep.subr.mxu0 0.0
      %1486 = vmatpush1.msra.mxu0 0.0
      %1487 = vmatprep.subr.mxu0 0.0
      %1488 = vmatpush1.msra.mxu0 0.0
      %1489 = vmatprep.subr.mxu0 0.0
      %1490 = vmatpush1.msra.mxu0 0.0
      %1491 = vmatprep.subr.mxu0 0.0
      %1492 = vmatpush1.msra.mxu0 0.0
      %1493 = vmatprep.subr.mxu0 0.0
      %1494 = vmatpush1.msra.mxu0 0.0
      %1495 = vmatprep.subr.mxu0 0.0
      %1496 = vmatpush1.msra.mxu0 0.0
      %1497 = vmatprep.subr.mxu0 0.0
      %1498 = vmatpush1.msra.mxu0 0.0
      %1499 = vmatprep.subr.mxu0 0.0
      %1500 = vmatpush1.msra.mxu0 0.0
      %1501 = vmatprep.subr.mxu0 0.0
      %1502 = vmatpush1.msra.mxu0 0.0
      %1503 = vmatprep.subr.mxu0 0.0
      %1504 = vmatpush1.msra.mxu0 0.0
      %1505 = vmatprep.subr.mxu0 0.0
      %1506 = vmatpush1.msra.mxu0 0.0
      %1507 = vmatprep.subr.mxu0 0.0
      %1508 = vmatpush1.msra.mxu0 0.0
      %1509 = vmatprep.mubr.f32.mxu0 0.0
      %1510 = vmatmul.mubr.f32.gmra.mrb[0].mxu0 1.0
      %v1511 = vpop.f32.mrb[0].mxu0
      %v1512 = vadd.f32 0.0, %v1511
      %v1513 = vpop.f32.mrb[0].mxu0
      %1514 = vdwg.mxu0
      %v1515 = vadd.f32 %v1180, %v1512
      %v1516 = vmul.f32 %v1367, %v1367
      %v1517 = vmul.f32 %v1370, %v1370
      %v1518 = vmul.f32 %v1375, %v1375
      %v1519 = vmul.f32 %v1378, %v1378
      %v1520 = vmul.f32 %v1383, %v1383
      %v1521 = vmul.f32 %v1386, %v1386
      %v1522 = vmul.f32 %v1391, %v1391
      %v1523 = vmul.f32 %v1394, %v1394
      %v1524 = vmul.f32 %v1399, %v1399
      %v1525 = vmul.f32 %v1402, %v1402
      %v1526 = vmul.f32 %v1407, %v1407
      %v1527 = vmul.f32 %v1410, %v1410
      %v1528 = vmul.f32 %v1415, %v1415
      %v1529 = vmul.f32 %v1418, %v1418
      %v1530 = vmul.f32 %v1423, %v1423
      %v1531 = vmul.f32 %v1426, %v1426
      %1532 = vmatprep.subr.mxu0 0.0
      %1533 = vmatpush1.msra.mxu0 %v1516
      %1534 = vmatprep.subr.mxu0 0.0
      %1535 = vmatpush1.msra.mxu0 %v1517
      %1536 = vmatprep.subr.mxu0 0.0
      %1537 = vmatpush1.msra.mxu0 %v1518
      %1538 = vmatprep.subr.mxu0 0.0
      %1539 = vmatpush1.msra.mxu0 %v1519
      %1540 = vmatprep.subr.mxu0 0.0
      %1541 = vmatpush1.msra.mxu0 %v1520
      %1542 = vmatprep.subr.mxu0 0.0
      %1543 = vmatpush1.msra.mxu0 %v1521
      %1544 = vmatprep.subr.mxu0 0.0
      %1545 = vmatpush1.msra.mxu0 %v1522
      %1546 = vmatprep.subr.mxu0 0.0
      %1547 = vmatpush1.msra.mxu0 %v1523
      %1548 = vmatprep.subr.mxu0 0.0
      %1549 = vmatpush1.msra.mxu0 %v1524
      %1550 = vmatprep.subr.mxu0 0.0
      %1551 = vmatpush1.msra.mxu0 %v1525
      %1552 = vmatprep.subr.mxu0 0.0
      %1553 = vmatpush1.msra.mxu0 %v1526
      %1554 = vmatprep.subr.mxu0 0.0
      %1555 = vmatpush1.msra.mxu0 %v1527
      %1556 = vmatprep.subr.mxu0 0.0
      %1557 = vmatpush1.msra.mxu0 %v1528
      %1558 = vmatprep.subr.mxu0 0.0
      %1559 = vmatpush1.msra.mxu0 %v1529
      %1560 = vmatprep.subr.mxu0 0.0
      %1561 = vmatpush1.msra.mxu0 %v1530
      %1562 = vmatprep.subr.mxu0 0.0
      %1563 = vmatpush1.msra.mxu0 %v1531
      %1564 = vmatprep.subr.mxu0 0.0
      %1565 = vmatpush1.msra.mxu0 0.0
      %1566 = vmatprep.subr.mxu0 0.0
      %1567 = vmatpush1.msra.mxu0 0.0
      %1568 = vmatprep.subr.mxu0 0.0
      %1569 = vmatpush1.msra.mxu0 0.0
      %1570 = vmatprep.subr.mxu0 0.0
      %1571 = vmatpush1.msra.mxu0 0.0
      %1572 = vmatprep.subr.mxu0 0.0
      %1573 = vmatpush1.msra.mxu0 0.0
      %1574 = vmatprep.subr.mxu0 0.0
      %1575 = vmatpush1.msra.mxu0 0.0
      %1576 = vmatprep.subr.mxu0 0.0
      %1577 = vmatpush1.msra.mxu0 0.0
      %1578 = vmatprep.subr.mxu0 0.0
      %1579 = vmatpush1.msra.mxu0 0.0
      %1580 = vmatprep.subr.mxu0 0.0
      %1581 = vmatpush1.msra.mxu0 0.0
      %1582 = vmatprep.subr.mxu0 0.0
      %1583 = vmatpush1.msra.mxu0 0.0
      %1584 = vmatprep.subr.mxu0 0.0
      %1585 = vmatpush1.msra.mxu0 0.0
      %1586 = vmatprep.subr.mxu0 0.0
      %1587 = vmatpush1.msra.mxu0 0.0
      %1588 = vmatprep.subr.mxu0 0.0
      %1589 = vmatpush1.msra.mxu0 0.0
      %1590 = vmatprep.subr.mxu0 0.0
      %1591 = vmatpush1.msra.mxu0 0.0
      %1592 = vmatprep.subr.mxu0 0.0
      %1593 = vmatpush1.msra.mxu0 0.0
      %1594 = vmatprep.subr.mxu0 0.0
      %1595 = vmatpush1.msra.mxu0 0.0
      %1596 = vmatprep.mubr.f32.mxu0 0.0
      %1597 = vmatmul.mubr.f32.gmra.mrb[0].mxu0 1.0
      %v1598 = vpop.f32.mrb[0].mxu0
      %v1599 = vadd.f32 0.0, %v1598
      %v1600 = vpop.f32.mrb[0].mxu0
      %1601 = vdwg.mxu0
      %v1602 = vadd.f32 %v1267, %v1599
      %v1603 = vld [vmem:[%s3] sm:$0x1]
      %v1604 = vadd.f32 %v1603, %v1515
      %1605 = vst [vmem:[%s3] sm:$0x1] %v1604
      %v1606 = vld [vmem:[%s4] sm:$0x1]
      %v1607 = vadd.f32 %v1606, %v1602
      %1608 = vst [vmem:[%s4] sm:$0x1] %v1607
      %s1609 = smul.u32 64, %s16
      %p1610 = scmp.lt.s32.totalorder %s1609, 127
      %s1611 = scalar_select %p1610, %s1609, 127
      %s1612 = smul.addr %s1611, 8
      %s1613 = scalar_lea.vmem %s2, %s1612
      // Predicated region
      $region33: #{bottleneck_forward.6} parent=27 // pred_check
        %p1614 = pneg %p81
      $region34: #{bottleneck_forward.6} parent=27 // pred_check_branch
        %1616 = sbr.rel (%p1614) target = $region36
      $region35: #{bottleneck_forward.6} parent=27 // pred_region
        %s1617 = smul.u32 64, %s16
      $region36: #{bottleneck_forward.6} parent=27 // pred_fallthru
        _
      // Predicated region
      $region37: #{bottleneck_forward.6} parent=27 // pred_check
        %p1618 = pneg %p102
      $region38: #{bottleneck_forward.6} parent=27 // pred_check_branch
        %1620 = sbr.rel (%p1618) target = $region40
      $region39: #{bottleneck_forward.6} parent=27 // pred_region
        _
      $region40: #{bottleneck_forward.6} parent=27 // pred_fallthru
        _
      // Predicated region
      $region41: #{bottleneck_forward.6} parent=27 // pred_check
        %p1621 = pneg %p123
      $region42: #{bottleneck_forward.6} parent=27 // pred_check_branch
        %1623 = sbr.rel (%p1621) target = $region44
      $region43: #{bottleneck_forward.6} parent=27 // pred_region
        _
      $region44: #{bottleneck_forward.6} parent=27 // pred_fallthru
        _
      // Predicated region
      $region45: #{bottleneck_forward.6} parent=27 // pred_check
        %p1624 = pneg %p102
      $region46: #{bottleneck_forward.6} parent=27 // pred_check_branch
        %1626 = sbr.rel (%p1624) target = $region48
      $region47: #{bottleneck_forward.6} parent=27 // pred_region
        _
      $region48: #{bottleneck_forward.6} parent=27 // pred_fallthru
        _
      // Predicated region
      $region49: #{bottleneck_forward.6} parent=27 // pred_check
        %p1627 = pneg %p123
      $region50: #{bottleneck_forward.6} parent=27 // pred_check_branch
        %1629 = sbr.rel (%p1627) target = $region52
      $region51: #{bottleneck_forward.6} parent=27 // pred_region
        _
      $region52: #{bottleneck_forward.6} parent=27 // pred_fallthru
        _
    $region28: #{bottleneck_forward.6} parent=5 // pred_fallthru
      _
    %p1630 = scmp.le.s32.totalorder 2, %s11
    // Predicated region
    $region53: #{bottleneck_forward.6} parent=5 // pred_check
      %p1631 = pneg %p1630
    $region54: #{bottleneck_forward.6} parent=5 // pred_check_branch
      %1633 = sbr.rel (%p1631) target = $region56
    $region55: #{bottleneck_forward.6} parent=5 // pred_region
      %s1634 = ssub.s32 %s11, 2
      // Predicated region
      $region57: #{bottleneck_forward.6} parent=55 // pred_check
        %p1635 = pneg %p87
      $region58: #{bottleneck_forward.6} parent=55 // pred_check_branch
        %1637 = sbr.rel (%p1635) target = $region60
      $region59: #{bottleneck_forward.6} parent=55 // pred_region
        %s1638 = smul.u32 64, %s17
        %p1639 = scmp.lt.s32.totalorder %s1638, 127
        %s1640 = scalar_select %p1639, %s1638, 127
        %s1641 = smul.addr %s1640, 8
        %s1642 = scalar_lea.vmem %s2, %s1641
      $region60: #{bottleneck_forward.6} parent=55 // pred_fallthru
        _
    $region56: #{bottleneck_forward.6} parent=5 // pred_fallthru
      _
  $region6: #{bottleneck_forward.6} parent=0 // loop_footer
    %s15 = sadd.s32 1, %s11
  $region7: #{bottleneck_forward.6} parent=0 // loop_footer_branch
    %10 = sbr.rel target = $region3
  $region8: #{bottleneck_forward.6} parent=0 // loop_exit
    _

// kernel: bottleneck_forward.11
$region0: #{bottleneck_forward.11}
  #allocation0 [shape = 'u32[]', space=smem, size = 0x4, offset = 0x4, fixed_abs, tag = 'smem constant byte address 0x4 - core index']
  #allocation1 [shape = 'u32[144,128]{1,0:T(1,128)}', space=vmem, size = 0x12000, scoped, tag = 'internal scratch']
  %s0 = inlined_call_operand.vmem [shape: f32[1024,128], index: 0, kind: input, shape index: {}]
  %s1 = inlined_call_operand.vmem [shape: f32[1,128], index: 1, kind: input, shape index: {}]
  %s2 = inlined_call_operand.vmem [shape: f32[1,128], index: 2, kind: input, shape index: {}]
  %s3 = inlined_call_operand.vmem [shape: f32[1024,128], index: 3, kind: input, shape index: {}]
  %s4 = inlined_call_operand.hbm [shape: f32[1024,128], index: 4, kind: output, shape index: {}]
  %s5 = sld [smem:[#allocation0]]
  $region49: #{bottleneck_forward.11} parent=0
    _
  %s7 = ssub.s32 1, %s5
  %s8 = scalar_select 0, %s7, %s5
  $region1: #{bottleneck_forward.11} parent=0
    #allocation2 [shape = 'u8[524288]{0}', space=vmem, size = 0x80000, scoped, tag = 'output window, operand 0']
    #allocation3 [shape = 's32[2]{0}', space=sflag, size = 0x8, scoped, tag = 'scoped memory for bottleneck_forward.11']
    %9 = vsyncpa [#allocation3], 0
    %s10 = scalar_lea.sflag [#allocation3], 1
    %11 = vsyncpa %s10, 0
    loop: start=0, step=1, limit=4
    $region2: #{bottleneck_forward.11} parent=1 // loop_pre_header
      _
    $region3: #{bottleneck_forward.11} parent=1 // loop_header
      %s13 = sphi 0, %s17
      %p14 = scmp.ge.s32.totalorder %s13, 4
      %s23 = sphi 0, %s25
      %s26 = sphi 0, %s23
      %s27 = sphi 0, %s26
      %s43 = sphi 0, %s27
      %s47 = sphi 0, %s47
      %s49 = sphi 0, %s47
      %s50 = sphi 0, %s49
      %s64 = sphi 0, %s50
      %s68 = sphi 0, %s68
      %s70 = sphi 0, %s68
      %s71 = sphi 0, %s70
      %s85 = sphi 0, %s71
      %s91 = sphi 0, %s93
      %s94 = sphi 0, %s91
      %s95 = sphi 0, %s94
      %s111 = sphi 0, %s95
      %s117 = sphi 0, %s119
      %s120 = sphi 0, %s117
      %s121 = sphi 0, %s120
      %s137 = sphi 0, %s121
    $region4: #{bottleneck_forward.11} parent=1 // loop_header_branch
      %16 = sbr.rel (%p14) target = $region8
    $region5: #{bottleneck_forward.11} parent=1 // loop_body
      %s18 = ssub.s32 %s13, 1
      %s19 = ssub.s32 %s13, 2
      %s20 = sadd.s32 %s13, 1
      %s21 = ssub.s32 %s13, %s20
      %p22 = scmp.eq.s32.totalorder %s21, 0
      %s24 = sadd.s32 %s23, 1
      %s25 = scalar_select %p22, %s23, %s24
      %p28 = pneg %p22
      %p29 = scmp.eq.s32.totalorder %s13, 1
      %p30 = por %p28, %p29
      %p31 = scmp.ne.s32.totalorder %s23, %s26
      %p32 = scmp.eq.s32.totalorder %s13, 0
      %p33 = por %p31, %p32
      %p34 = scmp.ne.s32.totalorder %s23, %s26
      %p35 = scmp.eq.s32.totalorder %s18, 1
      %p36 = por %p34, %p35
      %p37 = scmp.ne.s32.totalorder %s26, %s27
      %p38 = scmp.eq.s32.totalorder %s18, 0
      %p39 = por %p37, %p38
      %p40 = scmp.ne.s32.totalorder %s26, %s27
      %p41 = scmp.eq.s32.totalorder %s19, 1
      %p42 = por %p40, %p41
      %p44 = scmp.ne.s32.totalorder %s27, %s43
      %p45 = scmp.eq.s32.totalorder %s19, 0
      %p46 = por %p44, %p45
      %s48 = sadd.s32 %s47, 1
      %p51 = scmp.eq.s32.totalorder %s13, 1
      %p52 = scmp.ne.s32.totalorder %s47, %s49
      %p53 = scmp.eq.s32.totalorder %s13, 0
      %p54 = por %p52, %p53
      %p55 = scmp.ne.s32.totalorder %s47, %s49
      %p56 = scmp.eq.s32.totalorder %s18, 1
      %p57 = por %p55, %p56
      %p58 = scmp.ne.s32.totalorder %s49, %s50
      %p59 = scmp.eq.s32.totalorder %s18, 0
      %p60 = por %p58, %p59
      %p61 = scmp.ne.s32.totalorder %s49, %s50
      %p62 = scmp.eq.s32.totalorder %s19, 1
      %p63 = por %p61, %p62
      %p65 = scmp.ne.s32.totalorder %s50, %s64
      %p66 = scmp.eq.s32.totalorder %s19, 0
      %p67 = por %p65, %p66
      %s69 = sadd.s32 %s68, 1
      %p72 = scmp.eq.s32.totalorder %s13, 1
      %p73 = scmp.ne.s32.totalorder %s68, %s70
      %p74 = scmp.eq.s32.totalorder %s13, 0
      %p75 = por %p73, %p74
      %p76 = scmp.ne.s32.totalorder %s68, %s70
      %p77 = scmp.eq.s32.totalorder %s18, 1
      %p78 = por %p76, %p77
      %p79 = scmp.ne.s32.totalorder %s70, %s71
      %p80 = scmp.eq.s32.totalorder %s18, 0
      %p81 = por %p79, %p80
      %p82 = scmp.ne.s32.totalorder %s70, %s71
      %p83 = scmp.eq.s32.totalorder %s19, 1
      %p84 = por %p82, %p83
      %p86 = scmp.ne.s32.totalorder %s71, %s85
      %p87 = scmp.eq.s32.totalorder %s19, 0
      %p88 = por %p86, %p87
      %s89 = ssub.s32 %s13, %s20
      %p90 = scmp.eq.s32.totalorder %s89, 0
      %s92 = sadd.s32 %s91, 1
      %s93 = scalar_select %p90, %s91, %s92
      %p96 = pneg %p90
      %p97 = scmp.eq.s32.totalorder %s13, 1
      %p98 = por %p96, %p97
      %p99 = scmp.ne.s32.totalorder %s91, %s94
      %p100 = scmp.eq.s32.totalorder %s13, 0
      %p101 = por %p99, %p100
      %p102 = scmp.ne.s32.totalorder %s91, %s94
      %p103 = scmp.eq.s32.totalorder %s18, 1
      %p104 = por %p102, %p103
      %p105 = scmp.ne.s32.totalorder %s94, %s95
      %p106 = scmp.eq.s32.totalorder %s18, 0
      %p107 = por %p105, %p106
      %p108 = scmp.ne.s32.totalorder %s94, %s95
      %p109 = scmp.eq.s32.totalorder %s19, 1
      %p110 = por %p108, %p109
      %p112 = scmp.ne.s32.totalorder %s95, %s111
      %p113 = scmp.eq.s32.totalorder %s19, 0
      %p114 = por %p112, %p113
      %s115 = ssub.s32 %s13, %s20
      %p116 = scmp.eq.s32.totalorder %s115, 0
      %s118 = sadd.s32 %s117, 1
      %s119 = scalar_select %p116, %s117, %s118
      %p122 = pneg %p116
      %p123 = scmp.eq.s32.totalorder %s13, 1
      %p124 = por %p122, %p123
      %p125 = scmp.ne.s32.totalorder %s117, %s120
      %p126 = scmp.eq.s32.totalorder %s13, 0
      %p127 = por %p125, %p126
      %p128 = scmp.ne.s32.totalorder %s117, %s120
      %p129 = scmp.eq.s32.totalorder %s18, 1
      %p130 = por %p128, %p129
      %p131 = scmp.ne.s32.totalorder %s120, %s121
      %p132 = scmp.eq.s32.totalorder %s18, 0
      %p133 = por %p131, %p132
      %p134 = scmp.ne.s32.totalorder %s120, %s121
      %p135 = scmp.eq.s32.totalorder %s19, 1
      %p136 = por %p134, %p135
      %p138 = scmp.ne.s32.totalorder %s121, %s137
      %p139 = scmp.eq.s32.totalorder %s19, 0
      %p140 = por %p138, %p139
      %p141 = scmp.le.s32.totalorder 1, %s13
      %p142 = scmp.lt.s32.totalorder %s13, 3
      %p143 = pnand %p141, %p142
      %p144 = pneg %p143
      // Predicated region
      $region9: #{bottleneck_forward.11} parent=5 // pred_check
        _
      $region10: #{bottleneck_forward.11} parent=5 // pred_check_branch
        %146 = sbr.rel (%p143) target = $region12
      $region11: #{bottleneck_forward.11} parent=5 // pred_region
        %s147 = ssub.s32 %s13, 1
        // Predicated region
        $region13: #{bottleneck_forward.11} parent=11 // pred_check
          %p148 = pneg %p60
        $region14: #{bottleneck_forward.11} parent=11 // pred_check_branch
          %150 = sbr.rel (%p148) target = $region16
        $region15: #{bottleneck_forward.11} parent=11 // pred_region
          _
        $region16: #{bottleneck_forward.11} parent=11 // pred_fallthru
          _
        // Predicated region
        $region17: #{bottleneck_forward.11} parent=11 // pred_check
          %p151 = pneg %p81
        $region18: #{bottleneck_forward.11} parent=11 // pred_check_branch
          %153 = sbr.rel (%p151) target = $region20
        $region19: #{bottleneck_forward.11} parent=11 // pred_region
          _
        $region20: #{bottleneck_forward.11} parent=11 // pred_fallthru
          _
      $region12: #{bottleneck_forward.11} parent=5 // pred_fallthru
        _
      %p154 = scmp.lt.s32.totalorder %s13, 2
      // Predicated region
      $region21: #{bottleneck_forward.11} parent=5 // pred_check
        %p155 = pneg %p154
      $region22: #{bottleneck_forward.11} parent=5 // pred_check_branch
        %157 = sbr.rel (%p155) target = $region24
      $region23: #{bottleneck_forward.11} parent=5 // pred_region
        // Predicated region
        $region25: #{bottleneck_forward.11} parent=23 // pred_check
          %p158 = pneg %p33
        $region26: #{bottleneck_forward.11} parent=23 // pred_check_branch
          %160 = sbr.rel (%p158) target = $region28
        $region27: #{bottleneck_forward.11} parent=23 // pred_region
          %s161 = smul.u32 64, %s13
          %p162 = scmp.lt.s32.totalorder %s161, 127
          %s163 = scalar_select %p162, %s161, 127
          %s164 = smul.addr %s163, 8
          %s165 = scalar_lea.vmem %s0, %s164
          %s166 = smul.u32 64, %s13
        $region28: #{bottleneck_forward.11} parent=23 // pred_fallthru
          _
        // Predicated region
        $region29: #{bottleneck_forward.11} parent=23 // pred_check
          %p167 = pneg %p101
        $region30: #{bottleneck_forward.11} parent=23 // pred_check_branch
          %169 = sbr.rel (%p167) target = $region32
        $region31: #{bottleneck_forward.11} parent=23 // pred_region
          %s170 = smul.u32 64, %s13
          %p171 = scmp.lt.s32.totalorder %s170, 127
          %s172 = scalar_select %p171, %s170, 127
          %s173 = smul.addr %s172, 8
          %s174 = scalar_lea.vmem %s3, %s173
          %s175 = smul.u32 64, %s13
        $region32: #{bottleneck_forward.11} parent=23 // pred_fallthru
          _
      $region24: #{bottleneck_forward.11} parent=5 // pred_fallthru
        _
      %p176 = scmp.le.s32.totalorder 1, %s13
      %p177 = scmp.lt.s32.totalorder %s13, 3
      %p178 = pnand %p176, %p177
      %p179 = pneg %p178
      // Predicated region
      $region33: #{bottleneck_forward.11} parent=5 // pred_check
        _
      $region34: #{bottleneck_forward.11} parent=5 // pred_check_branch
        %181 = sbr.rel (%p178) target = $region36
      $region35: #{bottleneck_forward.11} parent=5 // pred_region
        %s182 = ssub.s32 %s13, 1
        %s183 = smul.u32 64, %s18
        %p184 = scmp.lt.s32.totalorder %s183, 127
        %s185 = scalar_select %p184, %s183, 127
        %s186 = smul.addr %s185, 8
        %s187 = scalar_lea.vmem %s0, %s186
        %p188 = pneg %p39
        %p189 = pneg %p36
        %p190 = pneg %p60
        %p191 = pneg %p57
        %p192 = pneg %p81
        %p193 = pneg %p78
        %s194 = smul.u32 64, %s18
        %p195 = scmp.lt.s32.totalorder %s194, 127
        %s196 = scalar_select %p195, %s194, 127
        %s197 = smul.addr %s196, 8
        %s198 = scalar_lea.vmem %s3, %s197
        %p199 = pneg %p107
        %p200 = pneg %p104
        %p201 = pneg %p133
        %p202 = pneg %p130
        %s203 = sand.u32 %s120, 1
        %s204 = scalar_lea.sflag [#allocation3], %s203
        %s205 = sand.u32 %s120, 1
        %s206 = smul.addr %s205, 512
        %s207 = scalar_lea.vmem [#allocation2], %s206
        %s208 = smul.u32 64, %s18
        %p209 = scmp.lt.s32.totalorder %s208, 127
        %s210 = scalar_select %p209, %s208, 127
        %s211 = smul.addr %s210, 8
        %s212 = scalar_lea.vmem %s0, %s211
        %s213 = smul.u32 64, %s18
        %s214 = smul.u32 64, %s18
        %p215 = scmp.lt.s32.totalorder %s214, 127
        %s216 = scalar_select %p215, %s214, 127
        %s217 = smul.addr %s216, 8
        %s218 = scalar_lea.vmem %s3, %s217
        %s219 = smul.u32 64, %s18
        %s220 = smul.u32 64, %s18
        %v221 = vld [vmem:[%s1] sm:$0x1]
        %v222 = vld [vmem:[%s2] sm:$0x1]
        %v223 = vld [vmem:[%s212] sm:$0xff]
        %v224 = vld [vmem:[%s212 + $0x8] sm:$0xff]
        %v225 = vld [vmem:[%s212 + $0x10] sm:$0xff]
        %v226 = vld [vmem:[%s212 + $0x18] sm:$0xff]
        %v227 = vld [vmem:[%s212 + $0x20] sm:$0xff]
        %v228 = vld [vmem:[%s212 + $0x28] sm:$0xff]
        %v229 = vld [vmem:[%s212 + $0x30] sm:$0xff]
        %v230 = vld [vmem:[%s212 + $0x38] sm:$0xff]
        %v231 = vld [vmem:[%s212 + $0x40] sm:$0xff]
        %v232 = vld [vmem:[%s212 + $0x48] sm:$0xff]
        %v233 = vld [vmem:[%s212 + $0x50] sm:$0xff]
        %v234 = vld [vmem:[%s212 + $0x58] sm:$0xff]
        %v235 = vld [vmem:[%s212 + $0x60] sm:$0xff]
        %v236 = vld [vmem:[%s212 + $0x68] sm:$0xff]
        %v237 = vld [vmem:[%s212 + $0x70] sm:$0xff]
        %v238 = vld [vmem:[%s212 + $0x78] sm:$0xff]
        %v240 = vlaneseq
        %v241 = vshrl.u32 %v240, 7
        %v242 = vsub.s32 0, %v241
        %v243 = vrot.slane %v221, %v242
        %v245 = vmul.f32 %v223, %v243
        %v246 = vmul.f32 %v224, %v243
        %v247 = vmul.f32 %v225, %v243
        %v248 = vmul.f32 %v226, %v243
        %v249 = vmul.f32 %v227, %v243
        %v250 = vmul.f32 %v228, %v243
        %v251 = vmul.f32 %v229, %v243
        %v252 = vmul.f32 %v230, %v243
        %v253 = vmul.f32 %v231, %v243
        %v254 = vmul.f32 %v232, %v243
        %v255 = vmul.f32 %v233, %v243
        %v256 = vmul.f32 %v234, %v243
        %v257 = vmul.f32 %v235, %v243
        %v258 = vmul.f32 %v236, %v243
        %v259 = vmul.f32 %v237, %v243
        %v260 = vmul.f32 %v238, %v243
        %v262 = vlaneseq
        %v263 = vshrl.u32 %v262, 7
        %v264 = vsub.s32 0, %v263
        %v265 = vrot.slane %v222, %v264
        %v267 = vadd.f32 %v245, %v265
        %v268 = vadd.f32 %v246, %v265
        %v269 = vadd.f32 %v247, %v265
        %v270 = vadd.f32 %v248, %v265
        %v271 = vadd.f32 %v249, %v265
        %v272 = vadd.f32 %v250, %v265
        %v273 = vadd.f32 %v251, %v265
        %v274 = vadd.f32 %v252, %v265
        %v275 = vadd.f32 %v253, %v265
        %v276 = vadd.f32 %v254, %v265
        %v277 = vadd.f32 %v255, %v265
        %v278 = vadd.f32 %v256, %v265
        %v279 = vadd.f32 %v257, %v265
        %v280 = vadd.f32 %v258, %v265
        %v281 = vadd.f32 %v259, %v265
        %v282 = vadd.f32 %v260, %v265
        %v283 = vld [vmem:[%s218] sm:$0xff]
        %v284 = vld [vmem:[%s218 + $0x8] sm:$0xff]
        %v285 = vld [vmem:[%s218 + $0x10] sm:$0xff]
        %v286 = vld [vmem:[%s218 + $0x18] sm:$0xff]
        %v287 = vld [vmem:[%s218 + $0x20] sm:$0xff]
        %v288 = vld [vmem:[%s218 + $0x28] sm:$0xff]
        %v289 = vld [vmem:[%s218 + $0x30] sm:$0xff]
        %v290 = vld [vmem:[%s218 + $0x38] sm:$0xff]
        %v291 = vld [vmem:[%s218 + $0x40] sm:$0xff]
        %v292 = vld [vmem:[%s218 + $0x48] sm:$0xff]
        %v293 = vld [vmem:[%s218 + $0x50] sm:$0xff]
        %v294 = vld [vmem:[%s218 + $0x58] sm:$0xff]
        %v295 = vld [vmem:[%s218 + $0x60] sm:$0xff]
        %v296 = vld [vmem:[%s218 + $0x68] sm:$0xff]
        %v297 = vld [vmem:[%s218 + $0x70] sm:$0xff]
        %v298 = vld [vmem:[%s218 + $0x78] sm:$0xff]
        %v299 = vadd.f32 %v267, %v283
        %v300 = vadd.f32 %v268, %v284
        %v301 = vadd.f32 %v269, %v285
        %v302 = vadd.f32 %v270, %v286
        %v303 = vadd.f32 %v271, %v287
        %v304 = vadd.f32 %v272, %v288
        %v305 = vadd.f32 %v273, %v289
        %v306 = vadd.f32 %v274, %v290
        %v307 = vadd.f32 %v275, %v291
        %v308 = vadd.f32 %v276, %v292
        %v309 = vadd.f32 %v277, %v293
        %v310 = vadd.f32 %v278, %v294
        %v311 = vadd.f32 %v279, %v295
        %v312 = vadd.f32 %v280, %v296
        %v313 = vadd.f32 %v281, %v297
        %v314 = vadd.f32 %v282, %v298
        %v315 = vmax.f32 %v299, 0.0
        %v316 = vmax.f32 %v300, 0.0
        %v317 = vmax.f32 %v301, 0.0
        %v318 = vmax.f32 %v302, 0.0
        %v319 = vmax.f32 %v303, 0.0
        %v320 = vmax.f32 %v304, 0.0
        %v321 = vmax.f32 %v305, 0.0
        %v322 = vmax.f32 %v306, 0.0
        %v323 = vmax.f32 %v307, 0.0
        %v324 = vmax.f32 %v308, 0.0
        %v325 = vmax.f32 %v309, 0.0
        %v326 = vmax.f32 %v310, 0.0
        %v327 = vmax.f32 %v311, 0.0
        %v328 = vmax.f32 %v312, 0.0
        %v329 = vmax.f32 %v313, 0.0
        %v330 = vmax.f32 %v314, 0.0
        %331 = vst [vmem:[%s207] sm:$0xff] %v315
        %332 = vst [vmem:[%s207 + $0x8] sm:$0xff] %v316
        %333 = vst [vmem:[%s207 + $0x10] sm:$0xff] %v317
        %334 = vst [vmem:[%s207 + $0x18] sm:$0xff] %v318
        %335 = vst [vmem:[%s207 + $0x20] sm:$0xff] %v319
        %336 = vst [vmem:[%s207 + $0x28] sm:$0xff] %v320
        %337 = vst [vmem:[%s207 + $0x30] sm:$0xff] %v321
        %338 = vst [vmem:[%s207 + $0x38] sm:$0xff] %v322
        %339 = vst [vmem:[%s207 + $0x40] sm:$0xff] %v323
        %340 = vst [vmem:[%s207 + $0x48] sm:$0xff] %v324
        %341 = vst [vmem:[%s207 + $0x50] sm:$0xff] %v325
        %342 = vst [vmem:[%s207 + $0x58] sm:$0xff] %v326
        %343 = vst [vmem:[%s207 + $0x60] sm:$0xff] %v327
        %344 = vst [vmem:[%s207 + $0x68] sm:$0xff] %v328
        %345 = vst [vmem:[%s207 + $0x70] sm:$0xff] %v329
        %346 = vst [vmem:[%s207 + $0x78] sm:$0xff] %v330
        %v347 = vld [vmem:[%s212 + $0x80] sm:$0xff]
        %v348 = vld [vmem:[%s212 + $0x88] sm:$0xff]
        %v349 = vld [vmem:[%s212 + $0x90] sm:$0xff]
        %v350 = vld [vmem:[%s212 + $0x98] sm:$0xff]
        %v351 = vld [vmem:[%s212 + $0xa0] sm:$0xff]
        %v352 = vld [vmem:[%s212 + $0xa8] sm:$0xff]
        %v353 = vld [vmem:[%s212 + $0xb0] sm:$0xff]
        %v354 = vld [vmem:[%s212 + $0xb8] sm:$0xff]
        %v355 = vld [vmem:[%s212 + $0xc0] sm:$0xff]
        %v356 = vld [vmem:[%s212 + $0xc8] sm:$0xff]
        %v357 = vld [vmem:[%s212 + $0xd0] sm:$0xff]
        %v358 = vld [vmem:[%s212 + $0xd8] sm:$0xff]
        %v359 = vld [vmem:[%s212 + $0xe0] sm:$0xff]
        %v360 = vld [vmem:[%s212 + $0xe8] sm:$0xff]
        %v361 = vld [vmem:[%s212 + $0xf0] sm:$0xff]
        %v362 = vld [vmem:[%s212 + $0xf8] sm:$0xff]
        %v363 = vmul.f32 %v347, %v243
        %v364 = vmul.f32 %v348, %v243
        %v365 = vmul.f32 %v349, %v243
        %v366 = vmul.f32 %v350, %v243
        %v367 = vmul.f32 %v351, %v243
        %v368 = vmul.f32 %v352, %v243
        %v369 = vmul.f32 %v353, %v243
        %v370 = vmul.f32 %v354, %v243
        %v371 = vmul.f32 %v355, %v243
        %v372 = vmul.f32 %v356, %v243
        %v373 = vmul.f32 %v357, %v243
        %v374 = vmul.f32 %v358, %v243
        %v375 = vmul.f32 %v359, %v243
        %v376 = vmul.f32 %v360, %v243
        %v377 = vmul.f32 %v361, %v243
        %v378 = vmul.f32 %v362, %v243
        %v379 = vadd.f32 %v363, %v265
        %v380 = vadd.f32 %v364, %v265
        %v381 = vadd.f32 %v365, %v265
        %v382 = vadd.f32 %v366, %v265
        %v383 = vadd.f32 %v367, %v265
        %v384 = vadd.f32 %v368, %v265
        %v385 = vadd.f32 %v369, %v265
        %v386 = vadd.f32 %v370, %v265
        %v387 = vadd.f32 %v371, %v265
        %v388 = vadd.f32 %v372, %v265
        %v389 = vadd.f32 %v373, %v265
        %v390 = vadd.f32 %v374, %v265
        %v391 = vadd.f32 %v375, %v265
        %v392 = vadd.f32 %v376, %v265
        %v393 = vadd.f32 %v377, %v265
        %v394 = vadd.f32 %v378, %v265
        %v395 = vld [vmem:[%s218 + $0x80] sm:$0xff]
        %v396 = vld [vmem:[%s218 + $0x88] sm:$0xff]
        %v397 = vld [vmem:[%s218 + $0x90] sm:$0xff]
        %v398 = vld [vmem:[%s218 + $0x98] sm:$0xff]
        %v399 = vld [vmem:[%s218 + $0xa0] sm:$0xff]
        %v400 = vld [vmem:[%s218 + $0xa8] sm:$0xff]
        %v401 = vld [vmem:[%s218 + $0xb0] sm:$0xff]
        %v402 = vld [vmem:[%s218 + $0xb8] sm:$0xff]
        %v403 = vld [vmem:[%s218 + $0xc0] sm:$0xff]
        %v404 = vld [vmem:[%s218 + $0xc8] sm:$0xff]
        %v405 = vld [vmem:[%s218 + $0xd0] sm:$0xff]
        %v406 = vld [vmem:[%s218 + $0xd8] sm:$0xff]
        %v407 = vld [vmem:[%s218 + $0xe0] sm:$0xff]
        %v408 = vld [vmem:[%s218 + $0xe8] sm:$0xff]
        %v409 = vld [vmem:[%s218 + $0xf0] sm:$0xff]
        %v410 = vld [vmem:[%s218 + $0xf8] sm:$0xff]
        %v411 = vadd.f32 %v379, %v395
        %v412 = vadd.f32 %v380, %v396
        %v413 = vadd.f32 %v381, %v397
        %v414 = vadd.f32 %v382, %v398
        %v415 = vadd.f32 %v383, %v399
        %v416 = vadd.f32 %v384, %v400
        %v417 = vadd.f32 %v385, %v401
        %v418 = vadd.f32 %v386, %v402
        %v419 = vadd.f32 %v387, %v403
        %v420 = vadd.f32 %v388, %v404
        %v421 = vadd.f32 %v389, %v405
        %v422 = vadd.f32 %v390, %v406
        %v423 = vadd.f32 %v391, %v407
        %v424 = vadd.f32 %v392, %v408
        %v425 = vadd.f32 %v393, %v409
        %v426 = vadd.f32 %v394, %v410
        %v427 = vmax.f32 %v411, 0.0
        %v428 = vmax.f32 %v412, 0.0
        %v429 = vmax.f32 %v413, 0.0
        %v430 = vmax.f32 %v414, 0.0
        %v431 = vmax.f32 %v415, 0.0
        %v432 = vmax.f32 %v416, 0.0
        %v433 = vmax.f32 %v417, 0.0
        %v434 = vmax.f32 %v418, 0.0
        %v435 = vmax.f32 %v419, 0.0
        %v436 = vmax.f32 %v420, 0.0
        %v437 = vmax.f32 %v421, 0.0
        %v438 = vmax.f32 %v422, 0.0
        %v439 = vmax.f32 %v423, 0.0
        %v440 = vmax.f32 %v424, 0.0
        %v441 = vmax.f32 %v425, 0.0
        %v442 = vmax.f32 %v426, 0.0
        %443 = vst [vmem:[%s207 + $0x80] sm:$0xff] %v427
        %444 = vst [vmem:[%s207 + $0x88] sm:$0xff] %v428
        %445 = vst [vmem:[%s207 + $0x90] sm:$0xff] %v429
        %446 = vst [vmem:[%s207 + $0x98] sm:$0xff] %v430
        %447 = vst [vmem:[%s207 + $0xa0] sm:$0xff] %v431
        %448 = vst [vmem:[%s207 + $0xa8] sm:$0xff] %v432
        %449 = vst [vmem:[%s207 + $0xb0] sm:$0xff] %v433
        %450 = vst [vmem:[%s207 + $0xb8] sm:$0xff] %v434
        %451 = vst [vmem:[%s207 + $0xc0] sm:$0xff] %v435
        %452 = vst [vmem:[%s207 + $0xc8] sm:$0xff] %v436
        %453 = vst [vmem:[%s207 + $0xd0] sm:$0xff] %v437
        %454 = vst [vmem:[%s207 + $0xd8] sm:$0xff] %v438
        %455 = vst [vmem:[%s207 + $0xe0] sm:$0xff] %v439
        %456 = vst [vmem:[%s207 + $0xe8] sm:$0xff] %v440
        %457 = vst [vmem:[%s207 + $0xf0] sm:$0xff] %v441
        %458 = vst [vmem:[%s207 + $0xf8] sm:$0xff] %v442
        %v459 = vld [vmem:[%s212 + $0x100] sm:$0xff]
        %v460 = vld [vmem:[%s212 + $0x108] sm:$0xff]
        %v461 = vld [vmem:[%s212 + $0x110] sm:$0xff]
        %v462 = vld [vmem:[%s212 + $0x118] sm:$0xff]
        %v463 = vld [vmem:[%s212 + $0x120] sm:$0xff]
        %v464 = vld [vmem:[%s212 + $0x128] sm:$0xff]
        %v465 = vld [vmem:[%s212 + $0x130] sm:$0xff]
        %v466 = vld [vmem:[%s212 + $0x138] sm:$0xff]
        %v467 = vld [vmem:[%s212 + $0x140] sm:$0xff]
        %v468 = vld [vmem:[%s212 + $0x148] sm:$0xff]
        %v469 = vld [vmem:[%s212 + $0x150] sm:$0xff]
        %v470 = vld [vmem:[%s212 + $0x158] sm:$0xff]
        %v471 = vld [vmem:[%s212 + $0x160] sm:$0xff]
        %v472 = vld [vmem:[%s212 + $0x168] sm:$0xff]
        %v473 = vld [vmem:[%s212 + $0x170] sm:$0xff]
        %v474 = vld [vmem:[%s212 + $0x178] sm:$0xff]
        %v475 = vmul.f32 %v459, %v243
        %v476 = vmul.f32 %v460, %v243
        %v477 = vmul.f32 %v461, %v243
        %v478 = vmul.f32 %v462, %v243
        %v479 = vmul.f32 %v463, %v243
        %v480 = vmul.f32 %v464, %v243
        %v481 = vmul.f32 %v465, %v243
        %v482 = vmul.f32 %v466, %v243
        %v483 = vmul.f32 %v467, %v243
        %v484 = vmul.f32 %v468, %v243
        %v485 = vmul.f32 %v469, %v243
        %v486 = vmul.f32 %v470, %v243
        %v487 = vmul.f32 %v471, %v243
        %v488 = vmul.f32 %v472, %v243
        %v489 = vmul.f32 %v473, %v243
        %v490 = vmul.f32 %v474, %v243
        %v491 = vadd.f32 %v475, %v265
        %v492 = vadd.f32 %v476, %v265
        %v493 = vadd.f32 %v477, %v265
        %v494 = vadd.f32 %v478, %v265
        %v495 = vadd.f32 %v479, %v265
        %v496 = vadd.f32 %v480, %v265
        %v497 = vadd.f32 %v481, %v265
        %v498 = vadd.f32 %v482, %v265
        %v499 = vadd.f32 %v483, %v265
        %v500 = vadd.f32 %v484, %v265
        %v501 = vadd.f32 %v485, %v265
        %v502 = vadd.f32 %v486, %v265
        %v503 = vadd.f32 %v487, %v265
        %v504 = vadd.f32 %v488, %v265
        %v505 = vadd.f32 %v489, %v265
        %v506 = vadd.f32 %v490, %v265
        %v507 = vld [vmem:[%s218 + $0x100] sm:$0xff]
        %v508 = vld [vmem:[%s218 + $0x108] sm:$0xff]
        %v509 = vld [vmem:[%s218 + $0x110] sm:$0xff]
        %v510 = vld [vmem:[%s218 + $0x118] sm:$0xff]
        %v511 = vld [vmem:[%s218 + $0x120] sm:$0xff]
        %v512 = vld [vmem:[%s218 + $0x128] sm:$0xff]
        %v513 = vld [vmem:[%s218 + $0x130] sm:$0xff]
        %v514 = vld [vmem:[%s218 + $0x138] sm:$0xff]
        %v515 = vld [vmem:[%s218 + $0x140] sm:$0xff]
        %v516 = vld [vmem:[%s218 + $0x148] sm:$0xff]
        %v517 = vld [vmem:[%s218 + $0x150] sm:$0xff]
        %v518 = vld [vmem:[%s218 + $0x158] sm:$0xff]
        %v519 = vld [vmem:[%s218 + $0x160] sm:$0xff]
        %v520 = vld [vmem:[%s218 + $0x168] sm:$0xff]
        %v521 = vld [vmem:[%s218 + $0x170] sm:$0xff]
        %v522 = vld [vmem:[%s218 + $0x178] sm:$0xff]
        %v523 = vadd.f32 %v491, %v507
        %v524 = vadd.f32 %v492, %v508
        %v525 = vadd.f32 %v493, %v509
        %v526 = vadd.f32 %v494, %v510
        %v527 = vadd.f32 %v495, %v511
        %v528 = vadd.f32 %v496, %v512
        %v529 = vadd.f32 %v497, %v513
        %v530 = vadd.f32 %v498, %v514
        %v531 = vadd.f32 %v499, %v515
        %v532 = vadd.f32 %v500, %v516
        %v533 = vadd.f32 %v501, %v517
        %v534 = vadd.f32 %v502, %v518
        %v535 = vadd.f32 %v503, %v519
        %v536 = vadd.f32 %v504, %v520
        %v537 = vadd.f32 %v505, %v521
        %v538 = vadd.f32 %v506, %v522
        %v539 = vmax.f32 %v523, 0.0
        %v540 = vmax.f32 %v524, 0.0
        %v541 = vmax.f32 %v525, 0.0
        %v542 = vmax.f32 %v526, 0.0
        %v543 = vmax.f32 %v527, 0.0
        %v544 = vmax.f32 %v528, 0.0
        %v545 = vmax.f32 %v529, 0.0
        %v546 = vmax.f32 %v530, 0.0
        %v547 = vmax.f32 %v531, 0.0
        %v548 = vmax.f32 %v532, 0.0
        %v549 = vmax.f32 %v533, 0.0
        %v550 = vmax.f32 %v534, 0.0
        %v551 = vmax.f32 %v535, 0.0
        %v552 = vmax.f32 %v536, 0.0
        %v553 = vmax.f32 %v537, 0.0
        %v554 = vmax.f32 %v538, 0.0
        %555 = vst [vmem:[%s207 + $0x100] sm:$0xff] %v539
        %556 = vst [vmem:[%s207 + $0x108] sm:$0xff] %v540
        %557 = vst [vmem:[%s207 + $0x110] sm:$0xff] %v541
        %558 = vst [vmem:[%s207 + $0x118] sm:$0xff] %v542
        %559 = vst [vmem:[%s207 + $0x120] sm:$0xff] %v543
        %560 = vst [vmem:[%s207 + $0x128] sm:$0xff] %v544
        %561 = vst [vmem:[%s207 + $0x130] sm:$0xff] %v545
        %562 = vst [vmem:[%s207 + $0x138] sm:$0xff] %v546
        %563 = vst [vmem:[%s207 + $0x140] sm:$0xff] %v547
        %564 = vst [vmem:[%s207 + $0x148] sm:$0xff] %v548
        %565 = vst [vmem:[%s207 + $0x150] sm:$0xff] %v549
        %566 = vst [vmem:[%s207 + $0x158] sm:$0xff] %v550
        %567 = vst [vmem:[%s207 + $0x160] sm:$0xff] %v551
        %568 = vst [vmem:[%s207 + $0x168] sm:$0xff] %v552
        %569 = vst [vmem:[%s207 + $0x170] sm:$0xff] %v553
        %570 = vst [vmem:[%s207 + $0x178] sm:$0xff] %v554
        %v571 = vld [vmem:[%s212 + $0x180] sm:$0xff]
        %v572 = vld [vmem:[%s212 + $0x188] sm:$0xff]
        %v573 = vld [vmem:[%s212 + $0x190] sm:$0xff]
        %v574 = vld [vmem:[%s212 + $0x198] sm:$0xff]
        %v575 = vld [vmem:[%s212 + $0x1a0] sm:$0xff]
        %v576 = vld [vmem:[%s212 + $0x1a8] sm:$0xff]
        %v577 = vld [vmem:[%s212 + $0x1b0] sm:$0xff]
        %v578 = vld [vmem:[%s212 + $0x1b8] sm:$0xff]
        %v579 = vld [vmem:[%s212 + $0x1c0] sm:$0xff]
        %v580 = vld [vmem:[%s212 + $0x1c8] sm:$0xff]
        %v581 = vld [vmem:[%s212 + $0x1d0] sm:$0xff]
        %v582 = vld [vmem:[%s212 + $0x1d8] sm:$0xff]
        %v583 = vld [vmem:[%s212 + $0x1e0] sm:$0xff]
        %v584 = vld [vmem:[%s212 + $0x1e8] sm:$0xff]
        %v585 = vld [vmem:[%s212 + $0x1f0] sm:$0xff]
        %v586 = vld [vmem:[%s212 + $0x1f8] sm:$0xff]
        %v587 = vmul.f32 %v571, %v243
        %v588 = vmul.f32 %v572, %v243
        %v589 = vmul.f32 %v573, %v243
        %v590 = vmul.f32 %v574, %v243
        %v591 = vmul.f32 %v575, %v243
        %v592 = vmul.f32 %v576, %v243
        %v593 = vmul.f32 %v577, %v243
        %v594 = vmul.f32 %v578, %v243
        %v595 = vmul.f32 %v579, %v243
        %v596 = vmul.f32 %v580, %v243
        %v597 = vmul.f32 %v581, %v243
        %v598 = vmul.f32 %v582, %v243
        %v599 = vmul.f32 %v583, %v243
        %v600 = vmul.f32 %v584, %v243
        %v601 = vmul.f32 %v585, %v243
        %v602 = vmul.f32 %v586, %v243
        %v603 = vadd.f32 %v587, %v265
        %v604 = vadd.f32 %v588, %v265
        %v605 = vadd.f32 %v589, %v265
        %v606 = vadd.f32 %v590, %v265
        %v607 = vadd.f32 %v591, %v265
        %v608 = vadd.f32 %v592, %v265
        %v609 = vadd.f32 %v593, %v265
        %v610 = vadd.f32 %v594, %v265
        %v611 = vadd.f32 %v595, %v265
        %v612 = vadd.f32 %v596, %v265
        %v613 = vadd.f32 %v597, %v265
        %v614 = vadd.f32 %v598, %v265
        %v615 = vadd.f32 %v599, %v265
        %v616 = vadd.f32 %v600, %v265
        %v617 = vadd.f32 %v601, %v265
        %v618 = vadd.f32 %v602, %v265
        %v619 = vld [vmem:[%s218 + $0x180] sm:$0xff]
        %v620 = vld [vmem:[%s218 + $0x188] sm:$0xff]
        %v621 = vld [vmem:[%s218 + $0x190] sm:$0xff]
        %v622 = vld [vmem:[%s218 + $0x198] sm:$0xff]
        %v623 = vld [vmem:[%s218 + $0x1a0] sm:$0xff]
        %v624 = vld [vmem:[%s218 + $0x1a8] sm:$0xff]
        %v625 = vld [vmem:[%s218 + $0x1b0] sm:$0xff]
        %v626 = vld [vmem:[%s218 + $0x1b8] sm:$0xff]
        %v627 = vld [vmem:[%s218 + $0x1c0] sm:$0xff]
        %v628 = vld [vmem:[%s218 + $0x1c8] sm:$0xff]
        %v629 = vld [vmem:[%s218 + $0x1d0] sm:$0xff]
        %v630 = vld [vmem:[%s218 + $0x1d8] sm:$0xff]
        %v631 = vld [vmem:[%s218 + $0x1e0] sm:$0xff]
        %v632 = vld [vmem:[%s218 + $0x1e8] sm:$0xff]
        %v633 = vld [vmem:[%s218 + $0x1f0] sm:$0xff]
        %v634 = vld [vmem:[%s218 + $0x1f8] sm:$0xff]
        %v635 = vadd.f32 %v603, %v619
        %v636 = vadd.f32 %v604, %v620
        %v637 = vadd.f32 %v605, %v621
        %v638 = vadd.f32 %v606, %v622
        %v639 = vadd.f32 %v607, %v623
        %v640 = vadd.f32 %v608, %v624
        %v641 = vadd.f32 %v609, %v625
        %v642 = vadd.f32 %v610, %v626
        %v643 = vadd.f32 %v611, %v627
        %v644 = vadd.f32 %v612, %v628
        %v645 = vadd.f32 %v613, %v629
        %v646 = vadd.f32 %v614, %v630
        %v647 = vadd.f32 %v615, %v631
        %v648 = vadd.f32 %v616, %v632
        %v649 = vadd.f32 %v617, %v633
        %v650 = vadd.f32 %v618, %v634
        %v651 = vmax.f32 %v635, 0.0
        %v652 = vmax.f32 %v636, 0.0
        %v653 = vmax.f32 %v637, 0.0
        %v654 = vmax.f32 %v638, 0.0
        %v655 = vmax.f32 %v639, 0.0
        %v656 = vmax.f32 %v640, 0.0
        %v657 = vmax.f32 %v641, 0.0
        %v658 = vmax.f32 %v642, 0.0
        %v659 = vmax.f32 %v643, 0.0
        %v660 = vmax.f32 %v644, 0.0
        %v661 = vmax.f32 %v645, 0.0
        %v662 = vmax.f32 %v646, 0.0
        %v663 = vmax.f32 %v647, 0.0
        %v664 = vmax.f32 %v648, 0.0
        %v665 = vmax.f32 %v649, 0.0
        %v666 = vmax.f32 %v650, 0.0
        %667 = vst [vmem:[%s207 + $0x180] sm:$0xff] %v651
        %668 = vst [vmem:[%s207 + $0x188] sm:$0xff] %v652
        %669 = vst [vmem:[%s207 + $0x190] sm:$0xff] %v653
        %670 = vst [vmem:[%s207 + $0x198] sm:$0xff] %v654
        %671 = vst [vmem:[%s207 + $0x1a0] sm:$0xff] %v655
        %672 = vst [vmem:[%s207 + $0x1a8] sm:$0xff] %v656
        %673 = vst [vmem:[%s207 + $0x1b0] sm:$0xff] %v657
        %674 = vst [vmem:[%s207 + $0x1b8] sm:$0xff] %v658
        %675 = vst [vmem:[%s207 + $0x1c0] sm:$0xff] %v659
        %676 = vst [vmem:[%s207 + $0x1c8] sm:$0xff] %v660
        %677 = vst [vmem:[%s207 + $0x1d0] sm:$0xff] %v661
        %678 = vst [vmem:[%s207 + $0x1d8] sm:$0xff] %v662
        %679 = vst [vmem:[%s207 + $0x1e0] sm:$0xff] %v663
        %680 = vst [vmem:[%s207 + $0x1e8] sm:$0xff] %v664
        %681 = vst [vmem:[%s207 + $0x1f0] sm:$0xff] %v665
        %682 = vst [vmem:[%s207 + $0x1f8] sm:$0xff] %v666
        %s683 = sand.u32 %s120, 1
        %s684 = scalar_lea.sflag [#allocation3], %s683
        %s685 = sand.u32 %s120, 1
        %s686 = smul.addr %s685, 512
        %s687 = scalar_lea.vmem [#allocation2], %s686
        // Predicated region
        $region37: #{bottleneck_forward.11} parent=35 // pred_check
          %p688 = pneg %p130
        $region38: #{bottleneck_forward.11} parent=35 // pred_check_branch
          %690 = sbr.rel (%p688) target = $region40
        $region39: #{bottleneck_forward.11} parent=35 // pred_region
          %s691 = smul.u32 64, %s18
          %s693 = ssub.s32 8192, 8192
          %694 = vsyncadd %s684, %s693
          %s695 = smul.addr %s691, 128
          %s696 = scalar_lea.hbm %s4, %s695
          %s697 = sshll.u32 %s687, 4
          %s698 = int_to_ptr.vmem [resolvable:$true] %s697
          %703 = dma.vmem_to_hbm [thread:$0]  %s698, 8192, %s696, %s684, 128, 128, 8
        $region40: #{bottleneck_forward.11} parent=35 // pred_fallthru
          _
      $region36: #{bottleneck_forward.11} parent=5 // pred_fallthru
        _
      %p704 = scmp.le.s32.totalorder 2, %s13
      // Predicated region
      $region41: #{bottleneck_forward.11} parent=5 // pred_check
        %p705 = pneg %p704
      $region42: #{bottleneck_forward.11} parent=5 // pred_check_branch
        %707 = sbr.rel (%p705) target = $region44
      $region43: #{bottleneck_forward.11} parent=5 // pred_region
        %s708 = ssub.s32 %s13, 2
        // Predicated region
        $region45: #{bottleneck_forward.11} parent=43 // pred_check
          %p709 = pneg %p136
        $region46: #{bottleneck_forward.11} parent=43 // pred_check_branch
          %711 = sbr.rel (%p709) target = $region48
        $region47: #{bottleneck_forward.11} parent=43 // pred_region
          %s712 = sand.u32 %s121, 1
          %s713 = scalar_lea.sflag [#allocation3], %s712
          %s714 = sand.u32 %s121, 1
          %s715 = smul.addr %s714, 512
          %s716 = scalar_lea.vmem [#allocation2], %s715
          %717 = dma.done %s713, 8192
        $region48: #{bottleneck_forward.11} parent=43 // pred_fallthru
          _
      $region44: #{bottleneck_forward.11} parent=5 // pred_fallthru
        _
    $region6: #{bottleneck_forward.11} parent=1 // loop_footer
      %s17 = sadd.s32 1, %s13
    $region7: #{bottleneck_forward.11} parent=1 // loop_footer_branch
      %12 = sbr.rel target = $region3
    $region8: #{bottleneck_forward.11} parent=1 // loop_exit
      _
    %718 = vsyncpa [#allocation3], 1
    %s719 = scalar_lea.sflag [#allocation3], 1
    %720 = vsyncpa %s719, 1

// kernel: bottleneck_forward.8
$region0: #{bottleneck_forward.8}
  #allocation0 [shape = 'u32[]', space=smem, size = 0x4, offset = 0x4, fixed_abs, tag = 'smem constant byte address 0x4 - core index']
  #allocation1 [shape = 'u32[144,128]{1,0:T(1,128)}', space=vmem, size = 0x12000, scoped, tag = 'internal scratch']
  #allocation2 [shape = 'f32[64,128]{1,0:T(8,128)}', space=vmem, size = 0x8000, scoped, tag = 'scratch operand']
  %s0 = inlined_call_operand.vmem [shape: bf16[2,10,10,10,128], index: 0, kind: input, shape index: {}]
  %s1 = inlined_call_operand.vmem [shape: bf16[3,9,128,128], index: 1, kind: input, shape index: {}]
  %s2 = inlined_call_operand.vmem [shape: f32[2,8,64,128], index: 2, kind: output, shape index: {0}]
  %s3 = inlined_call_operand.vmem [shape: f32[1,128], index: 3, kind: output, shape index: {1}]
  %s4 = inlined_call_operand.vmem [shape: f32[1,128], index: 4, kind: output, shape index: {2}]
  %5 = xla_tuple %s2, %s3, %s4
  %s6 = sld [smem:[#allocation0]]
  $region69: #{bottleneck_forward.8} parent=0
    _
  %s8 = ssub.s32 1, %s6
  %s9 = scalar_select 0, %s8, %s6
  loop: start=0, step=1, limit=50
  $region2: #{bottleneck_forward.8} parent=0 // loop_pre_header
    _
  $region3: #{bottleneck_forward.8} parent=0 // loop_header
    %s11 = sphi 0, %s15
    %p12 = scmp.ge.s32.totalorder %s11, 50
    %s18 = sphi 0, %s37
    %s19 = sphi 0, %s33
    %s20 = sphi 0, %s29
    %s21 = sphi 0, %s18
    %s22 = sphi 0, %s19
    %s23 = sphi 0, %s20
    %s24 = sphi 0, %s21
    %s25 = sphi 0, %s22
    %s26 = sphi 0, %s23
    %s44 = sphi 0, %s46
    %s47 = sphi 0, %s44
    %s48 = sphi 0, %s47
    %s64 = sphi 0, %s48
    %s68 = sphi 0, %s68
    %s70 = sphi 0, %s68
    %s71 = sphi 0, %s70
    %s85 = sphi 0, %s71
    %s93 = sphi 0, %s95
    %s96 = sphi 0, %s93
    %s97 = sphi 0, %s96
    %s113 = sphi 0, %s97
    %s117 = sphi 0, %s117
    %s119 = sphi 0, %s117
    %s120 = sphi 0, %s119
    %s134 = sphi 0, %s120
    %s138 = sphi 0, %s138
    %s140 = sphi 0, %s138
    %s141 = sphi 0, %s140
    %s155 = sphi 0, %s141
  $region4: #{bottleneck_forward.8} parent=0 // loop_header_branch
    %14 = sbr.rel (%p12) target = $region8
  $region5: #{bottleneck_forward.8} parent=0 // loop_body
    %s16 = ssub.s32 %s11, 1
    %s17 = ssub.s32 %s11, 2
    %s27 = sadd.s32 1, %s20
    %p28 = scmp.ge.s32.totalorder %s27, 3
    %s29 = scalar_select %p28, 0, %s27
    %s30 = sadd.s32 1, %s19
    %s31 = scalar_select %p28, %s30, %s19
    %p32 = scmp.ge.s32.totalorder %s31, 8
    %s33 = scalar_select %p32, 0, %s31
    %s34 = sadd.s32 1, %s18
    %s35 = scalar_select %p32, %s34, %s18
    %p36 = scmp.ge.s32.totalorder %s35, 2
    %s37 = scalar_select %p36, 0, %s35
    %s38 = sadd.s32 %s19, %s20
    %s39 = sadd.s32 %s33, %s29
    %s40 = ssub.s32 %s18, %s37
    %s41 = ssub.s32 %s38, %s39
    %s42 = sor.u32 %s40, %s41
    %p43 = scmp.eq.s32.totalorder %s42, 0
    %s45 = sadd.s32 %s44, 1
    %s46 = scalar_select %p43, %s44, %s45
    %p49 = pneg %p43
    %p50 = scmp.eq.s32.totalorder %s11, 47
    %p51 = por %p49, %p50
    %p52 = scmp.ne.s32.totalorder %s44, %s47
    %p53 = scmp.eq.s32.totalorder %s11, 0
    %p54 = por %p52, %p53
    %p55 = scmp.ne.s32.totalorder %s44, %s47
    %p56 = scmp.eq.s32.totalorder %s16, 47
    %p57 = por %p55, %p56
    %p58 = scmp.ne.s32.totalorder %s47, %s48
    %p59 = scmp.eq.s32.totalorder %s16, 0
    %p60 = por %p58, %p59
    %p61 = scmp.ne.s32.totalorder %s47, %s48
    %p62 = scmp.eq.s32.totalorder %s17, 47
    %p63 = por %p61, %p62
    %p65 = scmp.ne.s32.totalorder %s48, %s64
    %p66 = scmp.eq.s32.totalorder %s17, 0
    %p67 = por %p65, %p66
    %s69 = sadd.s32 %s68, 1
    %p72 = scmp.eq.s32.totalorder %s11, 47
    %p73 = scmp.ne.s32.totalorder %s68, %s70
    %p74 = scmp.eq.s32.totalorder %s11, 0
    %p75 = por %p73, %p74
    %p76 = scmp.ne.s32.totalorder %s68, %s70
    %p77 = scmp.eq.s32.totalorder %s16, 47
    %p78 = por %p76, %p77
    %p79 = scmp.ne.s32.totalorder %s70, %s71
    %p80 = scmp.eq.s32.totalorder %s16, 0
    %p81 = por %p79, %p80
    %p82 = scmp.ne.s32.totalorder %s70, %s71
    %p83 = scmp.eq.s32.totalorder %s17, 47
    %p84 = por %p82, %p83
    %p86 = scmp.ne.s32.totalorder %s71, %s85
    %p87 = scmp.eq.s32.totalorder %s17, 0
    %p88 = por %p86, %p87
    %s89 = ssub.s32 %s18, %s37
    %s90 = ssub.s32 %s19, %s33
    %s91 = sor.u32 %s89, %s90
    %p92 = scmp.eq.s32.totalorder %s91, 0
    %s94 = sadd.s32 %s93, 1
    %s95 = scalar_select %p92, %s93, %s94
    %p98 = pneg %p92
    %p99 = scmp.eq.s32.totalorder %s11, 47
    %p100 = por %p98, %p99
    %p101 = scmp.ne.s32.totalorder %s93, %s96
    %p102 = scmp.eq.s32.totalorder %s11, 0
    %p103 = por %p101, %p102
    %p104 = scmp.ne.s32.totalorder %s93, %s96
    %p105 = scmp.eq.s32.totalorder %s16, 47
    %p106 = por %p104, %p105
    %p107 = scmp.ne.s32.totalorder %s96, %s97
    %p108 = scmp.eq.s32.totalorder %s16, 0
    %p109 = por %p107, %p108
    %p110 = scmp.ne.s32.totalorder %s96, %s97
    %p111 = scmp.eq.s32.totalorder %s17, 47
    %p112 = por %p110, %p111
    %p114 = scmp.ne.s32.totalorder %s97, %s113
    %p115 = scmp.eq.s32.totalorder %s17, 0
    %p116 = por %p114, %p115
    %s118 = sadd.s32 %s117, 1
    %p121 = scmp.eq.s32.totalorder %s11, 47
    %p122 = scmp.ne.s32.totalorder %s117, %s119
    %p123 = scmp.eq.s32.totalorder %s11, 0
    %p124 = por %p122, %p123
    %p125 = scmp.ne.s32.totalorder %s117, %s119
    %p126 = scmp.eq.s32.totalorder %s16, 47
    %p127 = por %p125, %p126
    %p128 = scmp.ne.s32.totalorder %s119, %s120
    %p129 = scmp.eq.s32.totalorder %s16, 0
    %p130 = por %p128, %p129
    %p131 = scmp.ne.s32.totalorder %s119, %s120
    %p132 = scmp.eq.s32.totalorder %s17, 47
    %p133 = por %p131, %p132
    %p135 = scmp.ne.s32.totalorder %s120, %s134
    %p136 = scmp.eq.s32.totalorder %s17, 0
    %p137 = por %p135, %p136
    %s139 = sadd.s32 %s138, 1
    %p142 = scmp.eq.s32.totalorder %s11, 47
    %p143 = scmp.ne.s32.totalorder %s138, %s140
    %p144 = scmp.eq.s32.totalorder %s11, 0
    %p145 = por %p143, %p144
    %p146 = scmp.ne.s32.totalorder %s138, %s140
    %p147 = scmp.eq.s32.totalorder %s16, 47
    %p148 = por %p146, %p147
    %p149 = scmp.ne.s32.totalorder %s140, %s141
    %p150 = scmp.eq.s32.totalorder %s16, 0
    %p151 = por %p149, %p150
    %p152 = scmp.ne.s32.totalorder %s140, %s141
    %p153 = scmp.eq.s32.totalorder %s17, 47
    %p154 = por %p152, %p153
    %p156 = scmp.ne.s32.totalorder %s141, %s155
    %p157 = scmp.eq.s32.totalorder %s17, 0
    %p158 = por %p156, %p157
    %p159 = scmp.le.s32.totalorder 1, %s11
    %p160 = scmp.lt.s32.totalorder %s11, 49
    %p161 = pnand %p159, %p160
    %p162 = pneg %p161
    // Predicated region
    $region9: #{bottleneck_forward.8} parent=5 // pred_check
      _
    $region10: #{bottleneck_forward.8} parent=5 // pred_check_branch
      %164 = sbr.rel (%p161) target = $region12
    $region11: #{bottleneck_forward.8} parent=5 // pred_region
      %s165 = ssub.s32 %s11, 1
      // Predicated region
      $region13: #{bottleneck_forward.8} parent=11 // pred_check
        %p166 = pneg %p81
      $region14: #{bottleneck_forward.8} parent=11 // pred_check_branch
        %168 = sbr.rel (%p166) target = $region16
      $region15: #{bottleneck_forward.8} parent=11 // pred_region
        _
      $region16: #{bottleneck_forward.8} parent=11 // pred_fallthru
        _
    $region12: #{bottleneck_forward.8} parent=5 // pred_fallthru
      _
    %p169 = scmp.lt.s32.totalorder %s11, 48
    // Predicated region
    $region17: #{bottleneck_forward.8} parent=5 // pred_check
      %p170 = pneg %p169
    $region18: #{bottleneck_forward.8} parent=5 // pred_check_branch
      %172 = sbr.rel (%p170) target = $region20
    $region19: #{bottleneck_forward.8} parent=5 // pred_region
      // Predicated region
      $region21: #{bottleneck_forward.8} parent=19 // pred_check
        %p173 = pneg %p54
      $region22: #{bottleneck_forward.8} parent=19 // pred_check_branch
        %175 = sbr.rel (%p173) target = $region24
      $region23: #{bottleneck_forward.8} parent=19 // pred_region
        %s176 = sadd.s32 %s19, %s20
        %p177 = scmp.lt.s32.totalorder %s18, 1
        %s178 = scalar_select %p177, %s18, 1
        %p179 = scmp.lt.s32.totalorder %s176, 9
        %s180 = scalar_select %p179, %s176, 9
        %s181 = smul.addr %s180, 20
        %s182 = smul.addr %s178, 200
        %s183 = sadd.s32 %s181, %s182
        %s184 = smul.addr %s183, 4
        %s185 = scalar_lea.vmem %s0, %s184
        %s186 = sadd.s32 %s19, %s20
      $region24: #{bottleneck_forward.8} parent=19 // pred_fallthru
        _
    $region20: #{bottleneck_forward.8} parent=5 // pred_fallthru
      _
    %p187 = scmp.le.s32.totalorder 1, %s11
    %p188 = scmp.lt.s32.totalorder %s11, 49
    %p189 = pnand %p187, %p188
    %p190 = pneg %p189
    // Predicated region
    $region25: #{bottleneck_forward.8} parent=5 // pred_check
      _
    $region26: #{bottleneck_forward.8} parent=5 // pred_check_branch
      %192 = sbr.rel (%p189) target = $region28
    $region27: #{bottleneck_forward.8} parent=5 // pred_region
      %s193 = ssub.s32 %s11, 1
      %s194 = sadd.s32 %s22, %s23
      %p195 = scmp.lt.s32.totalorder %s21, 1
      %s196 = scalar_select %p195, %s21, 1
      %p197 = scmp.lt.s32.totalorder %s194, 9
      %s198 = scalar_select %p197, %s194, 9
      %s199 = smul.addr %s198, 20
      %s200 = smul.addr %s196, 200
      %s201 = sadd.s32 %s199, %s200
      %s202 = smul.addr %s201, 4
      %s203 = scalar_lea.vmem %s0, %s202
      %p204 = pneg %p60
      %p205 = pneg %p57
      %p206 = pneg %p81
      %p207 = pneg %p78
      %p208 = pneg %p109
      %p209 = pneg %p106
      %p210 = scmp.lt.s32.totalorder %s21, 1
      %s211 = scalar_select %p210, %s21, 1
      %p212 = scmp.lt.s32.totalorder %s22, 7
      %s213 = scalar_select %p212, %s22, 7
      %s214 = smul.addr %s213, 8
      %s215 = smul.addr %s211, 64
      %s216 = sadd.s32 %s214, %s215
      %s217 = smul.addr %s216, 8
      %s218 = scalar_lea.vmem %s2, %s217
      %p219 = pneg %p130
      %p220 = pneg %p127
      %p221 = pneg %p151
      %p222 = pneg %p148
      %s223 = sadd.s32 %s22, %s23
      %p224 = scmp.lt.s32.totalorder %s21, 1
      %s225 = scalar_select %p224, %s21, 1
      %p226 = scmp.lt.s32.totalorder %s223, 9
      %s227 = scalar_select %p226, %s223, 9
      %s228 = smul.addr %s227, 20
      %s229 = smul.addr %s225, 200
      %s230 = sadd.s32 %s228, %s229
      %s231 = smul.addr %s230, 4
      %s232 = scalar_lea.vmem %s0, %s231
      %s233 = sadd.s32 %s22, %s23
      %p234 = scmp.lt.s32.totalorder %s21, 1
      %s235 = scalar_select %p234, %s21, 1
      %p236 = scmp.lt.s32.totalorder %s22, 7
      %s237 = scalar_select %p236, %s22, 7
      %s238 = smul.addr %s237, 8
      %s239 = smul.addr %s235, 64
      %s240 = sadd.s32 %s238, %s239
      %s241 = smul.addr %s240, 8
      %s242 = scalar_lea.vmem %s2, %s241
      %p244 = scmp.eq.s32.totalorder %s21, 0
      %p245 = scmp.eq.s32.totalorder %s22, 0
      %p246 = pnand %p244, %p245
      %p247 = pneg %p246
      %p248 = scmp.eq.s32.totalorder %s23, 0
      %p249 = pnand %p247, %p248
      %p250 = pneg %p249
      // Predicated region
      $region29: #{bottleneck_forward.8} parent=27 // pred_check
        _
      $region30: #{bottleneck_forward.8} parent=27 // pred_check_branch
        %252 = sbr.rel (%p249) target = $region32
      $region31: #{bottleneck_forward.8} parent=27 // pred_region
        %253 = vst [vmem:[%s3] sm:$0x1] 0.0
        %254 = vst [vmem:[%s4] sm:$0x1] 0.0
      $region32: #{bottleneck_forward.8} parent=27 // pred_fallthru
        _
      // Predicated region
      $region33: #{bottleneck_forward.8} parent=27 // pred_check
        %p255 = pneg %p248
      $region34: #{bottleneck_forward.8} parent=27 // pred_check_branch
        %257 = sbr.rel (%p255) target = $region36
      $region35: #{bottleneck_forward.8} parent=27 // pred_region
        %258 = vst [vmem:[#allocation2] sm:$0xff] 0.0
        %259 = vst [vmem:[#allocation2 + $0x8] sm:$0xff] 0.0
        %260 = vst [vmem:[#allocation2 + $0x10] sm:$0xff] 0.0
        %261 = vst [vmem:[#allocation2 + $0x18] sm:$0xff] 0.0
        %262 = vst [vmem:[#allocation2 + $0x20] sm:$0xff] 0.0
        %263 = vst [vmem:[#allocation2 + $0x28] sm:$0xff] 0.0
        %264 = vst [vmem:[#allocation2 + $0x30] sm:$0xff] 0.0
        %265 = vst [vmem:[#allocation2 + $0x38] sm:$0xff] 0.0
      $region36: #{bottleneck_forward.8} parent=27 // pred_fallthru
        _
      %v266 = vld [vmem:[%s232] sm:$0xf]
      %v267 = vld [vmem:[%s232 + $0x4] sm:$0x1]
      %v268 = vld [vmem:[%s232 + $0x8] sm:$0xf]
      %v269 = vld [vmem:[%s232 + $0xc] sm:$0x1]
      %v270 = vld [vmem:[%s232 + $0x10] sm:$0xf]
      %v271 = vld [vmem:[%s232 + $0x14] sm:$0x1]
      %v272 = vld [vmem:[%s232 + $0x18] sm:$0xf]
      %v273 = vld [vmem:[%s232 + $0x1c] sm:$0x1]
      %v274 = vld [vmem:[%s232 + $0x20] sm:$0xf]
      %v275 = vld [vmem:[%s232 + $0x24] sm:$0x1]
      %v276 = vld [vmem:[%s232 + $0x28] sm:$0xf]
      %v277 = vld [vmem:[%s232 + $0x2c] sm:$0x1]
      %v278 = vld [vmem:[%s232 + $0x30] sm:$0xf]
      %v279 = vld [vmem:[%s232 + $0x34] sm:$0x1]
      %v280 = vld [vmem:[%s232 + $0x38] sm:$0xf]
      %v281 = vld [vmem:[%s232 + $0x3c] sm:$0x1]
      %v282 = vld [vmem:[%s232 + $0x40] sm:$0xf]
      %v283 = vld [vmem:[%s232 + $0x44] sm:$0x1]
      %v284 = vld [vmem:[%s232 + $0x48] sm:$0xf]
      %v285 = vld [vmem:[%s232 + $0x4c] sm:$0x1]
      %v286 = vunpack.c.l.bf16 %v266
      %v287 = vunpack.c.l.bf16 %v267
      %v288 = vunpack.c.l.bf16 %v268
      %v289 = vunpack.c.l.bf16 %v269
      %v290 = vunpack.c.l.bf16 %v270
      %v291 = vunpack.c.l.bf16 %v271
      %v292 = vunpack.c.l.bf16 %v272
      %v293 = vunpack.c.l.bf16 %v273
      %v294 = vunpack.c.l.bf16 %v274
      %v295 = vunpack.c.l.bf16 %v275
      %v296 = vunpack.c.l.bf16 %v276
      %v297 = vunpack.c.l.bf16 %v277
      %v298 = vunpack.c.l.bf16 %v278
      %v299 = vunpack.c.l.bf16 %v279
      %v300 = vunpack.c.l.bf16 %v280
      %v301 = vunpack.c.l.bf16 %v281
      %v302 = vunpack.c.l.bf16 %v282
      %v303 = vunpack.c.l.bf16 %v283
      %v304 = vunpack.c.l.bf16 %v284
      %v305 = vunpack.c.l.bf16 %v285
      %v306 = vld [vmem:[#allocation2] sm:$0xff]
      %v307 = vld [vmem:[#allocation2 + $0x8] sm:$0xff]
      %v308 = vld [vmem:[#allocation2 + $0x10] sm:$0xff]
      %v309 = vld [vmem:[#allocation2 + $0x18] sm:$0xff]
      %v310 = vld [vmem:[#allocation2 + $0x20] sm:$0xff]
      %v311 = vld [vmem:[#allocation2 + $0x28] sm:$0xff]
      %v312 = vld [vmem:[#allocation2 + $0x30] sm:$0xff]
      %v313 = vld [vmem:[#allocation2 + $0x38] sm:$0xff]
      %v314 = vpack.c.bf16 %v288, %v286
      %v315 = vpack.c.bf16 %v292, %v290
      %v316 = vpack.c.bf16 %v296, %v294
      %v317 = vpack.c.bf16 %v300, %v298
      %s318 = smul.u32 %s23, 144
      %s319 = smul.addr %s318, 4
      %s320 = scalar_lea.vmem %s1, %s319
      %v321 = vld [vmem:[%s320] sm:$0xf]
      %v322 = vld [vmem:[%s320 + $0x4] sm:$0xf]
      %v323 = vld [vmem:[%s320 + $0x8] sm:$0xf]
      %v324 = vld [vmem:[%s320 + $0xc] sm:$0xf]
      %v325 = vld [vmem:[%s320 + $0x10] sm:$0xf]
      %v326 = vld [vmem:[%s320 + $0x14] sm:$0xf]
      %v327 = vld [vmem:[%s320 + $0x18] sm:$0xf]
      %v328 = vld [vmem:[%s320 + $0x1c] sm:$0xf]
      %v329 = vld [vmem:[%s320 + $0x20] sm:$0xf]
      %v330 = vld [vmem:[%s320 + $0x24] sm:$0xf]
      %v331 = vld [vmem:[%s320 + $0x28] sm:$0xf]
      %v332 = vld [vmem:[%s320 + $0x2c] sm:$0xf]
      %v333 = vld [vmem:[%s320 + $0x30] sm:$0xf]
      %v334 = vld [vmem:[%s320 + $0x34] sm:$0xf]
      %v335 = vld [vmem:[%s320 + $0x38] sm:$0xf]
      %v336 = vld [vmem:[%s320 + $0x3c] sm:$0xf]
      %v353 = vunpack.c.l.b16 %v321
      %v354 = vunpack.c.l.b16 %v322
      %v355 = vunpack.c.l.b16 %v323
      %v356 = vunpack.c.l.b16 %v324
      %v357 = vunpack.c.l.b16 %v325
      %v358 = vunpack.c.l.b16 %v326
      %v359 = vunpack.c.l.b16 %v327
      %v360 = vunpack.c.l.b16 %v328
      %v361 = vunpack.c.l.b16 %v329
      %v362 = vunpack.c.l.b16 %v330
      %v363 = vunpack.c.l.b16 %v331
      %v364 = vunpack.c.l.b16 %v332
      %v365 = vunpack.c.l.b16 %v333
      %v366 = vunpack.c.l.b16 %v334
      %v367 = vunpack.c.l.b16 %v335
      %v368 = vunpack.c.l.b16 %v336
      %v369 = vpack.c.b16 %v354, %v353
      %v370 = vpack.c.b16 %v356, %v355
      %v371 = vpack.c.b16 %v358, %v357
      %v372 = vpack.c.b16 %v360, %v359
      %v373 = vpack.c.b16 %v362, %v361
      %v374 = vpack.c.b16 %v364, %v363
      %v375 = vpack.c.b16 %v366, %v365
      %v376 = vpack.c.b16 %v368, %v367
      %385 = vmatprep.subr.bf16.mxu0 0
      %386 = vmatpush1.bf16.msra.mxu0 %v369
      %387 = vmatprep.subr.bf16.mxu0 0
      %388 = vmatpush1.bf16.msra.mxu0 %v370
      %389 = vmatprep.subr.bf16.mxu0 0
      %390 = vmatpush1.bf16.msra.mxu0 %v371
      %391 = vmatprep.subr.bf16.mxu0 0
      %392 = vmatpush1.bf16.msra.mxu0 %v372
      %393 = vmatprep.subr.bf16.mxu0 0
      %394 = vmatpush1.bf16.msra.mxu0 %v373
      %395 = vmatprep.subr.bf16.mxu0 0
      %396 = vmatpush1.bf16.msra.mxu0 %v374
      %397 = vmatprep.subr.bf16.mxu0 0
      %398 = vmatpush1.bf16.msra.mxu0 %v375
      %399 = vmatprep.subr.bf16.mxu0 0
      %400 = vmatpush1.bf16.msra.mxu0 %v376
      %401 = vmatprep.subr.bf16.mxu0 0
      %402 = vmatpush1.bf16.msra.mxu0 0
      %403 = vmatprep.subr.bf16.mxu0 0
      %404 = vmatpush1.bf16.msra.mxu0 0
      %405 = vmatprep.subr.bf16.mxu0 0
      %406 = vmatpush1.bf16.msra.mxu0 0
      %407 = vmatprep.subr.bf16.mxu0 0
      %408 = vmatpush1.bf16.msra.mxu0 0
      %409 = vmatprep.subr.bf16.mxu0 0
      %410 = vmatpush1.bf16.msra.mxu0 0
      %411 = vmatprep.subr.bf16.mxu0 0
      %412 = vmatpush1.bf16.msra.mxu0 0
      %413 = vmatprep.subr.bf16.mxu0 0
      %414 = vmatpush1.bf16.msra.mxu0 0
      %415 = vmatprep.subr.bf16.mxu0 0
      %416 = vmatpush1.bf16.msra.mxu0 0
      %417 = vmatprep.mubr.bf16.mxu0 0
      %418 = vmatmul.mubr.bf16.gmra.mrb[0].mxu0 %v314
      %v419 = vpop.f32.mrb[0].mxu0
      %v420 = vadd.f32 0.0, %v419
      %v421 = vpop.f32.mrb[0].mxu0
      %v422 = vpop.f32.mrb[0].mxu0
      %v423 = vadd.f32 0.0, %v422
      %v424 = vpop.f32.mrb[0].mxu0
      %425 = vmatprep.mubr.bf16.mxu0 0
      %426 = vmatmul.mubr.bf16.gmra.mrb[0].mxu0 %v315
      %v427 = vpop.f32.mrb[0].mxu0
      %v428 = vadd.f32 0.0, %v427
      %v429 = vpop.f32.mrb[0].mxu0
      %v430 = vpop.f32.mrb[0].mxu0
      %v431 = vadd.f32 0.0, %v430
      %v432 = vpop.f32.mrb[0].mxu0
      %433 = vmatprep.mubr.bf16.mxu0 0
      %434 = vmatmul.mubr.bf16.gmra.mrb[0].mxu0 %v316
      %v435 = vpop.f32.mrb[0].mxu0
      %v436 = vadd.f32 0.0, %v435
      %v437 = vpop.f32.mrb[0].mxu0
      %v438 = vpop.f32.mrb[0].mxu0
      %v439 = vadd.f32 0.0, %v438
      %v440 = vpop.f32.mrb[0].mxu0
      %441 = vmatprep.mubr.bf16.mxu0 0
      %442 = vmatmul.mubr.bf16.gmra.mrb[0].mxu0 %v317
      %v443 = vpop.f32.mrb[0].mxu0
      %v444 = vadd.f32 0.0, %v443
      %v445 = vpop.f32.mrb[0].mxu0
      %v446 = vpop.f32.mrb[0].mxu0
      %v447 = vadd.f32 0.0, %v446
      %v448 = vpop.f32.mrb[0].mxu0
      %449 = vdwg.mxu0
      %v450 = vadd.f32 %v306, %v420
      %v451 = vadd.f32 %v307, %v423
      %v452 = vadd.f32 %v308, %v428
      %v453 = vadd.f32 %v309, %v431
      %v454 = vadd.f32 %v310, %v436
      %v455 = vadd.f32 %v311, %v439
      %v456 = vadd.f32 %v312, %v444
      %v457 = vadd.f32 %v313, %v447
      %458 = vst [vmem:[#allocation2] sm:$0xff] %v450
      %459 = vst [vmem:[#allocation2 + $0x8] sm:$0xff] %v451
      %460 = vst [vmem:[#allocation2 + $0x10] sm:$0xff] %v452
      %461 = vst [vmem:[#allocation2 + $0x18] sm:$0xff] %v453
      %462 = vst [vmem:[#allocation2 + $0x20] sm:$0xff] %v454
      %463 = vst [vmem:[#allocation2 + $0x28] sm:$0xff] %v455
      %464 = vst [vmem:[#allocation2 + $0x30] sm:$0xff] %v456
      %465 = vst [vmem:[#allocation2 + $0x38] sm:$0xff] %v457
      %vm482 = vcmask 1046528
      %v483 = vrot.slane %v286, 1
      %v484 = vrot.slane %v287, 1
      %v485 = vsel %vm482, %v483, %v484
      %v486 = vrot.slane %v288, 1
      %v487 = vrot.slane %v289, 1
      %v488 = vsel %vm482, %v486, %v487
      %v489 = vrot.slane %v290, 1
      %v490 = vrot.slane %v291, 1
      %v491 = vsel %vm482, %v489, %v490
      %v492 = vrot.slane %v292, 1
      %v493 = vrot.slane %v293, 1
      %v494 = vsel %vm482, %v492, %v493
      %v495 = vrot.slane %v294, 1
      %v496 = vrot.slane %v295, 1
      %v497 = vsel %vm482, %v495, %v496
      %v498 = vrot.slane %v296, 1
      %v499 = vrot.slane %v297, 1
      %v500 = vsel %vm482, %v498, %v499
      %v501 = vrot.slane %v298, 1
      %v502 = vrot.slane %v299, 1
      %v503 = vsel %vm482, %v501, %v502
      %v504 = vrot.slane %v300, 1
      %v505 = vrot.slane %v301, 1
      %v506 = vsel %vm482, %v504, %v505
      %v515 = vld [vmem:[#allocation2] sm:$0xff]
      %v516 = vld [vmem:[#allocation2 + $0x8] sm:$0xff]
      %v517 = vld [vmem:[#allocation2 + $0x10] sm:$0xff]
      %v518 = vld [vmem:[#allocation2 + $0x18] sm:$0xff]
      %v519 = vld [vmem:[#allocation2 + $0x20] sm:$0xff]
      %v520 = vld [vmem:[#allocation2 + $0x28] sm:$0xff]
      %v521 = vld [vmem:[#allocation2 + $0x30] sm:$0xff]
      %v522 = vld [vmem:[#allocation2 + $0x38] sm:$0xff]
      %v523 = vpack.c.bf16 %v488, %v485
      %v524 = vpack.c.bf16 %v494, %v491
      %v525 = vpack.c.bf16 %v500, %v497
      %v526 = vpack.c.bf16 %v506, %v503
      %s527 = sadd.s32 16, %s318
      %s528 = smul.addr %s527, 4
      %s529 = scalar_lea.vmem %s1, %s528
      %v530 = vld [vmem:[%s529] sm:$0xf]
      %v531 = vld [vmem:[%s529 + $0x4] sm:$0xf]
      %v532 = vld [vmem:[%s529 + $0x8] sm:$0xf]
      %v533 = vld [vmem:[%s529 + $0xc] sm:$0xf]
      %v534 = vld [vmem:[%s529 + $0x10] sm:$0xf]
      %v535 = vld [vmem:[%s529 + $0x14] sm:$0xf]
      %v536 = vld [vmem:[%s529 + $0x18] sm:$0xf]
      %v537 = vld [vmem:[%s529 + $0x1c] sm:$0xf]
      %v538 = vld [vmem:[%s529 + $0x20] sm:$0xf]
      %v539 = vld [vmem:[%s529 + $0x24] sm:$0xf]
      %v540 = vld [vmem:[%s529 + $0x28] sm:$0xf]
      %v541 = vld [vmem:[%s529 + $0x2c] sm:$0xf]
      %v542 = vld [vmem:[%s529 + $0x30] sm:$0xf]
      %v543 = vld [vmem:[%s529 + $0x34] sm:$0xf]
      %v544 = vld [vmem:[%s529 + $0x38] sm:$0xf]
      %v545 = vld [vmem:[%s529 + $0x3c] sm:$0xf]
      %v562 = vunpack.c.l.b16 %v530
      %v563 = vunpack.c.l.b16 %v531
      %v564 = vunpack.c.l.b16 %v532
      %v565 = vunpack.c.l.b16 %v533
      %v566 = vunpack.c.l.b16 %v534
      %v567 = vunpack.c.l.b16 %v535
      %v568 = vunpack.c.l.b16 %v536
      %v569 = vunpack.c.l.b16 %v537
      %v570 = vunpack.c.l.b16 %v538
      %v571 = vunpack.c.l.b16 %v539
      %v572 = vunpack.c.l.b16 %v540
      %v573 = vunpack.c.l.b16 %v541
      %v574 = vunpack.c.l.b16 %v542
      %v575 = vunpack.c.l.b16 %v543
      %v576 = vunpack.c.l.b16 %v544
      %v577 = vunpack.c.l.b16 %v545
      %v578 = vpack.c.b16 %v563, %v562
      %v579 = vpack.c.b16 %v565, %v564
      %v580 = vpack.c.b16 %v567, %v566
      %v581 = vpack.c.b16 %v569, %v568
      %v582 = vpack.c.b16 %v571, %v570
      %v583 = vpack.c.b16 %v573, %v572
      %v584 = vpack.c.b16 %v575, %v574
      %v585 = vpack.c.b16 %v577, %v576
      %594 = vmatprep.subr.bf16.mxu0 0
      %595 = vmatpush1.bf16.msra.mxu0 %v578
      %596 = vmatprep.subr.bf16.mxu0 0
      %597 = vmatpush1.bf16.msra.mxu0 %v579
      %598 = vmatprep.subr.bf16.mxu0 0
      %599 = vmatpush1.bf16.msra.mxu0 %v580
      %600 = vmatprep.subr.bf16.mxu0 0
      %601 = vmatpush1.bf16.msra.mxu0 %v581
      %602 = vmatprep.subr.bf16.mxu0 0
      %603 = vmatpush1.bf16.msra.mxu0 %v582
      %604 = vmatprep.subr.bf16.mxu0 0
      %605 = vmatpush1.bf16.msra.mxu0 %v583
      %606 = vmatprep.subr.bf16.mxu0 0
      %607 = vmatpush1.bf16.msra.mxu0 %v584
      %608 = vmatprep.subr.bf16.mxu0 0
      %609 = vmatpush1.bf16.msra.mxu0 %v585
      %610 = vmatprep.subr.bf16.mxu0 0
      %611 = vmatpush1.bf16.msra.mxu0 0
      %612 = vmatprep.subr.bf16.mxu0 0
      %613 = vmatpush1.bf16.msra.mxu0 0
      %614 = vmatprep.subr.bf16.mxu0 0
      %615 = vmatpush1.bf16.msra.mxu0 0
      %616 = vmatprep.subr.bf16.mxu0 0
      %617 = vmatpush1.bf16.msra.mxu0 0
      %618 = vmatprep.subr.bf16.mxu0 0
      %619 = vmatpush1.bf16.msra.mxu0 0
      %620 = vmatprep.subr.bf16.mxu0 0
      %621 = vmatpush1.bf16.msra.mxu0 0
      %622 = vmatprep.subr.bf16.mxu0 0
      %623 = vmatpush1.bf16.msra.mxu0 0
      %624 = vmatprep.subr.bf16.mxu0 0
      %625 = vmatpush1.bf16.msra.mxu0 0
      %626 = vmatprep.mubr.bf16.mxu0 0
      %627 = vmatmul.mubr.bf16.gmra.mrb[0].mxu0 %v523
      %v628 = vpop.f32.mrb[0].mxu0
      %v629 = vadd.f32 0.0, %v628
      %v630 = vpop.f32.mrb[0].mxu0
      %v631 = vpop.f32.mrb[0].mxu0
      %v632 = vadd.f32 0.0, %v631
      %v633 = vpop.f32.mrb[0].mxu0
      %634 = vmatprep.mubr.bf16.mxu0 0
      %635 = vmatmul.mubr.bf16.gmra.mrb[0].mxu0 %v524
      %v636 = vpop.f32.mrb[0].mxu0
      %v637 = vadd.f32 0.0, %v636
      %v638 = vpop.f32.mrb[0].mxu0
      %v639 = vpop.f32.mrb[0].mxu0
      %v640 = vadd.f32 0.0, %v639
      %v641 = vpop.f32.mrb[0].mxu0
      %642 = vmatprep.mubr.bf16.mxu0 0
      %643 = vmatmul.mubr.bf16.gmra.mrb[0].mxu0 %v525
      %v644 = vpop.f32.mrb[0].mxu0
      %v645 = vadd.f32 0.0, %v644
      %v646 = vpop.f32.mrb[0].mxu0
      %v647 = vpop.f32.mrb[0].mxu0
      %v648 = vadd.f32 0.0, %v647
      %v649 = vpop.f32.mrb[0].mxu0
      %650 = vmatprep.mubr.bf16.mxu0 0
      %651 = vmatmul.mubr.bf16.gmra.mrb[0].mxu0 %v526
      %v652 = vpop.f32.mrb[0].mxu0
      %v653 = vadd.f32 0.0, %v652
      %v654 = vpop.f32.mrb[0].mxu0
      %v655 = vpop.f32.mrb[0].mxu0
      %v656 = vadd.f32 0.0, %v655
      %v657 = vpop.f32.mrb[0].mxu0
      %658 = vdwg.mxu0
      %v659 = vadd.f32 %v515, %v629
      %v660 = vadd.f32 %v516, %v632
      %v661 = vadd.f32 %v517, %v637
      %v662 = vadd.f32 %v518, %v640
      %v663 = vadd.f32 %v519, %v645
      %v664 = vadd.f32 %v520, %v648
      %v665 = vadd.f32 %v521, %v653
      %v666 = vadd.f32 %v522, %v656
      %667 = vst [vmem:[#allocation2] sm:$0xff] %v659
      %668 = vst [vmem:[#allocation2 + $0x8] sm:$0xff] %v660
      %669 = vst [vmem:[#allocation2 + $0x10] sm:$0xff] %v661
      %670 = vst [vmem:[#allocation2 + $0x18] sm:$0xff] %v662
      %671 = vst [vmem:[#allocation2 + $0x20] sm:$0xff] %v663
      %672 = vst [vmem:[#allocation2 + $0x28] sm:$0xff] %v664
      %673 = vst [vmem:[#allocation2 + $0x30] sm:$0xff] %v665
      %674 = vst [vmem:[#allocation2 + $0x38] sm:$0xff] %v666
      %vm675 = vcmask 1045504
      %v676 = vrot.slane %v286, 2
      %v677 = vrot.slane %v287, 2
      %v678 = vsel %vm675, %v676, %v677
      %v679 = vrot.slane %v288, 2
      %v680 = vrot.slane %v289, 2
      %v681 = vsel %vm675, %v679, %v680
      %v682 = vrot.slane %v290, 2
      %v683 = vrot.slane %v291, 2
      %v684 = vsel %vm675, %v682, %v683
      %v685 = vrot.slane %v292, 2
      %v686 = vrot.slane %v293, 2
      %v687 = vsel %vm675, %v685, %v686
      %v688 = vrot.slane %v294, 2
      %v689 = vrot.slane %v295, 2
      %v690 = vsel %vm675, %v688, %v689
      %v691 = vrot.slane %v296, 2
      %v692 = vrot.slane %v297, 2
      %v693 = vsel %vm675, %v691, %v692
      %v694 = vrot.slane %v298, 2
      %v695 = vrot.slane %v299, 2
      %v696 = vsel %vm675, %v694, %v695
      %v697 = vrot.slane %v300, 2
      %v698 = vrot.slane %v301, 2
      %v699 = vsel %vm675, %v697, %v698
      %v708 = vld [vmem:[#allocation2] sm:$0xff]
      %v709 = vld [vmem:[#allocation2 + $0x8] sm:$0xff]
      %v710 = vld [vmem:[#allocation2 + $0x10] sm:$0xff]
      %v711 = vld [vmem:[#allocation2 + $0x18] sm:$0xff]
      %v712 = vld [vmem:[#allocation2 + $0x20] sm:$0xff]
      %v713 = vld [vmem:[#allocation2 + $0x28] sm:$0xff]
      %v714 = vld [vmem:[#allocation2 + $0x30] sm:$0xff]
      %v715 = vld [vmem:[#allocation2 + $0x38] sm:$0xff]
      %v716 = vpack.c.bf16 %v681, %v678
      %v717 = vpack.c.bf16 %v687, %v684
      %v718 = vpack.c.bf16 %v693, %v690
      %v719 = vpack.c.bf16 %v699, %v696
      %s720 = sadd.s32 32, %s318
      %s721 = smul.addr %s720, 4
      %s722 = scalar_lea.vmem %s1, %s721
      %v723 = vld [vmem:[%s722] sm:$0xf]
      %v724 = vld [vmem:[%s722 + $0x4] sm:$0xf]
      %v725 = vld [vmem:[%s722 + $0x8] sm:$0xf]
      %v726 = vld [vmem:[%s722 + $0xc] sm:$0xf]
      %v727 = vld [vmem:[%s722 + $0x10] sm:$0xf]
      %v728 = vld [vmem:[%s722 + $0x14] sm:$0xf]
      %v729 = vld [vmem:[%s722 + $0x18] sm:$0xf]
      %v730 = vld [vmem:[%s722 + $0x1c] sm:$0xf]
      %v731 = vld [vmem:[%s722 + $0x20] sm:$0xf]
      %v732 = vld [vmem:[%s722 + $0x24] sm:$0xf]
      %v733 = vld [vmem:[%s722 + $0x28] sm:$0xf]
      %v734 = vld [vmem:[%s722 + $0x2c] sm:$0xf]
      %v735 = vld [vmem:[%s722 + $0x30] sm:$0xf]
      %v736 = vld [vmem:[%s722 + $0x34] sm:$0xf]
      %v737 = vld [vmem:[%s722 + $0x38] sm:$0xf]
      %v738 = vld [vmem:[%s722 + $0x3c] sm:$0xf]
      %v755 = vunpack.c.l.b16 %v723
      %v756 = vunpack.c.l.b16 %v724
      %v757 = vunpack.c.l.b16 %v725
      %v758 = vunpack.c.l.b16 %v726
      %v759 = vunpack.c.l.b16 %v727
      %v760 = vunpack.c.l.b16 %v728
      %v761 = vunpack.c.l.b16 %v729
      %v762 = vunpack.c.l.b16 %v730
      %v763 = vunpack.c.l.b16 %v731
      %v764 = vunpack.c.l.b16 %v732
      %v765 = vunpack.c.l.b16 %v733
      %v766 = vunpack.c.l.b16 %v734
      %v767 = vunpack.c.l.b16 %v735
      %v768 = vunpack.c.l.b16 %v736
      %v769 = vunpack.c.l.b16 %v737
      %v770 = vunpack.c.l.b16 %v738
      %v771 = vpack.c.b16 %v756, %v755
      %v772 = vpack.c.b16 %v758, %v757
      %v773 = vpack.c.b16 %v760, %v759
      %v774 = vpack.c.b16 %v762, %v761
      %v775 = vpack.c.b16 %v764, %v763
      %v776 = vpack.c.b16 %v766, %v765
      %v777 = vpack.c.b16 %v768, %v767
      %v778 = vpack.c.b16 %v770, %v769
      %787 = vmatprep.subr.bf16.mxu0 0
      %788 = vmatpush1.bf16.msra.mxu0 %v771
      %789 = vmatprep.subr.bf16.mxu0 0
      %790 = vmatpush1.bf16.msra.mxu0 %v772
      %791 = vmatprep.subr.bf16.mxu0 0
      %792 = vmatpush1.bf16.msra.mxu0 %v773
      %793 = vmatprep.subr.bf16.mxu0 0
      %794 = vmatpush1.bf16.msra.mxu0 %v774
      %795 = vmatprep.subr.bf16.mxu0 0
      %796 = vmatpush1.bf16.msra.mxu0 %v775
      %797 = vmatprep.subr.bf16.mxu0 0
      %798 = vmatpush1.bf16.msra.mxu0 %v776
      %799 = vmatprep.subr.bf16.mxu0 0
      %800 = vmatpush1.bf16.msra.mxu0 %v777
      %801 = vmatprep.subr.bf16.mxu0 0
      %802 = vmatpush1.bf16.msra.mxu0 %v778
      %803 = vmatprep.subr.bf16.mxu0 0
      %804 = vmatpush1.bf16.msra.mxu0 0
      %805 = vmatprep.subr.bf16.mxu0 0
      %806 = vmatpush1.bf16.msra.mxu0 0
      %807 = vmatprep.subr.bf16.mxu0 0
      %808 = vmatpush1.bf16.msra.mxu0 0
      %809 = vmatprep.subr.bf16.mxu0 0
      %810 = vmatpush1.bf16.msra.mxu0 0
      %811 = vmatprep.subr.bf16.mxu0 0
      %812 = vmatpush1.bf16.msra.mxu0 0
      %813 = vmatprep.subr.bf16.mxu0 0
      %814 = vmatpush1.bf16.msra.mxu0 0
      %815 = vmatprep.subr.bf16.mxu0 0
      %816 = vmatpush1.bf16.msra.mxu0 0
      %817 = vmatprep.subr.bf16.mxu0 0
      %818 = vmatpush1.bf16.msra.mxu0 0
      %819 = vmatprep.mubr.bf16.mxu0 0
      %820 = vmatmul.mubr.bf16.gmra.mrb[0].mxu0 %v716
      %v821 = vpop.f32.mrb[0].mxu0
      %v822 = vadd.f32 0.0, %v821
      %v823 = vpop.f32.mrb[0].mxu0
      %v824 = vpop.f32.mrb[0].mxu0
      %v825 = vadd.f32 0.0, %v824
      %v826 = vpop.f32.mrb[0].mxu0
      %827 = vmatprep.mubr.bf16.mxu0 0
      %828 = vmatmul.mubr.bf16.gmra.mrb[0].mxu0 %v717
      %v829 = vpop.f32.mrb[0].mxu0
      %v830 = vadd.f32 0.0, %v829
      %v831 = vpop.f32.mrb[0].mxu0
      %v832 = vpop.f32.mrb[0].mxu0
      %v833 = vadd.f32 0.0, %v832
      %v834 = vpop.f32.mrb[0].mxu0
      %835 = vmatprep.mubr.bf16.mxu0 0
      %836 = vmatmul.mubr.bf16.gmra.mrb[0].mxu0 %v718
      %v837 = vpop.f32.mrb[0].mxu0
      %v838 = vadd.f32 0.0, %v837
      %v839 = vpop.f32.mrb[0].mxu0
      %v840 = vpop.f32.mrb[0].mxu0
      %v841 = vadd.f32 0.0, %v840
      %v842 = vpop.f32.mrb[0].mxu0
      %843 = vmatprep.mubr.bf16.mxu0 0
      %844 = vmatmul.mubr.bf16.gmra.mrb[0].mxu0 %v719
      %v845 = vpop.f32.mrb[0].mxu0
      %v846 = vadd.f32 0.0, %v845
      %v847 = vpop.f32.mrb[0].mxu0
      %v848 = vpop.f32.mrb[0].mxu0
      %v849 = vadd.f32 0.0, %v848
      %v850 = vpop.f32.mrb[0].mxu0
      %851 = vdwg.mxu0
      %v852 = vadd.f32 %v708, %v822
      %v853 = vadd.f32 %v709, %v825
      %v854 = vadd.f32 %v710, %v830
      %v855 = vadd.f32 %v711, %v833
      %v856 = vadd.f32 %v712, %v838
      %v857 = vadd.f32 %v713, %v841
      %v858 = vadd.f32 %v714, %v846
      %v859 = vadd.f32 %v715, %v849
      %860 = vst [vmem:[#allocation2] sm:$0xff] %v852
      %861 = vst [vmem:[#allocation2 + $0x8] sm:$0xff] %v853
      %862 = vst [vmem:[#allocation2 + $0x10] sm:$0xff] %v854
      %863 = vst [vmem:[#allocation2 + $0x18] sm:$0xff] %v855
      %864 = vst [vmem:[#allocation2 + $0x20] sm:$0xff] %v856
      %865 = vst [vmem:[#allocation2 + $0x28] sm:$0xff] %v857
      %866 = vst [vmem:[#allocation2 + $0x30] sm:$0xff] %v858
      %867 = vst [vmem:[#allocation2 + $0x38] sm:$0xff] %v859
      %v868 = vld [vmem:[#allocation2] sm:$0xff]
      %v869 = vld [vmem:[#allocation2 + $0x8] sm:$0xff]
      %v870 = vld [vmem:[#allocation2 + $0x10] sm:$0xff]
      %v871 = vld [vmem:[#allocation2 + $0x18] sm:$0xff]
      %v872 = vld [vmem:[#allocation2 + $0x20] sm:$0xff]
      %v873 = vld [vmem:[#allocation2 + $0x28] sm:$0xff]
      %v874 = vld [vmem:[#allocation2 + $0x30] sm:$0xff]
      %v875 = vld [vmem:[#allocation2 + $0x38] sm:$0xff]
      %v876 = vpack.c.bf16 %v290, %v288
      %v877 = vpack.c.bf16 %v294, %v292
      %v878 = vpack.c.bf16 %v298, %v296
      %v879 = vpack.c.bf16 %v302, %v300
      %s880 = sadd.s32 48, %s318
      %s881 = smul.addr %s880, 4
      %s882 = scalar_lea.vmem %s1, %s881
      %v883 = vld [vmem:[%s882] sm:$0xf]
      %v884 = vld [vmem:[%s882 + $0x4] sm:$0xf]
      %v885 = vld [vmem:[%s882 + $0x8] sm:$0xf]
      %v886 = vld [vmem:[%s882 + $0xc] sm:$0xf]
      %v887 = vld [vmem:[%s882 + $0x10] sm:$0xf]
      %v888 = vld [vmem:[%s882 + $0x14] sm:$0xf]
      %v889 = vld [vmem:[%s882 + $0x18] sm:$0xf]
      %v890 = vld [vmem:[%s882 + $0x1c] sm:$0xf]
      %v891 = vld [vmem:[%s882 + $0x20] sm:$0xf]
      %v892 = vld [vmem:[%s882 + $0x24] sm:$0xf]
      %v893 = vld [vmem:[%s882 + $0x28] sm:$0xf]
      %v894 = vld [vmem:[%s882 + $0x2c] sm:$0xf]
      %v895 = vld [vmem:[%s882 + $0x30] sm:$0xf]
      %v896 = vld [vmem:[%s882 + $0x34] sm:$0xf]
      %v897 = vld [vmem:[%s882 + $0x38] sm:$0xf]
      %v898 = vld [vmem:[%s882 + $0x3c] sm:$0xf]
      %v915 = vunpack.c.l.b16 %v883
      %v916 = vunpack.c.l.b16 %v884
      %v917 = vunpack.c.l.b16 %v885
      %v918 = vunpack.c.l.b16 %v886
      %v919 = vunpack.c.l.b16 %v887
      %v920 = vunpack.c.l.b16 %v888
      %v921 = vunpack.c.l.b16 %v889
      %v922 = vunpack.c.l.b16 %v890
      %v923 = vunpack.c.l.b16 %v891
      %v924 = vunpack.c.l.b16 %v892
      %v925 = vunpack.c.l.b16 %v893
      %v926 = vunpack.c.l.b16 %v894
      %v927 = vunpack.c.l.b16 %v895
      %v928 = vunpack.c.l.b16 %v896
      %v929 = vunpack.c.l.b16 %v897
      %v930 = vunpack.c.l.b16 %v898
      %v931 = vpack.c.b16 %v916, %v915
      %v932 = vpack.c.b16 %v918, %v917
      %v933 = vpack.c.b16 %v920, %v919
      %v934 = vpack.c.b16 %v922, %v921
      %v935 = vpack.c.b16 %v924, %v923
      %v936 = vpack.c.b16 %v926, %v925
      %v937 = vpack.c.b16 %v928, %v927
      %v938 = vpack.c.b16 %v930, %v929
      %947 = vmatprep.subr.bf16.mxu0 0
      %948 = vmatpush1.bf16.msra.mxu0 %v931
      %949 = vmatprep.subr.bf16.mxu0 0
      %950 = vmatpush1.bf16.msra.mxu0 %v932
      %951 = vmatprep.subr.bf16.mxu0 0
      %952 = vmatpush1.bf16.msra.mxu0 %v933
      %953 = vmatprep.subr.bf16.mxu0 0
      %954 = vmatpush1.bf16.msra.mxu0 %v934
      %955 = vmatprep.subr.bf16.mxu0 0
      %956 = vmatpush1.bf16.msra.mxu0 %v935
      %957 = vmatprep.subr.bf16.mxu0 0
      %958 = vmatpush1.bf16.msra.mxu0 %v936
      %959 = vmatprep.subr.bf16.mxu0 0
      %960 = vmatpush1.bf16.msra.mxu0 %v937
      %961 = vmatprep.subr.bf16.mxu0 0
      %962 = vmatpush1.bf16.msra.mxu0 %v938
      %963 = vmatprep.subr.bf16.mxu0 0
      %964 = vmatpush1.bf16.msra.mxu0 0
      %965 = vmatprep.subr.bf16.mxu0 0
      %966 = vmatpush1.bf16.msra.mxu0 0
      %967 = vmatprep.subr.bf16.mxu0 0
      %968 = vmatpush1.bf16.msra.mxu0 0
      %969 = vmatprep.subr.bf16.mxu0 0
      %970 = vmatpush1.bf16.msra.mxu0 0
      %971 = vmatprep.subr.bf16.mxu0 0
      %972 = vmatpush1.bf16.msra.mxu0 0
      %973 = vmatprep.subr.bf16.mxu0 0
      %974 = vmatpush1.bf16.msra.mxu0 0
      %975 = vmatprep.subr.bf16.mxu0 0
      %976 = vmatpush1.bf16.msra.mxu0 0
      %977 = vmatprep.subr.bf16.mxu0 0
      %978 = vmatpush1.bf16.msra.mxu0 0
      %979 = vmatprep.mubr.bf16.mxu0 0
      %980 = vmatmul.mubr.bf16.gmra.mrb[0].mxu0 %v876
      %v981 = vpop.f32.mrb[0].mxu0
      %v982 = vadd.f32 0.0, %v981
      %v983 = vpop.f32.mrb[0].mxu0
      %v984 = vpop.f32.mrb[0].mxu0
      %v985 = vadd.f32 0.0, %v984
      %v986 = vpop.f32.mrb[0].mxu0
      %987 = vmatprep.mubr.bf16.mxu0 0
      %988 = vmatmul.mubr.bf16.gmra.mrb[0].mxu0 %v877
      %v989 = vpop.f32.mrb[0].mxu0
      %v990 = vadd.f32 0.0, %v989
      %v991 = vpop.f32.mrb[0].mxu0
      %v992 = vpop.f32.mrb[0].mxu0
      %v993 = vadd.f32 0.0, %v992
      %v994 = vpop.f32.mrb[0].mxu0
      %995 = vmatprep.mubr.bf16.mxu0 0
      %996 = vmatmul.mubr.bf16.gmra.mrb[0].mxu0 %v878
      %v997 = vpop.f32.mrb[0].mxu0
      %v998 = vadd.f32 0.0, %v997
      %v999 = vpop.f32.mrb[0].mxu0
      %v1000 = vpop.f32.mrb[0].mxu0
      %v1001 = vadd.f32 0.0, %v1000
      %v1002 = vpop.f32.mrb[0].mxu0
      %1003 = vmatprep.mubr.bf16.mxu0 0
      %1004 = vmatmul.mubr.bf16.gmra.mrb[0].mxu0 %v879
      %v1005 = vpop.f32.mrb[0].mxu0
      %v1006 = vadd.f32 0.0, %v1005
      %v1007 = vpop.f32.mrb[0].mxu0
      %v1008 = vpop.f32.mrb[0].mxu0
      %v1009 = vadd.f32 0.0, %v1008
      %v1010 = vpop.f32.mrb[0].mxu0
      %1011 = vdwg.mxu0
      %v1012 = vadd.f32 %v868, %v982
      %v1013 = vadd.f32 %v869, %v985
      %v1014 = vadd.f32 %v870, %v990
      %v1015 = vadd.f32 %v871, %v993
      %v1016 = vadd.f32 %v872, %v998
      %v1017 = vadd.f32 %v873, %v1001
      %v1018 = vadd.f32 %v874, %v1006
      %v1019 = vadd.f32 %v875, %v1009
      %1020 = vst [vmem:[#allocation2] sm:$0xff] %v1012
      %1021 = vst [vmem:[#allocation2 + $0x8] sm:$0xff] %v1013
      %1022 = vst [vmem:[#allocation2 + $0x10] sm:$0xff] %v1014
      %1023 = vst [vmem:[#allocation2 + $0x18] sm:$0xff] %v1015
      %1024 = vst [vmem:[#allocation2 + $0x20] sm:$0xff] %v1016
      %1025 = vst [vmem:[#allocation2 + $0x28] sm:$0xff] %v1017
      %1026 = vst [vmem:[#allocation2 + $0x30] sm:$0xff] %v1018
      %1027 = vst [vmem:[#allocation2 + $0x38] sm:$0xff] %v1019
      %v1030 = vrot.slane %v302, 1
      %v1031 = vrot.slane %v303, 1
      %v1032 = vsel %vm482, %v1030, %v1031
      %v1034 = vld [vmem:[#allocation2] sm:$0xff]
      %v1035 = vld [vmem:[#allocation2 + $0x8] sm:$0xff]
      %v1036 = vld [vmem:[#allocation2 + $0x10] sm:$0xff]
      %v1037 = vld [vmem:[#allocation2 + $0x18] sm:$0xff]
      %v1038 = vld [vmem:[#allocation2 + $0x20] sm:$0xff]
      %v1039 = vld [vmem:[#allocation2 + $0x28] sm:$0xff]
      %v1040 = vld [vmem:[#allocation2 + $0x30] sm:$0xff]
      %v1041 = vld [vmem:[#allocation2 + $0x38] sm:$0xff]
      %v1042 = vpack.c.bf16 %v491, %v488
      %v1043 = vpack.c.bf16 %v497, %v494
      %v1044 = vpack.c.bf16 %v503, %v500
      %v1045 = vpack.c.bf16 %v1032, %v506
      %s1046 = sadd.s32 64, %s318
      %s1047 = smul.addr %s1046, 4
      %s1048 = scalar_lea.vmem %s1, %s1047
      %v1049 = vld [vmem:[%s1048] sm:$0xf]
      %v1050 = vld [vmem:[%s1048 + $0x4] sm:$0xf]
      %v1051 = vld [vmem:[%s1048 + $0x8] sm:$0xf]
      %v1052 = vld [vmem:[%s1048 + $0xc] sm:$0xf]
      %v1053 = vld [vmem:[%s1048 + $0x10] sm:$0xf]
      %v1054 = vld [vmem:[%s1048 + $0x14] sm:$0xf]
      %v1055 = vld [vmem:[%s1048 + $0x18] sm:$0xf]
      %v1056 = vld [vmem:[%s1048 + $0x1c] sm:$0xf]
      %v1057 = vld [vmem:[%s1048 + $0x20] sm:$0xf]
      %v1058 = vld [vmem:[%s1048 + $0x24] sm:$0xf]
      %v1059 = vld [vmem:[%s1048 + $0x28] sm:$0xf]
      %v1060 = vld [vmem:[%s1048 + $0x2c] sm:$0xf]
      %v1061 = vld [vmem:[%s1048 + $0x30] sm:$0xf]
      %v1062 = vld [vmem:[%s1048 + $0x34] sm:$0xf]
      %v1063 = vld [vmem:[%s1048 + $0x38] sm:$0xf]
      %v1064 = vld [vmem:[%s1048 + $0x3c] sm:$0xf]
      %v1081 = vunpack.c.l.b16 %v1049
      %v1082 = vunpack.c.l.b16 %v1050
      %v1083 = vunpack.c.l.b16 %v1051
      %v1084 = vunpack.c.l.b16 %v1052
      %v1085 = vunpack.c.l.b16 %v1053
      %v1086 = vunpack.c.l.b16 %v1054
      %v1087 = vunpack.c.l.b16 %v1055
      %v1088 = vunpack.c.l.b16 %v1056
      %v1089 = vunpack.c.l.b16 %v1057
      %v1090 = vunpack.c.l.b16 %v1058
      %v1091 = vunpack.c.l.b16 %v1059
      %v1092 = vunpack.c.l.b16 %v1060
      %v1093 = vunpack.c.l.b16 %v1061
      %v1094 = vunpack.c.l.b16 %v1062
      %v1095 = vunpack.c.l.b16 %v1063
      %v1096 = vunpack.c.l.b16 %v1064
      %v1097 = vpack.c.b16 %v1082, %v1081
      %v1098 = vpack.c.b16 %v1084, %v1083
      %v1099 = vpack.c.b16 %v1086, %v1085
      %v1100 = vpack.c.b16 %v1088, %v1087
      %v1101 = vpack.c.b16 %v1090, %v1089
      %v1102 = vpack.c.b16 %v1092, %v1091
      %v1103 = vpack.c.b16 %v1094, %v1093
      %v1104 = vpack.c.b16 %v1096, %v1095
      %1113 = vmatprep.subr.bf16.mxu0 0
      %1114 = vmatpush1.bf16.msra.mxu0 %v1097
      %1115 = vmatprep.subr.bf16.mxu0 0
      %1116 = vmatpush1.bf16.msra.mxu0 %v1098
      %1117 = vmatprep.subr.bf16.mxu0 0
      %1118 = vmatpush1.bf16.msra.mxu0 %v1099
      %1119 = vmatprep.subr.bf16.mxu0 0
      %1120 = vmatpush1.bf16.msra.mxu0 %v1100
      %1121 = vmatprep.subr.bf16.mxu0 0
      %1122 = vmatpush1.bf16.msra.mxu0 %v1101
      %1123 = vmatprep.subr.bf16.mxu0 0
      %1124 = vmatpush1.bf16.msra.mxu0 %v1102
      %1125 = vmatprep.subr.bf16.mxu0 0
      %1126 = vmatpush1.bf16.msra.mxu0 %v1103
      %1127 = vmatprep.subr.bf16.mxu0 0
      %1128 = vmatpush1.bf16.msra.mxu0 %v1104
      %1129 = vmatprep.subr.bf16.mxu0 0
      %1130 = vmatpush1.bf16.msra.mxu0 0
      %1131 = vmatprep.subr.bf16.mxu0 0
      %1132 = vmatpush1.bf16.msra.mxu0 0
      %1133 = vmatprep.subr.bf16.mxu0 0
      %1134 = vmatpush1.bf16.msra.mxu0 0
      %1135 = vmatprep.subr.bf16.mxu0 0
      %1136 = vmatpush1.bf16.msra.mxu0 0
      %1137 = vmatprep.subr.bf16.mxu0 0
      %1138 = vmatpush1.bf16.msra.mxu0 0
      %1139 = vmatprep.subr.bf16.mxu0 0
      %1140 = vmatpush1.bf16.msra.mxu0 0
      %1141 = vmatprep.subr.bf16.mxu0 0
      %1142 = vmatpush1.bf16.msra.mxu0 0
      %1143 = vmatprep.subr.bf16.mxu0 0
      %1144 = vmatpush1.bf16.msra.mxu0 0
      %1145 = vmatprep.mubr.bf16.mxu0 0
      %1146 = vmatmul.mubr.bf16.gmra.mrb[0].mxu0 %v1042
      %v1147 = vpop.f32.mrb[0].mxu0
      %v1148 = vadd.f32 0.0, %v1147
      %v1149 = vpop.f32.mrb[0].mxu0
      %v1150 = vpop.f32.mrb[0].mxu0
      %v1151 = vadd.f32 0.0, %v1150
      %v1152 = vpop.f32.mrb[0].mxu0
      %1153 = vmatprep.mubr.bf16.mxu0 0
      %1154 = vmatmul.mubr.bf16.gmra.mrb[0].mxu0 %v1043
      %v1155 = vpop.f32.mrb[0].mxu0
      %v1156 = vadd.f32 0.0, %v1155
      %v1157 = vpop.f32.mrb[0].mxu0
      %v1158 = vpop.f32.mrb[0].mxu0
      %v1159 = vadd.f32 0.0, %v1158
      %v1160 = vpop.f32.mrb[0].mxu0
      %1161 = vmatprep.mubr.bf16.mxu0 0
      %1162 = vmatmul.mubr.bf16.gmra.mrb[0].mxu0 %v1044
      %v1163 = vpop.f32.mrb[0].mxu0
      %v1164 = vadd.f32 0.0, %v1163
      %v1165 = vpop.f32.mrb[0].mxu0
      %v1166 = vpop.f32.mrb[0].mxu0
      %v1167 = vadd.f32 0.0, %v1166
      %v1168 = vpop.f32.mrb[0].mxu0
      %1169 = vmatprep.mubr.bf16.mxu0 0
      %1170 = vmatmul.mubr.bf16.gmra.mrb[0].mxu0 %v1045
      %v1171 = vpop.f32.mrb[0].mxu0
      %v1172 = vadd.f32 0.0, %v1171
      %v1173 = vpop.f32.mrb[0].mxu0
      %v1174 = vpop.f32.mrb[0].mxu0
      %v1175 = vadd.f32 0.0, %v1174
      %v1176 = vpop.f32.mrb[0].mxu0
      %1177 = vdwg.mxu0
      %v1178 = vadd.f32 %v1034, %v1148
      %v1179 = vadd.f32 %v1035, %v1151
      %v1180 = vadd.f32 %v1036, %v1156
      %v1181 = vadd.f32 %v1037, %v1159
      %v1182 = vadd.f32 %v1038, %v1164
      %v1183 = vadd.f32 %v1039, %v1167
      %v1184 = vadd.f32 %v1040, %v1172
      %v1185 = vadd.f32 %v1041, %v1175
      %1186 = vst [vmem:[#allocation2] sm:$0xff] %v1178
      %1187 = vst [vmem:[#allocation2 + $0x8] sm:$0xff] %v1179
      %1188 = vst [vmem:[#allocation2 + $0x10] sm:$0xff] %v1180
      %1189 = vst [vmem:[#allocation2 + $0x18] sm:$0xff] %v1181
      %1190 = vst [vmem:[#allocation2 + $0x20] sm:$0xff] %v1182
      %1191 = vst [vmem:[#allocation2 + $0x28] sm:$0xff] %v1183
      %1192 = vst [vmem:[#allocation2 + $0x30] sm:$0xff] %v1184
      %1193 = vst [vmem:[#allocation2 + $0x38] sm:$0xff] %v1185
      %v1194 = vrot.slane %v302, 2
      %v1195 = vrot.slane %v303, 2
      %v1196 = vsel %vm675, %v1194, %v1195
      %v1198 = vld [vmem:[#allocation2] sm:$0xff]
      %v1199 = vld [vmem:[#allocation2 + $0x8] sm:$0xff]
      %v1200 = vld [vmem:[#allocation2 + $0x10] sm:$0xff]
      %v1201 = vld [vmem:[#allocation2 + $0x18] sm:$0xff]
      %v1202 = vld [vmem:[#allocation2 + $0x20] sm:$0xff]
      %v1203 = vld [vmem:[#allocation2 + $0x28] sm:$0xff]
      %v1204 = vld [vmem:[#allocation2 + $0x30] sm:$0xff]
      %v1205 = vld [vmem:[#allocation2 + $0x38] sm:$0xff]
      %v1206 = vpack.c.bf16 %v684, %v681
      %v1207 = vpack.c.bf16 %v690, %v687
      %v1208 = vpack.c.bf16 %v696, %v693
      %v1209 = vpack.c.bf16 %v1196, %v699
      %s1210 = sadd.s32 80, %s318
      %s1211 = smul.addr %s1210, 4
      %s1212 = scalar_lea.vmem %s1, %s1211
      %v1213 = vld [vmem:[%s1212] sm:$0xf]
      %v1214 = vld [vmem:[%s1212 + $0x4] sm:$0xf]
      %v1215 = vld [vmem:[%s1212 + $0x8] sm:$0xf]
      %v1216 = vld [vmem:[%s1212 + $0xc] sm:$0xf]
      %v1217 = vld [vmem:[%s1212 + $0x10] sm:$0xf]
      %v1218 = vld [vmem:[%s1212 + $0x14] sm:$0xf]
      %v1219 = vld [vmem:[%s1212 + $0x18] sm:$0xf]
      %v1220 = vld [vmem:[%s1212 + $0x1c] sm:$0xf]
      %v1221 = vld [vmem:[%s1212 + $0x20] sm:$0xf]
      %v1222 = vld [vmem:[%s1212 + $0x24] sm:$0xf]
      %v1223 = vld [vmem:[%s1212 + $0x28] sm:$0xf]
      %v1224 = vld [vmem:[%s1212 + $0x2c] sm:$0xf]
      %v1225 = vld [vmem:[%s1212 + $0x30] sm:$0xf]
      %v1226 = vld [vmem:[%s1212 + $0x34] sm:$0xf]
      %v1227 = vld [vmem:[%s1212 + $0x38] sm:$0xf]
      %v1228 = vld [vmem:[%s1212 + $0x3c] sm:$0xf]
      %v1245 = vunpack.c.l.b16 %v1213
      %v1246 = vunpack.c.l.b16 %v1214
      %v1247 = vunpack.c.l.b16 %v1215
      %v1248 = vunpack.c.l.b16 %v1216
      %v1249 = vunpack.c.l.b16 %v1217
      %v1250 = vunpack.c.l.b16 %v1218
      %v1251 = vunpack.c.l.b16 %v1219
      %v1252 = vunpack.c.l.b16 %v1220
      %v1253 = vunpack.c.l.b16 %v1221
      %v1254 = vunpack.c.l.b16 %v1222
      %v1255 = vunpack.c.l.b16 %v1223
      %v1256 = vunpack.c.l.b16 %v1224
      %v1257 = vunpack.c.l.b16 %v1225
      %v1258 = vunpack.c.l.b16 %v1226
      %v1259 = vunpack.c.l.b16 %v1227
      %v1260 = vunpack.c.l.b16 %v1228
      %v1261 = vpack.c.b16 %v1246, %v1245
      %v1262 = vpack.c.b16 %v1248, %v1247
      %v1263 = vpack.c.b16 %v1250, %v1249
      %v1264 = vpack.c.b16 %v1252, %v1251
      %v1265 = vpack.c.b16 %v1254, %v1253
      %v1266 = vpack.c.b16 %v1256, %v1255
      %v1267 = vpack.c.b16 %v1258, %v1257
      %v1268 = vpack.c.b16 %v1260, %v1259
      %1277 = vmatprep.subr.bf16.mxu0 0
      %1278 = vmatpush1.bf16.msra.mxu0 %v1261
      %1279 = vmatprep.subr.bf16.mxu0 0
      %1280 = vmatpush1.bf16.msra.mxu0 %v1262
      %1281 = vmatprep.subr.bf16.mxu0 0
      %1282 = vmatpush1.bf16.msra.mxu0 %v1263
      %1283 = vmatprep.subr.bf16.mxu0 0
      %1284 = vmatpush1.bf16.msra.mxu0 %v1264
      %1285 = vmatprep.subr.bf16.mxu0 0
      %1286 = vmatpush1.bf16.msra.mxu0 %v1265
      %1287 = vmatprep.subr.bf16.mxu0 0
      %1288 = vmatpush1.bf16.msra.mxu0 %v1266
      %1289 = vmatprep.subr.bf16.mxu0 0
      %1290 = vmatpush1.bf16.msra.mxu0 %v1267
      %1291 = vmatprep.subr.bf16.mxu0 0
      %1292 = vmatpush1.bf16.msra.mxu0 %v1268
      %1293 = vmatprep.subr.bf16.mxu0 0
      %1294 = vmatpush1.bf16.msra.mxu0 0
      %1295 = vmatprep.subr.bf16.mxu0 0
      %1296 = vmatpush1.bf16.msra.mxu0 0
      %1297 = vmatprep.subr.bf16.mxu0 0
      %1298 = vmatpush1.bf16.msra.mxu0 0
      %1299 = vmatprep.subr.bf16.mxu0 0
      %1300 = vmatpush1.bf16.msra.mxu0 0
      %1301 = vmatprep.subr.bf16.mxu0 0
      %1302 = vmatpush1.bf16.msra.mxu0 0
      %1303 = vmatprep.subr.bf16.mxu0 0
      %1304 = vmatpush1.bf16.msra.mxu0 0
      %1305 = vmatprep.subr.bf16.mxu0 0
      %1306 = vmatpush1.bf16.msra.mxu0 0
      %1307 = vmatprep.subr.bf16.mxu0 0
      %1308 = vmatpush1.bf16.msra.mxu0 0
      %1309 = vmatprep.mubr.bf16.mxu0 0
      %1310 = vmatmul.mubr.bf16.gmra.mrb[0].mxu0 %v1206
      %v1311 = vpop.f32.mrb[0].mxu0
      %v1312 = vadd.f32 0.0, %v1311
      %v1313 = vpop.f32.mrb[0].mxu0
      %v1314 = vpop.f32.mrb[0].mxu0
      %v1315 = vadd.f32 0.0, %v1314
      %v1316 = vpop.f32.mrb[0].mxu0
      %1317 = vmatprep.mubr.bf16.mxu0 0
      %1318 = vmatmul.mubr.bf16.gmra.mrb[0].mxu0 %v1207
      %v1319 = vpop.f32.mrb[0].mxu0
      %v1320 = vadd.f32 0.0, %v1319
      %v1321 = vpop.f32.mrb[0].mxu0
      %v1322 = vpop.f32.mrb[0].mxu0
      %v1323 = vadd.f32 0.0, %v1322
      %v1324 = vpop.f32.mrb[0].mxu0
      %1325 = vmatprep.mubr.bf16.mxu0 0
      %1326 = vmatmul.mubr.bf16.gmra.mrb[0].mxu0 %v1208
      %v1327 = vpop.f32.mrb[0].mxu0
      %v1328 = vadd.f32 0.0, %v1327
      %v1329 = vpop.f32.mrb[0].mxu0
      %v1330 = vpop.f32.mrb[0].mxu0
      %v1331 = vadd.f32 0.0, %v1330
      %v1332 = vpop.f32.mrb[0].mxu0
      %1333 = vmatprep.mubr.bf16.mxu0 0
      %1334 = vmatmul.mubr.bf16.gmra.mrb[0].mxu0 %v1209
      %v1335 = vpop.f32.mrb[0].mxu0
      %v1336 = vadd.f32 0.0, %v1335
      %v1337 = vpop.f32.mrb[0].mxu0
      %v1338 = vpop.f32.mrb[0].mxu0
      %v1339 = vadd.f32 0.0, %v1338
      %v1340 = vpop.f32.mrb[0].mxu0
      %1341 = vdwg.mxu0
      %v1342 = vadd.f32 %v1198, %v1312
      %v1343 = vadd.f32 %v1199, %v1315
      %v1344 = vadd.f32 %v1200, %v1320
      %v1345 = vadd.f32 %v1201, %v1323
      %v1346 = vadd.f32 %v1202, %v1328
      %v1347 = vadd.f32 %v1203, %v1331
      %v1348 = vadd.f32 %v1204, %v1336
      %v1349 = vadd.f32 %v1205, %v1339
      %1350 = vst [vmem:[#allocation2] sm:$0xff] %v1342
      %1351 = vst [vmem:[#allocation2 + $0x8] sm:$0xff] %v1343
      %1352 = vst [vmem:[#allocation2 + $0x10] sm:$0xff] %v1344
      %1353 = vst [vmem:[#allocation2 + $0x18] sm:$0xff] %v1345
      %1354 = vst [vmem:[#allocation2 + $0x20] sm:$0xff] %v1346
      %1355 = vst [vmem:[#allocation2 + $0x28] sm:$0xff] %v1347
      %1356 = vst [vmem:[#allocation2 + $0x30] sm:$0xff] %v1348
      %1357 = vst [vmem:[#allocation2 + $0x38] sm:$0xff] %v1349
      %v1358 = vld [vmem:[#allocation2] sm:$0xff]
      %v1359 = vld [vmem:[#allocation2 + $0x8] sm:$0xff]
      %v1360 = vld [vmem:[#allocation2 + $0x10] sm:$0xff]
      %v1361 = vld [vmem:[#allocation2 + $0x18] sm:$0xff]
      %v1362 = vld [vmem:[#allocation2 + $0x20] sm:$0xff]
      %v1363 = vld [vmem:[#allocation2 + $0x28] sm:$0xff]
      %v1364 = vld [vmem:[#allocation2 + $0x30] sm:$0xff]
      %v1365 = vld [vmem:[#allocation2 + $0x38] sm:$0xff]
      %v1366 = vpack.c.bf16 %v304, %v302
      %s1367 = sadd.s32 96, %s318
      %s1368 = smul.addr %s1367, 4
      %s1369 = scalar_lea.vmem %s1, %s1368
      %v1370 = vld [vmem:[%s1369] sm:$0xf]
      %v1371 = vld [vmem:[%s1369 + $0x4] sm:$0xf]
      %v1372 = vld [vmem:[%s1369 + $0x8] sm:$0xf]
      %v1373 = vld [vmem:[%s1369 + $0xc] sm:$0xf]
      %v1374 = vld [vmem:[%s1369 + $0x10] sm:$0xf]
      %v1375 = vld [vmem:[%s1369 + $0x14] sm:$0xf]
      %v1376 = vld [vmem:[%s1369 + $0x18] sm:$0xf]
      %v1377 = vld [vmem:[%s1369 + $0x1c] sm:$0xf]
      %v1378 = vld [vmem:[%s1369 + $0x20] sm:$0xf]
      %v1379 = vld [vmem:[%s1369 + $0x24] sm:$0xf]
      %v1380 = vld [vmem:[%s1369 + $0x28] sm:$0xf]
      %v1381 = vld [vmem:[%s1369 + $0x2c] sm:$0xf]
      %v1382 = vld [vmem:[%s1369 + $0x30] sm:$0xf]
      %v1383 = vld [vmem:[%s1369 + $0x34] sm:$0xf]
      %v1384 = vld [vmem:[%s1369 + $0x38] sm:$0xf]
      %v1385 = vld [vmem:[%s1369 + $0x3c] sm:$0xf]
      %v1402 = vunpack.c.l.b16 %v1370
      %v1403 = vunpack.c.l.b16 %v1371
      %v1404 = vunpack.c.l.b16 %v1372
      %v1405 = vunpack.c.l.b16 %v1373
      %v1406 = vunpack.c.l.b16 %v1374
      %v1407 = vunpack.c.l.b16 %v1375
      %v1408 = vunpack.c.l.b16 %v1376
      %v1409 = vunpack.c.l.b16 %v1377
      %v1410 = vunpack.c.l.b16 %v1378
      %v1411 = vunpack.c.l.b16 %v1379
      %v1412 = vunpack.c.l.b16 %v1380
      %v1413 = vunpack.c.l.b16 %v1381
      %v1414 = vunpack.c.l.b16 %v1382
      %v1415 = vunpack.c.l.b16 %v1383
      %v1416 = vunpack.c.l.b16 %v1384
      %v1417 = vunpack.c.l.b16 %v1385
      %v1418 = vpack.c.b16 %v1403, %v1402
      %v1419 = vpack.c.b16 %v1405, %v1404
      %v1420 = vpack.c.b16 %v1407, %v1406
      %v1421 = vpack.c.b16 %v1409, %v1408
      %v1422 = vpack.c.b16 %v1411, %v1410
      %v1423 = vpack.c.b16 %v1413, %v1412
      %v1424 = vpack.c.b16 %v1415, %v1414
      %v1425 = vpack.c.b16 %v1417, %v1416
      %1434 = vmatprep.subr.bf16.mxu0 0
      %1435 = vmatpush1.bf16.msra.mxu0 %v1418
      %1436 = vmatprep.subr.bf16.mxu0 0
      %1437 = vmatpush1.bf16.msra.mxu0 %v1419
      %1438 = vmatprep.subr.bf16.mxu0 0
      %1439 = vmatpush1.bf16.msra.mxu0 %v1420
      %1440 = vmatprep.subr.bf16.mxu0 0
      %1441 = vmatpush1.bf16.msra.mxu0 %v1421
      %1442 = vmatprep.subr.bf16.mxu0 0
      %1443 = vmatpush1.bf16.msra.mxu0 %v1422
      %1444 = vmatprep.subr.bf16.mxu0 0
      %1445 = vmatpush1.bf16.msra.mxu0 %v1423
      %1446 = vmatprep.subr.bf16.mxu0 0
      %1447 = vmatpush1.bf16.msra.mxu0 %v1424
      %1448 = vmatprep.subr.bf16.mxu0 0
      %1449 = vmatpush1.bf16.msra.mxu0 %v1425
      %1450 = vmatprep.subr.bf16.mxu0 0
      %1451 = vmatpush1.bf16.msra.mxu0 0
      %1452 = vmatprep.subr.bf16.mxu0 0
      %1453 = vmatpush1.bf16.msra.mxu0 0
      %1454 = vmatprep.subr.bf16.mxu0 0
      %1455 = vmatpush1.bf16.msra.mxu0 0
      %1456 = vmatprep.subr.bf16.mxu0 0
      %1457 = vmatpush1.bf16.msra.mxu0 0
      %1458 = vmatprep.subr.bf16.mxu0 0
      %1459 = vmatpush1.bf16.msra.mxu0 0
      %1460 = vmatprep.subr.bf16.mxu0 0
      %1461 = vmatpush1.bf16.msra.mxu0 0
      %1462 = vmatprep.subr.bf16.mxu0 0
      %1463 = vmatpush1.bf16.msra.mxu0 0
      %1464 = vmatprep.subr.bf16.mxu0 0
      %1465 = vmatpush1.bf16.msra.mxu0 0
      %1466 = vmatprep.mubr.bf16.mxu0 0
      %1467 = vmatmul.mubr.bf16.gmra.mrb[0].mxu0 %v315
      %v1468 = vpop.f32.mrb[0].mxu0
      %v1469 = vadd.f32 0.0, %v1468
      %v1470 = vpop.f32.mrb[0].mxu0
      %v1471 = vpop.f32.mrb[0].mxu0
      %v1472 = vadd.f32 0.0, %v1471
      %v1473 = vpop.f32.mrb[0].mxu0
      %1474 = vmatprep.mubr.bf16.mxu0 0
      %1475 = vmatmul.mubr.bf16.gmra.mrb[0].mxu0 %v316
      %v1476 = vpop.f32.mrb[0].mxu0
      %v1477 = vadd.f32 0.0, %v1476
      %v1478 = vpop.f32.mrb[0].mxu0
      %v1479 = vpop.f32.mrb[0].mxu0
      %v1480 = vadd.f32 0.0, %v1479
      %v1481 = vpop.f32.mrb[0].mxu0
      %1482 = vmatprep.mubr.bf16.mxu0 0
      %1483 = vmatmul.mubr.bf16.gmra.mrb[0].mxu0 %v317
      %v1484 = vpop.f32.mrb[0].mxu0
      %v1485 = vadd.f32 0.0, %v1484
      %v1486 = vpop.f32.mrb[0].mxu0
      %v1487 = vpop.f32.mrb[0].mxu0
      %v1488 = vadd.f32 0.0, %v1487
      %v1489 = vpop.f32.mrb[0].mxu0
      %1490 = vmatprep.mubr.bf16.mxu0 0
      %1491 = vmatmul.mubr.bf16.gmra.mrb[0].mxu0 %v1366
      %v1492 = vpop.f32.mrb[0].mxu0
      %v1493 = vadd.f32 0.0, %v1492
      %v1494 = vpop.f32.mrb[0].mxu0
      %v1495 = vpop.f32.mrb[0].mxu0
      %v1496 = vadd.f32 0.0, %v1495
      %v1497 = vpop.f32.mrb[0].mxu0
      %1498 = vdwg.mxu0
      %v1499 = vadd.f32 %v1358, %v1469
      %v1500 = vadd.f32 %v1359, %v1472
      %v1501 = vadd.f32 %v1360, %v1477
      %v1502 = vadd.f32 %v1361, %v1480
      %v1503 = vadd.f32 %v1362, %v1485
      %v1504 = vadd.f32 %v1363, %v1488
      %v1505 = vadd.f32 %v1364, %v1493
      %v1506 = vadd.f32 %v1365, %v1496
      %1507 = vst [vmem:[#allocation2] sm:$0xff] %v1499
      %1508 = vst [vmem:[#allocation2 + $0x8] sm:$0xff] %v1500
      %1509 = vst [vmem:[#allocation2 + $0x10] sm:$0xff] %v1501
      %1510 = vst [vmem:[#allocation2 + $0x18] sm:$0xff] %v1502
      %1511 = vst [vmem:[#allocation2 + $0x20] sm:$0xff] %v1503
      %1512 = vst [vmem:[#allocation2 + $0x28] sm:$0xff] %v1504
      %1513 = vst [vmem:[#allocation2 + $0x30] sm:$0xff] %v1505
      %1514 = vst [vmem:[#allocation2 + $0x38] sm:$0xff] %v1506
      %v1517 = vrot.slane %v304, 1
      %v1518 = vrot.slane %v305, 1
      %v1519 = vsel %vm482, %v1517, %v1518
      %v1521 = vld [vmem:[#allocation2] sm:$0xff]
      %v1522 = vld [vmem:[#allocation2 + $0x8] sm:$0xff]
      %v1523 = vld [vmem:[#allocation2 + $0x10] sm:$0xff]
      %v1524 = vld [vmem:[#allocation2 + $0x18] sm:$0xff]
      %v1525 = vld [vmem:[#allocation2 + $0x20] sm:$0xff]
      %v1526 = vld [vmem:[#allocation2 + $0x28] sm:$0xff]
      %v1527 = vld [vmem:[#allocation2 + $0x30] sm:$0xff]
      %v1528 = vld [vmem:[#allocation2 + $0x38] sm:$0xff]
      %v1529 = vpack.c.bf16 %v1519, %v1032
      %s1530 = sadd.s32 112, %s318
      %s1531 = smul.addr %s1530, 4
      %s1532 = scalar_lea.vmem %s1, %s1531
      %v1533 = vld [vmem:[%s1532] sm:$0xf]
      %v1534 = vld [vmem:[%s1532 + $0x4] sm:$0xf]
      %v1535 = vld [vmem:[%s1532 + $0x8] sm:$0xf]
      %v1536 = vld [vmem:[%s1532 + $0xc] sm:$0xf]
      %v1537 = vld [vmem:[%s1532 + $0x10] sm:$0xf]
      %v1538 = vld [vmem:[%s1532 + $0x14] sm:$0xf]
      %v1539 = vld [vmem:[%s1532 + $0x18] sm:$0xf]
      %v1540 = vld [vmem:[%s1532 + $0x1c] sm:$0xf]
      %v1541 = vld [vmem:[%s1532 + $0x20] sm:$0xf]
      %v1542 = vld [vmem:[%s1532 + $0x24] sm:$0xf]
      %v1543 = vld [vmem:[%s1532 + $0x28] sm:$0xf]
      %v1544 = vld [vmem:[%s1532 + $0x2c] sm:$0xf]
      %v1545 = vld [vmem:[%s1532 + $0x30] sm:$0xf]
      %v1546 = vld [vmem:[%s1532 + $0x34] sm:$0xf]
      %v1547 = vld [vmem:[%s1532 + $0x38] sm:$0xf]
      %v1548 = vld [vmem:[%s1532 + $0x3c] sm:$0xf]
      %v1565 = vunpack.c.l.b16 %v1533
      %v1566 = vunpack.c.l.b16 %v1534
      %v1567 = vunpack.c.l.b16 %v1535
      %v1568 = vunpack.c.l.b16 %v1536
      %v1569 = vunpack.c.l.b16 %v1537
      %v1570 = vunpack.c.l.b16 %v1538
      %v1571 = vunpack.c.l.b16 %v1539
      %v1572 = vunpack.c.l.b16 %v1540
      %v1573 = vunpack.c.l.b16 %v1541
      %v1574 = vunpack.c.l.b16 %v1542
      %v1575 = vunpack.c.l.b16 %v1543
      %v1576 = vunpack.c.l.b16 %v1544
      %v1577 = vunpack.c.l.b16 %v1545
      %v1578 = vunpack.c.l.b16 %v1546
      %v1579 = vunpack.c.l.b16 %v1547
      %v1580 = vunpack.c.l.b16 %v1548
      %v1581 = vpack.c.b16 %v1566, %v1565
      %v1582 = vpack.c.b16 %v1568, %v1567
      %v1583 = vpack.c.b16 %v1570, %v1569
      %v1584 = vpack.c.b16 %v1572, %v1571
      %v1585 = vpack.c.b16 %v1574, %v1573
      %v1586 = vpack.c.b16 %v1576, %v1575
      %v1587 = vpack.c.b16 %v1578, %v1577
      %v1588 = vpack.c.b16 %v1580, %v1579
      %1597 = vmatprep.subr.bf16.mxu0 0
      %1598 = vmatpush1.bf16.msra.mxu0 %v1581
      %1599 = vmatprep.subr.bf16.mxu0 0
      %1600 = vmatpush1.bf16.msra.mxu0 %v1582
      %1601 = vmatprep.subr.bf16.mxu0 0
      %1602 = vmatpush1.bf16.msra.mxu0 %v1583
      %1603 = vmatprep.subr.bf16.mxu0 0
      %1604 = vmatpush1.bf16.msra.mxu0 %v1584
      %1605 = vmatprep.subr.bf16.mxu0 0
      %1606 = vmatpush1.bf16.msra.mxu0 %v1585
      %1607 = vmatprep.subr.bf16.mxu0 0
      %1608 = vmatpush1.bf16.msra.mxu0 %v1586
      %1609 = vmatprep.subr.bf16.mxu0 0
      %1610 = vmatpush1.bf16.msra.mxu0 %v1587
      %1611 = vmatprep.subr.bf16.mxu0 0
      %1612 = vmatpush1.bf16.msra.mxu0 %v1588
      %1613 = vmatprep.subr.bf16.mxu0 0
      %1614 = vmatpush1.bf16.msra.mxu0 0
      %1615 = vmatprep.subr.bf16.mxu0 0
      %1616 = vmatpush1.bf16.msra.mxu0 0
      %1617 = vmatprep.subr.bf16.mxu0 0
      %1618 = vmatpush1.bf16.msra.mxu0 0
      %1619 = vmatprep.subr.bf16.mxu0 0
      %1620 = vmatpush1.bf16.msra.mxu0 0
      %1621 = vmatprep.subr.bf16.mxu0 0
      %1622 = vmatpush1.bf16.msra.mxu0 0
      %1623 = vmatprep.subr.bf16.mxu0 0
      %1624 = vmatpush1.bf16.msra.mxu0 0
      %1625 = vmatprep.subr.bf16.mxu0 0
      %1626 = vmatpush1.bf16.msra.mxu0 0
      %1627 = vmatprep.subr.bf16.mxu0 0
      %1628 = vmatpush1.bf16.msra.mxu0 0
      %1629 = vmatprep.mubr.bf16.mxu0 0
      %1630 = vmatmul.mubr.bf16.gmra.mrb[0].mxu0 %v524
      %v1631 = vpop.f32.mrb[0].mxu0
      %v1632 = vadd.f32 0.0, %v1631
      %v1633 = vpop.f32.mrb[0].mxu0
      %v1634 = vpop.f32.mrb[0].mxu0
      %v1635 = vadd.f32 0.0, %v1634
      %v1636 = vpop.f32.mrb[0].mxu0
      %1637 = vmatprep.mubr.bf16.mxu0 0
      %1638 = vmatmul.mubr.bf16.gmra.mrb[0].mxu0 %v525
      %v1639 = vpop.f32.mrb[0].mxu0
      %v1640 = vadd.f32 0.0, %v1639
      %v1641 = vpop.f32.mrb[0].mxu0
      %v1642 = vpop.f32.mrb[0].mxu0
      %v1643 = vadd.f32 0.0, %v1642
      %v1644 = vpop.f32.mrb[0].mxu0
      %1645 = vmatprep.mubr.bf16.mxu0 0
      %1646 = vmatmul.mubr.bf16.gmra.mrb[0].mxu0 %v526
      %v1647 = vpop.f32.mrb[0].mxu0
      %v1648 = vadd.f32 0.0, %v1647
      %v1649 = vpop.f32.mrb[0].mxu0
      %v1650 = vpop.f32.mrb[0].mxu0
      %v1651 = vadd.f32 0.0, %v1650
      %v1652 = vpop.f32.mrb[0].mxu0
      %1653 = vmatprep.mubr.bf16.mxu0 0
      %1654 = vmatmul.mubr.bf16.gmra.mrb[0].mxu0 %v1529
      %v1655 = vpop.f32.mrb[0].mxu0
      %v1656 = vadd.f32 0.0, %v1655
      %v1657 = vpop.f32.mrb[0].mxu0
      %v1658 = vpop.f32.mrb[0].mxu0
      %v1659 = vadd.f32 0.0, %v1658
      %v1660 = vpop.f32.mrb[0].mxu0
      %1661 = vdwg.mxu0
      %v1662 = vadd.f32 %v1521, %v1632
      %v1663 = vadd.f32 %v1522, %v1635
      %v1664 = vadd.f32 %v1523, %v1640
      %v1665 = vadd.f32 %v1524, %v1643
      %v1666 = vadd.f32 %v1525, %v1648
      %v1667 = vadd.f32 %v1526, %v1651
      %v1668 = vadd.f32 %v1527, %v1656
      %v1669 = vadd.f32 %v1528, %v1659
      %1670 = vst [vmem:[#allocation2] sm:$0xff] %v1662
      %1671 = vst [vmem:[#allocation2 + $0x8] sm:$0xff] %v1663
      %1672 = vst [vmem:[#allocation2 + $0x10] sm:$0xff] %v1664
      %1673 = vst [vmem:[#allocation2 + $0x18] sm:$0xff] %v1665
      %1674 = vst [vmem:[#allocation2 + $0x20] sm:$0xff] %v1666
      %1675 = vst [vmem:[#allocation2 + $0x28] sm:$0xff] %v1667
      %1676 = vst [vmem:[#allocation2 + $0x30] sm:$0xff] %v1668
      %1677 = vst [vmem:[#allocation2 + $0x38] sm:$0xff] %v1669
      %v1678 = vrot.slane %v304, 2
      %v1679 = vrot.slane %v305, 2
      %v1680 = vsel %vm675, %v1678, %v1679
      %v1682 = vld [vmem:[#allocation2] sm:$0xff]
      %v1683 = vld [vmem:[#allocation2 + $0x8] sm:$0xff]
      %v1684 = vld [vmem:[#allocation2 + $0x10] sm:$0xff]
      %v1685 = vld [vmem:[#allocation2 + $0x18] sm:$0xff]
      %v1686 = vld [vmem:[#allocation2 + $0x20] sm:$0xff]
      %v1687 = vld [vmem:[#allocation2 + $0x28] sm:$0xff]
      %v1688 = vld [vmem:[#allocation2 + $0x30] sm:$0xff]
      %v1689 = vld [vmem:[#allocation2 + $0x38] sm:$0xff]
      %v1690 = vpack.c.bf16 %v1680, %v1196
      %s1691 = sadd.s32 128, %s318
      %s1692 = smul.addr %s1691, 4
      %s1693 = scalar_lea.vmem %s1, %s1692
      %v1694 = vld [vmem:[%s1693] sm:$0xf]
      %v1695 = vld [vmem:[%s1693 + $0x4] sm:$0xf]
      %v1696 = vld [vmem:[%s1693 + $0x8] sm:$0xf]
      %v1697 = vld [vmem:[%s1693 + $0xc] sm:$0xf]
      %v1698 = vld [vmem:[%s1693 + $0x10] sm:$0xf]
      %v1699 = vld [vmem:[%s1693 + $0x14] sm:$0xf]
      %v1700 = vld [vmem:[%s1693 + $0x18] sm:$0xf]
      %v1701 = vld [vmem:[%s1693 + $0x1c] sm:$0xf]
      %v1702 = vld [vmem:[%s1693 + $0x20] sm:$0xf]
      %v1703 = vld [vmem:[%s1693 + $0x24] sm:$0xf]
      %v1704 = vld [vmem:[%s1693 + $0x28] sm:$0xf]
      %v1705 = vld [vmem:[%s1693 + $0x2c] sm:$0xf]
      %v1706 = vld [vmem:[%s1693 + $0x30] sm:$0xf]
      %v1707 = vld [vmem:[%s1693 + $0x34] sm:$0xf]
      %v1708 = vld [vmem:[%s1693 + $0x38] sm:$0xf]
      %v1709 = vld [vmem:[%s1693 + $0x3c] sm:$0xf]
      %v1726 = vunpack.c.l.b16 %v1694
      %v1727 = vunpack.c.l.b16 %v1695
      %v1728 = vunpack.c.l.b16 %v1696
      %v1729 = vunpack.c.l.b16 %v1697
      %v1730 = vunpack.c.l.b16 %v1698
      %v1731 = vunpack.c.l.b16 %v1699
      %v1732 = vunpack.c.l.b16 %v1700
      %v1733 = vunpack.c.l.b16 %v1701
      %v1734 = vunpack.c.l.b16 %v1702
      %v1735 = vunpack.c.l.b16 %v1703
      %v1736 = vunpack.c.l.b16 %v1704
      %v1737 = vunpack.c.l.b16 %v1705
      %v1738 = vunpack.c.l.b16 %v1706
      %v1739 = vunpack.c.l.b16 %v1707
      %v1740 = vunpack.c.l.b16 %v1708
      %v1741 = vunpack.c.l.b16 %v1709
      %v1742 = vpack.c.b16 %v1727, %v1726
      %v1743 = vpack.c.b16 %v1729, %v1728
      %v1744 = vpack.c.b16 %v1731, %v1730
      %v1745 = vpack.c.b16 %v1733, %v1732
      %v1746 = vpack.c.b16 %v1735, %v1734
      %v1747 = vpack.c.b16 %v1737, %v1736
      %v1748 = vpack.c.b16 %v1739, %v1738
      %v1749 = vpack.c.b16 %v1741, %v1740
      %1758 = vmatprep.subr.bf16.mxu0 0
      %1759 = vmatpush1.bf16.msra.mxu0 %v1742
      %1760 = vmatprep.subr.bf16.mxu0 0
      %1761 = vmatpush1.bf16.msra.mxu0 %v1743
      %1762 = vmatprep.subr.bf16.mxu0 0
      %1763 = vmatpush1.bf16.msra.mxu0 %v1744
      %1764 = vmatprep.subr.bf16.mxu0 0
      %1765 = vmatpush1.bf16.msra.mxu0 %v1745
      %1766 = vmatprep.subr.bf16.mxu0 0
      %1767 = vmatpush1.bf16.msra.mxu0 %v1746
      %1768 = vmatprep.subr.bf16.mxu0 0
      %1769 = vmatpush1.bf16.msra.mxu0 %v1747
      %1770 = vmatprep.subr.bf16.mxu0 0
      %1771 = vmatpush1.bf16.msra.mxu0 %v1748
      %1772 = vmatprep.subr.bf16.mxu0 0
      %1773 = vmatpush1.bf16.msra.mxu0 %v1749
      %1774 = vmatprep.subr.bf16.mxu0 0
      %1775 = vmatpush1.bf16.msra.mxu0 0
      %1776 = vmatprep.subr.bf16.mxu0 0
      %1777 = vmatpush1.bf16.msra.mxu0 0
      %1778 = vmatprep.subr.bf16.mxu0 0
      %1779 = vmatpush1.bf16.msra.mxu0 0
      %1780 = vmatprep.subr.bf16.mxu0 0
      %1781 = vmatpush1.bf16.msra.mxu0 0
      %1782 = vmatprep.subr.bf16.mxu0 0
      %1783 = vmatpush1.bf16.msra.mxu0 0
      %1784 = vmatprep.subr.bf16.mxu0 0
      %1785 = vmatpush1.bf16.msra.mxu0 0
      %1786 = vmatprep.subr.bf16.mxu0 0
      %1787 = vmatpush1.bf16.msra.mxu0 0
      %1788 = vmatprep.subr.bf16.mxu0 0
      %1789 = vmatpush1.bf16.msra.mxu0 0
      %1790 = vmatprep.mubr.bf16.mxu0 0
      %1791 = vmatmul.mubr.bf16.gmra.mrb[0].mxu0 %v717
      %v1792 = vpop.f32.mrb[0].mxu0
      %v1793 = vadd.f32 0.0, %v1792
      %v1794 = vpop.f32.mrb[0].mxu0
      %v1795 = vpop.f32.mrb[0].mxu0
      %v1796 = vadd.f32 0.0, %v1795
      %v1797 = vpop.f32.mrb[0].mxu0
      %1798 = vmatprep.mubr.bf16.mxu0 0
      %1799 = vmatmul.mubr.bf16.gmra.mrb[0].mxu0 %v718
      %v1800 = vpop.f32.mrb[0].mxu0
      %v1801 = vadd.f32 0.0, %v1800
      %v1802 = vpop.f32.mrb[0].mxu0
      %v1803 = vpop.f32.mrb[0].mxu0
      %v1804 = vadd.f32 0.0, %v1803
      %v1805 = vpop.f32.mrb[0].mxu0
      %1806 = vmatprep.mubr.bf16.mxu0 0
      %1807 = vmatmul.mubr.bf16.gmra.mrb[0].mxu0 %v719
      %v1808 = vpop.f32.mrb[0].mxu0
      %v1809 = vadd.f32 0.0, %v1808
      %v1810 = vpop.f32.mrb[0].mxu0
      %v1811 = vpop.f32.mrb[0].mxu0
      %v1812 = vadd.f32 0.0, %v1811
      %v1813 = vpop.f32.mrb[0].mxu0
      %1814 = vmatprep.mubr.bf16.mxu0 0
      %1815 = vmatmul.mubr.bf16.gmra.mrb[0].mxu0 %v1690
      %v1816 = vpop.f32.mrb[0].mxu0
      %v1817 = vadd.f32 0.0, %v1816
      %v1818 = vpop.f32.mrb[0].mxu0
      %v1819 = vpop.f32.mrb[0].mxu0
      %v1820 = vadd.f32 0.0, %v1819
      %v1821 = vpop.f32.mrb[0].mxu0
      %1822 = vdwg.mxu0
      %v1823 = vadd.f32 %v1682, %v1793
      %v1824 = vadd.f32 %v1683, %v1796
      %v1825 = vadd.f32 %v1684, %v1801
      %v1826 = vadd.f32 %v1685, %v1804
      %v1827 = vadd.f32 %v1686, %v1809
      %v1828 = vadd.f32 %v1687, %v1812
      %v1829 = vadd.f32 %v1688, %v1817
      %v1830 = vadd.f32 %v1689, %v1820
      %1831 = vst [vmem:[#allocation2] sm:$0xff] %v1823
      %1832 = vst [vmem:[#allocation2 + $0x8] sm:$0xff] %v1824
      %1833 = vst [vmem:[#allocation2 + $0x10] sm:$0xff] %v1825
      %1834 = vst [vmem:[#allocation2 + $0x18] sm:$0xff] %v1826
      %1835 = vst [vmem:[#allocation2 + $0x20] sm:$0xff] %v1827
      %1836 = vst [vmem:[#allocation2 + $0x28] sm:$0xff] %v1828
      %1837 = vst [vmem:[#allocation2 + $0x30] sm:$0xff] %v1829
      %1838 = vst [vmem:[#allocation2 + $0x38] sm:$0xff] %v1830
      %p1839 = scmp.eq.s32.totalorder %s23, 2
      // Predicated region
      $region37: #{bottleneck_forward.8} parent=27 // pred_check
        %p1840 = pneg %p1839
      $region38: #{bottleneck_forward.8} parent=27 // pred_check_branch
        %1842 = sbr.rel (%p1840) target = $region40
      $region39: #{bottleneck_forward.8} parent=27 // pred_region
        %v1843 = vld [vmem:[#allocation2] sm:$0xff]
        %v1844 = vld [vmem:[#allocation2 + $0x8] sm:$0xff]
        %v1845 = vld [vmem:[#allocation2 + $0x10] sm:$0xff]
        %v1846 = vld [vmem:[#allocation2 + $0x18] sm:$0xff]
        %v1847 = vld [vmem:[#allocation2 + $0x20] sm:$0xff]
        %v1848 = vld [vmem:[#allocation2 + $0x28] sm:$0xff]
        %v1849 = vld [vmem:[#allocation2 + $0x30] sm:$0xff]
        %v1850 = vld [vmem:[#allocation2 + $0x38] sm:$0xff]
        %1851 = vst [vmem:[%s242] sm:$0xff] %v1843
        %1852 = vst [vmem:[%s242 + $0x8] sm:$0xff] %v1844
        %1853 = vst [vmem:[%s242 + $0x10] sm:$0xff] %v1845
        %1854 = vst [vmem:[%s242 + $0x18] sm:$0xff] %v1846
        %1855 = vst [vmem:[%s242 + $0x20] sm:$0xff] %v1847
        %1856 = vst [vmem:[%s242 + $0x28] sm:$0xff] %v1848
        %1857 = vst [vmem:[%s242 + $0x30] sm:$0xff] %v1849
        %1858 = vst [vmem:[%s242 + $0x38] sm:$0xff] %v1850
        %v1859 = vld [vmem:[%s3] sm:$0x1]
        %vm1860 = vcmask 523264
        %v1862 = vsel %vm1860, 1.0, 0
        %1864 = vmatprep.subr.mxu0 0.0
        %1865 = vmatpush1.msra.mxu0 %v1843
        %1866 = vmatprep.subr.mxu0 0.0
        %1867 = vmatpush1.msra.mxu0 %v1844
        %1868 = vmatprep.subr.mxu0 0.0
        %1869 = vmatpush1.msra.mxu0 %v1845
        %1870 = vmatprep.subr.mxu0 0.0
        %1871 = vmatpush1.msra.mxu0 %v1846
        %1872 = vmatprep.subr.mxu0 0.0
        %1873 = vmatpush1.msra.mxu0 %v1847
        %1874 = vmatprep.subr.mxu0 0.0
        %1875 = vmatpush1.msra.mxu0 %v1848
        %1876 = vmatprep.subr.mxu0 0.0
        %1877 = vmatpush1.msra.mxu0 %v1849
        %1878 = vmatprep.subr.mxu0 0.0
        %1879 = vmatpush1.msra.mxu0 %v1850
        %1880 = vmatprep.subr.mxu0 0.0
        %1881 = vmatpush1.msra.mxu0 0.0
        %1882 = vmatprep.subr.mxu0 0.0
        %1883 = vmatpush1.msra.mxu0 0.0
        %1884 = vmatprep.subr.mxu0 0.0
        %1885 = vmatpush1.msra.mxu0 0.0
        %1886 = vmatprep.subr.mxu0 0.0
        %1887 = vmatpush1.msra.mxu0 0.0
        %1888 = vmatprep.subr.mxu0 0.0
        %1889 = vmatpush1.msra.mxu0 0.0
        %1890 = vmatprep.subr.mxu0 0.0
        %1891 = vmatpush1.msra.mxu0 0.0
        %1892 = vmatprep.subr.mxu0 0.0
        %1893 = vmatpush1.msra.mxu0 0.0
        %1894 = vmatprep.subr.mxu0 0.0
        %1895 = vmatpush1.msra.mxu0 0.0
        %1896 = vmatprep.subr.mxu0 0.0
        %1897 = vmatpush1.msra.mxu0 0.0
        %1898 = vmatprep.subr.mxu0 0.0
        %1899 = vmatpush1.msra.mxu0 0.0
        %1900 = vmatprep.subr.mxu0 0.0
        %1901 = vmatpush1.msra.mxu0 0.0
        %1902 = vmatprep.subr.mxu0 0.0
        %1903 = vmatpush1.msra.mxu0 0.0
        %1904 = vmatprep.subr.mxu0 0.0
        %1905 = vmatpush1.msra.mxu0 0.0
        %1906 = vmatprep.subr.mxu0 0.0
        %1907 = vmatpush1.msra.mxu0 0.0
        %1908 = vmatprep.subr.mxu0 0.0
        %1909 = vmatpush1.msra.mxu0 0.0
        %1910 = vmatprep.subr.mxu0 0.0
        %1911 = vmatpush1.msra.mxu0 0.0
        %1912 = vmatprep.subr.mxu0 0.0
        %1913 = vmatpush1.msra.mxu0 0.0
        %1914 = vmatprep.subr.mxu0 0.0
        %1915 = vmatpush1.msra.mxu0 0.0
        %1916 = vmatprep.subr.mxu0 0.0
        %1917 = vmatpush1.msra.mxu0 0.0
        %1918 = vmatprep.subr.mxu0 0.0
        %1919 = vmatpush1.msra.mxu0 0.0
        %1920 = vmatprep.subr.mxu0 0.0
        %1921 = vmatpush1.msra.mxu0 0.0
        %1922 = vmatprep.subr.mxu0 0.0
        %1923 = vmatpush1.msra.mxu0 0.0
        %1924 = vmatprep.subr.mxu0 0.0
        %1925 = vmatpush1.msra.mxu0 0.0
        %1926 = vmatprep.subr.mxu0 0.0
        %1927 = vmatpush1.msra.mxu0 0.0
        %1928 = vmatprep.mubr.f32.mxu0 0.0
        %1929 = vmatmul.mubr.f32.gmra.mrb[0].mxu0 %v1862
        %v1930 = vpop.f32.mrb[0].mxu0
        %v1931 = vadd.f32 0.0, %v1930
        %v1932 = vpop.f32.mrb[0].mxu0
        %1933 = vdwg.mxu0
        %v1934 = vadd.f32 %v1859, %v1931
        %1935 = vst [vmem:[%s3] sm:$0x1] %v1934
        %v1936 = vld [vmem:[%s4] sm:$0x1]
        %v1937 = vmul.f32 %v1843, %v1843
        %v1938 = vmul.f32 %v1844, %v1844
        %v1939 = vmul.f32 %v1845, %v1845
        %v1940 = vmul.f32 %v1846, %v1846
        %v1941 = vmul.f32 %v1847, %v1847
        %v1942 = vmul.f32 %v1848, %v1848
        %v1943 = vmul.f32 %v1849, %v1849
        %v1944 = vmul.f32 %v1850, %v1850
        %1945 = vmatprep.subr.mxu0 0.0
        %1946 = vmatpush1.msra.mxu0 %v1937
        %1947 = vmatprep.subr.mxu0 0.0
        %1948 = vmatpush1.msra.mxu0 %v1938
        %1949 = vmatprep.subr.mxu0 0.0
        %1950 = vmatpush1.msra.mxu0 %v1939
        %1951 = vmatprep.subr.mxu0 0.0
        %1952 = vmatpush1.msra.mxu0 %v1940
        %1953 = vmatprep.subr.mxu0 0.0
        %1954 = vmatpush1.msra.mxu0 %v1941
        %1955 = vmatprep.subr.mxu0 0.0
        %1956 = vmatpush1.msra.mxu0 %v1942
        %1957 = vmatprep.subr.mxu0 0.0
        %1958 = vmatpush1.msra.mxu0 %v1943
        %1959 = vmatprep.subr.mxu0 0.0
        %1960 = vmatpush1.msra.mxu0 %v1944
        %1961 = vmatprep.subr.mxu0 0.0
        %1962 = vmatpush1.msra.mxu0 0.0
        %1963 = vmatprep.subr.mxu0 0.0
        %1964 = vmatpush1.msra.mxu0 0.0
        %1965 = vmatprep.subr.mxu0 0.0
        %1966 = vmatpush1.msra.mxu0 0.0
        %1967 = vmatprep.subr.mxu0 0.0
        %1968 = vmatpush1.msra.mxu0 0.0
        %1969 = vmatprep.subr.mxu0 0.0
        %1970 = vmatpush1.msra.mxu0 0.0
        %1971 = vmatprep.subr.mxu0 0.0
        %1972 = vmatpush1.msra.mxu0 0.0
        %1973 = vmatprep.subr.mxu0 0.0
        %1974 = vmatpush1.msra.mxu0 0.0
        %1975 = vmatprep.subr.mxu0 0.0
        %1976 = vmatpush1.msra.mxu0 0.0
        %1977 = vmatprep.subr.mxu0 0.0
        %1978 = vmatpush1.msra.mxu0 0.0
        %1979 = vmatprep.subr.mxu0 0.0
        %1980 = vmatpush1.msra.mxu0 0.0
        %1981 = vmatprep.subr.mxu0 0.0
        %1982 = vmatpush1.msra.mxu0 0.0
        %1983 = vmatprep.subr.mxu0 0.0
        %1984 = vmatpush1.msra.mxu0 0.0
        %1985 = vmatprep.subr.mxu0 0.0
        %1986 = vmatpush1.msra.mxu0 0.0
        %1987 = vmatprep.subr.mxu0 0.0
        %1988 = vmatpush1.msra.mxu0 0.0
        %1989 = vmatprep.subr.mxu0 0.0
        %1990 = vmatpush1.msra.mxu0 0.0
        %1991 = vmatprep.subr.mxu0 0.0
        %1992 = vmatpush1.msra.mxu0 0.0
        %1993 = vmatprep.subr.mxu0 0.0
        %1994 = vmatpush1.msra.mxu0 0.0
        %1995 = vmatprep.subr.mxu0 0.0
        %1996 = vmatpush1.msra.mxu0 0.0
        %1997 = vmatprep.subr.mxu0 0.0
        %1998 = vmatpush1.msra.mxu0 0.0
        %1999 = vmatprep.subr.mxu0 0.0
        %2000 = vmatpush1.msra.mxu0 0.0
        %2001 = vmatprep.subr.mxu0 0.0
        %2002 = vmatpush1.msra.mxu0 0.0
        %2003 = vmatprep.subr.mxu0 0.0
        %2004 = vmatpush1.msra.mxu0 0.0
        %2005 = vmatprep.subr.mxu0 0.0
        %2006 = vmatpush1.msra.mxu0 0.0
        %2007 = vmatprep.subr.mxu0 0.0
        %2008 = vmatpush1.msra.mxu0 0.0
        %2009 = vmatprep.mubr.f32.mxu0 0.0
        %2010 = vmatmul.mubr.f32.gmra.mrb[0].mxu0 %v1862
        %v2011 = vpop.f32.mrb[0].mxu0
        %v2012 = vadd.f32 0.0, %v2011
        %v2013 = vpop.f32.mrb[0].mxu0
        %2014 = vdwg.mxu0
        %v2015 = vadd.f32 %v1936, %v2012
        %2016 = vst [vmem:[%s4] sm:$0x1] %v2015
      $region40: #{bottleneck_forward.8} parent=27 // pred_fallthru
        _
      %p2017 = scmp.lt.s32.totalorder %s21, 1
      %s2018 = scalar_select %p2017, %s21, 1
      %p2019 = scmp.lt.s32.totalorder %s22, 7
      %s2020 = scalar_select %p2019, %s22, 7
      %s2021 = smul.addr %s2020, 8
      %s2022 = smul.addr %s2018, 64
      %s2023 = sadd.s32 %s2021, %s2022
      %s2024 = smul.addr %s2023, 8
      %s2025 = scalar_lea.vmem %s2, %s2024
      // Predicated region
      $region41: #{bottleneck_forward.8} parent=27 // pred_check
        %p2026 = pneg %p106
      $region42: #{bottleneck_forward.8} parent=27 // pred_check_branch
        %2028 = sbr.rel (%p2026) target = $region44
      $region43: #{bottleneck_forward.8} parent=27 // pred_region
        _
      $region44: #{bottleneck_forward.8} parent=27 // pred_fallthru
        _
      // Predicated region
      $region45: #{bottleneck_forward.8} parent=27 // pred_check
        %p2029 = pneg %p127
      $region46: #{bottleneck_forward.8} parent=27 // pred_check_branch
        %2031 = sbr.rel (%p2029) target = $region48
      $region47: #{bottleneck_forward.8} parent=27 // pred_region
        _
      $region48: #{bottleneck_forward.8} parent=27 // pred_fallthru
        _
      // Predicated region
      $region49: #{bottleneck_forward.8} parent=27 // pred_check
        %p2032 = pneg %p148
      $region50: #{bottleneck_forward.8} parent=27 // pred_check_branch
        %2034 = sbr.rel (%p2032) target = $region52
      $region51: #{bottleneck_forward.8} parent=27 // pred_region
        _
      $region52: #{bottleneck_forward.8} parent=27 // pred_fallthru
        _
      // Predicated region
      $region53: #{bottleneck_forward.8} parent=27 // pred_check
        %p2035 = pneg %p127
      $region54: #{bottleneck_forward.8} parent=27 // pred_check_branch
        %2037 = sbr.rel (%p2035) target = $region56
      $region55: #{bottleneck_forward.8} parent=27 // pred_region
        _
      $region56: #{bottleneck_forward.8} parent=27 // pred_fallthru
        _
      // Predicated region
      $region57: #{bottleneck_forward.8} parent=27 // pred_check
        %p2038 = pneg %p148
      $region58: #{bottleneck_forward.8} parent=27 // pred_check_branch
        %2040 = sbr.rel (%p2038) target = $region60
      $region59: #{bottleneck_forward.8} parent=27 // pred_region
        _
      $region60: #{bottleneck_forward.8} parent=27 // pred_fallthru
        _
    $region28: #{bottleneck_forward.8} parent=5 // pred_fallthru
      _
    %p2041 = scmp.le.s32.totalorder 2, %s11
    // Predicated region
    $region61: #{bottleneck_forward.8} parent=5 // pred_check
      %p2042 = pneg %p2041
    $region62: #{bottleneck_forward.8} parent=5 // pred_check_branch
      %2044 = sbr.rel (%p2042) target = $region64
    $region63: #{bottleneck_forward.8} parent=5 // pred_region
      %s2045 = ssub.s32 %s11, 2
      // Predicated region
      $region65: #{bottleneck_forward.8} parent=63 // pred_check
        %p2046 = pneg %p112
      $region66: #{bottleneck_forward.8} parent=63 // pred_check_branch
        %2048 = sbr.rel (%p2046) target = $region68
      $region67: #{bottleneck_forward.8} parent=63 // pred_region
        %p2049 = scmp.lt.s32.totalorder %s24, 1
        %s2050 = scalar_select %p2049, %s24, 1
        %p2051 = scmp.lt.s32.totalorder %s25, 7
        %s2052 = scalar_select %p2051, %s25, 7
        %s2053 = smul.addr %s2052, 8
        %s2054 = smul.addr %s2050, 64
        %s2055 = sadd.s32 %s2053, %s2054
        %s2056 = smul.addr %s2055, 8
        %s2057 = scalar_lea.vmem %s2, %s2056
      $region68: #{bottleneck_forward.8} parent=63 // pred_fallthru
        _
    $region64: #{bottleneck_forward.8} parent=5 // pred_fallthru
      _
  $region6: #{bottleneck_forward.8} parent=0 // loop_footer
    %s15 = sadd.s32 1, %s11
  $region7: #{bottleneck_forward.8} parent=0 // loop_footer_branch
    %10 = sbr.rel target = $region3
  $region8: #{bottleneck_forward.8} parent=0 // loop_exit
    _

</llo_original>
